<compile_context>
chip_gen: v5e
topology: v5e:2x2
jax: 0.10.0
libtpu: 0.0.40
codegen_flags: <defaults>
</compile_context>

<pallas_src>
import functools
import math

import jax
import jax.numpy as jnp
from jax.experimental import pallas as pl
from jax.experimental.pallas import tpu as pltpu


def _decoder_layer_kernel(
    tgt_ref, mem_ref, qpos_ref, tkc_ref, tkb_ref, mkb_ref,
    wq_s_ref, bq_s_ref, wkv_s_ref, bkv_s_ref, wo_s_ref, bo_s_ref,
    wq_c_ref, bq_c_ref, wkv_c_ref, bkv_c_ref, wo_c_ref, bo_c_ref,
    g1_ref, be1_ref, g2_ref, be2_ref, g3_ref, be3_ref,
    w1_ref, b1_ref, w2_ref, b2_ref,
    out_ref, amax_ref,
    ks_ref, vs_ref, km_ref, vm_ref, ctx_ref, wsum_ref,
    *, n_heads, eps, q_tile, ffn_chunk, compute_dtype):
  qi = pl.program_id(1)
  qlen = tgt_ref.shape[1]
  mlen = mem_ref.shape[1]
  d_model = tgt_ref.shape[-1]
  dff = w1_ref.shape[1]
  dph = d_model // n_heads
  scale = 1.0 / math.sqrt(dph)
  cd = compute_dtype
  f32 = jnp.float32

  def layernorm(y, g_ref, b_ref):
    mu = jnp.mean(y, axis=-1, keepdims=True)
    yc = y - mu
    var = jnp.mean(yc * yc, axis=-1, keepdims=True)
    return yc * jax.lax.rsqrt(var + eps) * g_ref[...] + b_ref[...]

  # ---- once per batch element: head-major K/V for self-attention (masked & normed full tgt)
  #      and for cross-attention (memory), resident in VMEM scratch for every q tile. ----
  @pl.when(qi == 0)
  def _prepare_kv():
    x_full = tgt_ref[0]                                              # (qlen, d)  f32
    tgt2_full = layernorm(x_full, g1_ref, be1_ref) * tkc_ref[0]      # masked pre-norm
    kv_s = jnp.dot(tgt2_full.astype(cd), wkv_s_ref[...],
                   preferred_element_type=f32) + bkv_s_ref[...]      # (qlen, 2d)
    kv_c = jnp.dot(mem_ref[0], wkv_c_ref[...],
                   preferred_element_type=f32) + bkv_c_ref[...]      # (mlen, 2d)
    for h in range(n_heads):
      lo = h * dph
      ks_ref[h] = kv_s[:, lo:lo + dph].astype(cd)
      vs_ref[h] = kv_s[:, d_model + lo:d_model + lo + dph].astype(cd)
      km_ref[h] = kv_c[:, lo:lo + dph].astype(cd)
      vm_ref[h] = kv_c[:, d_model + lo:d_model + lo + dph].astype(cd)

  # ---- current q tile ----
  r0 = pl.multiple_of(qi * q_tile, q_tile)
  x_tile = tgt_ref[0, pl.ds(r0, q_tile), :]                          # (TQ, d) f32
  qpos_tile = qpos_ref[0]                                            # (TQ, d) f32
  tkc_tile = tkc_ref[0, pl.ds(r0, q_tile), :]                        # (TQ, 1) f32

  def mha(q_rows_cd, k_scr, v_scr, wo_ref, bo_ref, mask_bias, wsum_out):
    """Multi-head attention of (TQ, d) bf16 queries against resident head-major K/V scratch.

    Per-head: scores via dot_general contracting dph (no K transpose), additive key-mask
    bias (hoisted), EUP-reciprocal softmax, ctx_h written into the shared ctx VMEM buffer.
    A single K=d_model matmul projects the concatenated context through Wo after the loop.
    """
    for h in range(n_heads):
      lo = h * dph
      qh = q_rows_cd[:, lo:lo + dph]                                 # (TQ, dph)   bf16
      s = jax.lax.dot_general(qh, k_scr[h], (((1,), (1,)), ((), ())),
                              preferred_element_type=f32)            # (TQ, klen)
      s = s + mask_bias                                              # additive 0 / -1e30
      m = jnp.max(s, axis=-1, keepdims=True)
      p = jnp.exp(s - m)
      p = p * pl.reciprocal(jnp.sum(p, axis=-1, keepdims=True), approx=True)
      if wsum_out is not None:                                       # cross-attn weights
        if h == 0:
          wsum_out[...] = p
        else:
          wsum_out[...] += p
      ctx_ref[:, lo:lo + dph] = jnp.dot(
          p.astype(cd), v_scr[h], preferred_element_type=f32).astype(cd)
    return jnp.dot(ctx_ref[...], wo_ref[...],
                   preferred_element_type=f32) + bo_ref[...]

  # ---- self-attention + residual (dropout1 = identity in eval) ----
  tgt2_tile = layernorm(x_tile, g1_ref, be1_ref) * tkc_tile
  q_self = (jnp.dot((tgt2_tile + qpos_tile).astype(cd), wq_s_ref[...],
                    preferred_element_type=f32) + bq_s_ref[...]) * scale
  sa_out = mha(q_self.astype(cd), ks_ref, vs_ref, wo_s_ref, bo_s_ref,
               tkb_ref[0], None)
  tgt1 = x_tile + sa_out

  # ---- cross-attention over memory + residual (dropout2 = identity) ----
  y2 = layernorm(tgt1, g2_ref, be2_ref)
  q_cross = (jnp.dot((y2 + qpos_tile).astype(cd), wq_c_ref[...],
                     preferred_element_type=f32) + bq_c_ref[...]) * scale
  ca_out = mha(q_cross.astype(cd), km_ref, vm_ref, wo_c_ref, bo_c_ref,
               mkb_ref[0], wsum_ref)
  tgt_c = tgt1 + ca_out

  # argmax over keys of the head-averaged cross-attention weights (argmax is invariant to the
  # 1/n_heads scaling, so the division is skipped).  First-max index, like torch.argmax.
  wsum = wsum_ref[...]
  col = jax.lax.broadcasted_iota(jnp.int32, (q_tile, mlen), 1)
  wmax = jnp.max(wsum, axis=-1, keepdims=True)
  amax_ref[0] = jnp.min(jnp.where(wsum == wmax, col, mlen), axis=-1, keepdims=True)

  # ---- FFN (chunked over dff) + residual, final key-padding mask ----
  y3 = layernorm(tgt_c, g3_ref, be3_ref).astype(cd)
  h2 = jnp.zeros((q_tile, d_model), f32)
  for c in range(dff // ffn_chunk):
    c0 = c * ffn_chunk
    h1 = jnp.maximum(
        jnp.dot(y3, w1_ref[:, c0:c0 + ffn_chunk], preferred_element_type=f32)
        + b1_ref[:, c0:c0 + ffn_chunk], 0.0)
    h2 = h2 + jnp.dot(h1.astype(cd), w2_ref[c0:c0 + ffn_chunk, :],
                      preferred_element_type=f32)
  h2 = h2 + b2_ref[...]
  out_ref[0] = ((tgt_c + h2) * tkc_tile).astype(out_ref.dtype)


def transformer_decoder_layer(tgt, memory, query_pos, tgt_key_padding_mask,
                              memory_key_padding_mask, params, *, n_heads,
                              eps=1e-5, q_tile=None, compute_dtype=jnp.bfloat16):
  bs, qlen, d_model = tgt.shape
  mlen = memory.shape[1]
  dff = params["w1"].shape[1]
  assert d_model % n_heads == 0
  dph = d_model // n_heads
  f32 = jnp.float32
  cd = compute_dtype

  if q_tile is None:
    if qlen <= 256:
      q_tile = qlen
    elif qlen % 256 == 0:
      q_tile = 256
    else:
      q_tile = 128
  assert qlen % q_tile == 0 and q_tile % 8 == 0
  n_qt = qlen // q_tile

  if dff % 512 == 0 and dff > 512:
    ffn_chunk = 512
  elif dff % 256 == 0 and dff > 256:
    ffn_chunk = 256
  else:
    ffn_chunk = dff

  # ---- pack / cast parameters: weight matrices -> bf16 (half the DMA), biases / LN -> f32 ----
  def wmat(x):
    return x.astype(cd)

  def brow(x, n):
    return x.reshape(1, n).astype(f32)

  wq_s = wmat(params["sa_wq"]); bq_s = brow(params["sa_bq"], d_model)
  wkv_s = wmat(jnp.concatenate([params["sa_wk"], params["sa_wv"]], axis=1))
  bkv_s = brow(jnp.concatenate([params["sa_bk"], params["sa_bv"]]), 2 * d_model)
  wo_s = wmat(params["sa_wo"]); bo_s = brow(params["sa_bo"], d_model)

  wq_c = wmat(params["ca_wq"]); bq_c = brow(params["ca_bq"], d_model)
  wkv_c = wmat(jnp.concatenate([params["ca_wk"], params["ca_wv"]], axis=1))
  bkv_c = brow(jnp.concatenate([params["ca_bk"], params["ca_bv"]]), 2 * d_model)
  wo_c = wmat(params["ca_wo"]); bo_c = brow(params["ca_bo"], d_model)

  g1 = brow(params["ln1_g"], d_model); be1 = brow(params["ln1_b"], d_model)
  g2 = brow(params["ln2_g"], d_model); be2 = brow(params["ln2_b"], d_model)
  g3 = brow(params["ln3_g"], d_model); be3 = brow(params["ln3_b"], d_model)

  w1 = wmat(params["w1"]); b1 = brow(params["b1"], dff)
  w2 = wmat(params["w2"]); b2 = brow(params["b2"], d_model)

  # masks: column form (multiplicative, qlen on sublanes) + ADDITIVE bias row form (keys on
  # lanes, 0 keep / -1e30 drop) prepared host-side so the kernel never transposes or selects.
  tkm = tgt_key_padding_mask.astype(f32)
  mkm = memory_key_padding_mask.astype(f32)
  tkc = tkm.reshape(bs, qlen, 1)
  tkb = jnp.where(tkm == 0.0, jnp.float32(-1e30), jnp.float32(0.0)).reshape(bs, 1, qlen)
  mkb = jnp.where(mkm == 0.0, jnp.float32(-1e30), jnp.float32(0.0)).reshape(bs, 1, mlen)

  tgt = tgt.astype(f32)
  memory = memory.astype(cd)            # only ever used as a bf16 matmul operand
  query_pos = query_pos.astype(f32)

  def rep(shape):
    # Replicated parameter block: constant block index -> the pipeline DMAs it only once.
    return pl.BlockSpec(shape, lambda b, q: (0,) * len(shape))

  in_specs = [
      pl.BlockSpec((1, qlen, d_model), lambda b, q: (b, 0, 0)),      # tgt (full seq per batch)
      pl.BlockSpec((1, mlen, d_model), lambda b, q: (b, 0, 0)),      # memory (bf16)
      pl.BlockSpec((1, q_tile, d_model), lambda b, q: (b, q, 0)),    # query_pos (q tile)
      pl.BlockSpec((1, qlen, 1), lambda b, q: (b, 0, 0)),            # tgt mask, column form
      pl.BlockSpec((1, 1, qlen), lambda b, q: (b, 0, 0)),            # tgt mask bias, row form
      pl.BlockSpec((1, 1, mlen), lambda b, q: (b, 0, 0)),            # memory mask bias, row form
      rep((d_model, d_model)), rep((1, d_model)),                    # self-attn Wq, bq
      rep((d_model, 2 * d_model)), rep((1, 2 * d_model)),            # self-attn Wkv, bkv
      rep((d_model, d_model)), rep((1, d_model)),                    # self-attn Wo, bo
      rep((d_model, d_model)), rep((1, d_model)),                    # cross-attn Wq, bq
      rep((d_model, 2 * d_model)), rep((1, 2 * d_model)),            # cross-attn Wkv, bkv
      rep((d_model, d_model)), rep((1, d_model)),                    # cross-attn Wo, bo
      rep((1, d_model)), rep((1, d_model)),                          # norm1 g, b
      rep((1, d_model)), rep((1, d_model)),                          # norm2 g, b
      rep((1, d_model)), rep((1, d_model)),                          # norm3 g, b
      rep((d_model, dff)), rep((1, dff)),                            # linear1
      rep((dff, d_model)), rep((1, d_model)),                        # linear2
  ]
  out_specs = [
      pl.BlockSpec((1, q_tile, d_model), lambda b, q: (b, q, 0)),    # tgt output (lane-dense)
      pl.BlockSpec((1, q_tile, 1), lambda b, q: (b, q, 0)),          # cross-attn argmax
  ]
  out_shape = (
      jax.ShapeDtypeStruct((bs, qlen, d_model), f32),
      jax.ShapeDtypeStruct((bs, qlen, 1), jnp.int32),
  )
  scratch_shapes = [
      pltpu.VMEM((n_heads, qlen, dph), cd), pltpu.VMEM((n_heads, qlen, dph), cd),  # self K, V
      pltpu.VMEM((n_heads, mlen, dph), cd), pltpu.VMEM((n_heads, mlen, dph), cd),  # memory K, V
      pltpu.VMEM((q_tile, d_model), cd),                                           # mha context
      pltpu.VMEM((q_tile, mlen), jnp.float32),                                     # cross wsum
  ]

  args = (tgt, memory, query_pos, tkc, tkb, mkb,
          wq_s, bq_s, wkv_s, bkv_s, wo_s, bo_s,
          wq_c, bq_c, wkv_c, bkv_c, wo_c, bo_c,
          g1, be1, g2, be2, g3, be3,
          w1, b1, w2, b2)

  # ---- generation-aware VMEM budget: double-buffered per-step blocks + resident scratch +
  #      headroom, clamped to ~85% of this chip's physical VMEM (128 MiB v5e/v6e, 64 MiB v7x).
  def _rup(x, m):
    return ((x + m - 1) // m) * m

  cd_bytes = jnp.dtype(cd).itemsize
  block_bytes = sum(math.prod(s.block_shape) * a.dtype.itemsize
                    for s, a in zip(in_specs, args))
  block_bytes += q_tile * d_model * 4 + q_tile * 4                    # output blocks
  scratch_bytes = (2 * (_rup(qlen, 8) + _rup(mlen, 8)) * n_heads * _rup(dph, 128) * cd_bytes
                   + _rup(q_tile, 8) * _rup(d_model, 128) * cd_bytes
                   + _rup(q_tile, 8) * _rup(mlen, 128) * 4)
  try:
    vmem_cap = int(pltpu.get_tpu_info().vmem_capacity_bytes)
  except Exception:
    vmem_cap = 64 << 20                                               # conservative (v7x)
  vmem_limit = int(min(max(2 * block_bytes + scratch_bytes + (8 << 20), 32 << 20),
                       int(vmem_cap * 0.85)))

  flops = 2 * bs * (
      qlen * d_model * d_model                # self-attn q projection
      + qlen * d_model * 2 * d_model          # self-attn kv projection
      + 2 * qlen * qlen * d_model             # self attention (qk + pv)
      + qlen * d_model * d_model              # self-attn out projection
      + qlen * d_model * d_model              # cross-attn q projection
      + mlen * d_model * 2 * d_model          # cross-attn kv projection
      + 2 * qlen * mlen * d_model             # cross attention
      + qlen * d_model * d_model              # cross-attn out projection
      + 2 * qlen * d_model * dff)             # FFN
  transcendentals = bs * n_heads * qlen * (qlen + mlen)
  bytes_accessed = int(sum(a.size * a.dtype.itemsize for a in args)
                       + bs * qlen * (d_model * 4 + 4))

  kernel = functools.partial(_decoder_layer_kernel, n_heads=n_heads, eps=eps,
                             q_tile=q_tile, ffn_chunk=ffn_chunk, compute_dtype=cd)
  out, amax = pl.pallas_call(
      kernel,
      out_shape=out_shape,
      grid_spec=pltpu.PrefetchScalarGridSpec(
          num_scalar_prefetch=0,
          grid=(bs, n_qt),
          in_specs=in_specs,
          out_specs=out_specs,
          scratch_shapes=scratch_shapes),
      compiler_params=pltpu.CompilerParams(
          dimension_semantics=("parallel", "arbitrary"),
          vmem_limit_bytes=vmem_limit),
      cost_estimate=pl.CostEstimate(flops=int(flops),
                                    transcendentals=int(transcendentals),
                                    bytes_accessed=bytes_accessed),
  )(*args)
  return out, amax[..., 0]


# ---------------- pure-JAX reference (mirrors the kernel's bf16 matmul casts) ----------------
def reference(tgt, memory, query_pos, tkpm, mkpm, params, *, n_heads, eps=1e-5,
              compute_dtype=jnp.bfloat16):
  f32 = jnp.float32
  cd = compute_dtype

  def ln(y, g, b):
    mu = jnp.mean(y, axis=-1, keepdims=True)
    yc = y - mu
    var = jnp.mean(yc * yc, axis=-1, keepdims=True)
    return yc * jax.lax.rsqrt(var + eps) * g + b

  def mm(x, w):
    return jnp.dot(x.astype(cd), w.astype(cd), preferred_element_type=f32)

  bs, qlen, d = tgt.shape
  dph = d // n_heads
  scale = 1.0 / math.sqrt(dph)

  def split_heads(x):
    return x.reshape(bs, -1, n_heads, dph).transpose(0, 2, 1, 3)

  def mha(q_in, kv_src, key_mask, wq, bq, wk, bk, wv, bv, wo, bo):
    q = (mm(q_in, wq) + bq) * scale
    k = (mm(kv_src, wk) + bk).astype(cd)
    v = (mm(kv_src, wv) + bv).astype(cd)
    qh, kh, vh = split_heads(q).astype(cd), split_heads(k), split_heads(v)
    s = jnp.einsum("bhqd,bhkd->bhqk", qh, kh, preferred_element_type=f32)
    s = jnp.where(key_mask[:, None, None, :] == 0.0, -jnp.inf, s)
    w = jax.nn.softmax(s, axis=-1)
    ctx = jnp.einsum("bhqk,bhkd->bhqd", w.astype(cd), vh, preferred_element_type=f32)
    ctx = ctx.transpose(0, 2, 1, 3).reshape(bs, -1, d)
    avg = w.sum(axis=1) / n_heads
    return mm(ctx, wo) + bo, avg

  tkm = tkpm.astype(f32)
  mkm = mkpm.astype(f32)
  tgt2 = ln(tgt, params["ln1_g"], params["ln1_b"]) * tkm[..., None]
  sa, _ = mha(tgt2 + query_pos, tgt2, tkm,
              params["sa_wq"], params["sa_bq"], params["sa_wk"], params["sa_bk"],
              params["sa_wv"], params["sa_bv"], params["sa_wo"], params["sa_bo"])
  t1 = tgt + sa
  y2 = ln(t1, params["ln2_g"], params["ln2_b"])
  ca, avg = mha(y2 + query_pos, memory, mkm,
                params["ca_wq"], params["ca_bq"], params["ca_wk"], params["ca_bk"],
                params["ca_wv"], params["ca_bv"], params["ca_wo"], params["ca_bo"])
  t2 = t1 + ca
  y3 = ln(t2, params["ln3_g"], params["ln3_b"])
  ff = mm(jnp.maximum(mm(y3, params["w1"]) + params["b1"], 0.0),
          params["w2"]) + params["b2"]
  out = (t2 + ff) * tkm[..., None]
  return out, jnp.argmax(avg, axis=-1).astype(jnp.int32), avg


if __name__ == "__main__":
  # Small, module-consistent shapes; d_model / dff are multiples of 128 (lane-dense),
  # qlen has 2 q tiles so the K/V scratch-reuse path is exercised.
  bs, qlen, mlen = 2, 32, 48
  d_model, n_heads, dff = 128, 4, 256
  q_tile = 16

  key = jax.random.PRNGKey(0)
  kit = iter(jax.random.split(key, 32))

  def nrm(shape, scale=1.0):
    return (scale * jax.random.normal(next(kit), shape)).astype(jnp.float32)

  wscale = 1.0 / math.sqrt(d_model)
  params = {
      # Linear weights stored as (in, out) == PyTorch weight transposed.
      "sa_wq": nrm((d_model, d_model), wscale), "sa_bq": nrm((d_model,), 0.02),
      "sa_wk": nrm((d_model, d_model), wscale), "sa_bk": nrm((d_model,), 0.02),
      "sa_wv": nrm((d_model, d_model), wscale), "sa_bv": nrm((d_model,), 0.02),
      "sa_wo": nrm((d_model, d_model), wscale), "sa_bo": nrm((d_model,), 0.02),
      "ca_wq": nrm((d_model, d_model), wscale), "ca_bq": nrm((d_model,), 0.02),
      "ca_wk": nrm((d_model, d_model), wscale), "ca_bk": nrm((d_model,), 0.02),
      "ca_wv": nrm((d_model, d_model), wscale), "ca_bv": nrm((d_model,), 0.02),
      "ca_wo": nrm((d_model, d_model), wscale), "ca_bo": nrm((d_model,), 0.02),
      "ln1_g": 1.0 + nrm((d_model,), 0.05), "ln1_b": nrm((d_model,), 0.05),
      "ln2_g": 1.0 + nrm((d_model,), 0.05), "ln2_b": nrm((d_model,), 0.05),
      "ln3_g": 1.0 + nrm((d_model,), 0.05), "ln3_b": nrm((d_model,), 0.05),
      "w1": nrm((d_model, dff), wscale), "b1": nrm((dff,), 0.02),
      "w2": nrm((dff, d_model), 1.0 / math.sqrt(dff)), "b2": nrm((d_model,), 0.02),
  }

  tgt = nrm((bs, qlen, d_model))
  memory = nrm((bs, mlen, d_model))
  query_pos = nrm((bs, qlen, d_model), 0.5)

  # key-padding masks: 1 = keep, 0 = padded (trailing positions per batch element).
  tgt_mask = jnp.ones((bs, qlen), jnp.float32).at[1, qlen - 4:].set(0.0)
  mem_mask = jnp.ones((bs, mlen), jnp.float32).at[0, mlen - 6:].set(0.0)

  out, amax = transformer_decoder_layer(
      tgt, memory, query_pos, tgt_mask, mem_mask, params,
      n_heads=n_heads, q_tile=q_tile, compute_dtype=jnp.bfloat16)
  out = jax.block_until_ready(out)
  amax = jax.block_until_ready(amax)

  ref_out, ref_amax, ref_avg = reference(
      tgt, memory, query_pos, tgt_mask, mem_mask, params,
      n_heads=n_heads, compute_dtype=jnp.bfloat16)

  assert out.shape == (bs, qlen, d_model) and amax.shape == (bs, qlen)
  assert jnp.allclose(out, ref_out, atol=2e-2, rtol=2e-2), \
      float(jnp.max(jnp.abs(out - ref_out)))
  # cross-attention argmax: require a match wherever the reference top-2 gap is not a near-tie
  # (the kernel's approx-reciprocal softmax may legitimately flip exact ties).
  top2 = jax.lax.top_k(ref_avg, 2)[0]
  confident = (top2[..., 0] - top2[..., 1]) > 1e-3 * top2[..., 0]
  assert bool(jnp.all(jnp.where(confident, amax == ref_amax, True)))

  print("KERNEL_OK")
</pallas_src>

<mosaic_0001>
module attributes {stable_mosaic.version = 11 : i64} {
  func.func @_decoder_layer_kernel(%arg0: i32, %arg1: i32, %arg2: memref<1x32x128xf32, #tpu.memory_space<vmem>>, %arg3: memref<1x48x128xbf16, #tpu.memory_space<vmem>>, %arg4: memref<1x16x128xf32, #tpu.memory_space<vmem>>, %arg5: memref<1x32x1xf32, #tpu.memory_space<vmem>>, %arg6: memref<1x1x32xf32, #tpu.memory_space<vmem>>, %arg7: memref<1x1x48xf32, #tpu.memory_space<vmem>>, %arg8: memref<128x128xbf16, #tpu.memory_space<vmem>>, %arg9: memref<1x128xf32, #tpu.memory_space<vmem>>, %arg10: memref<128x256xbf16, #tpu.memory_space<vmem>>, %arg11: memref<1x256xf32, #tpu.memory_space<vmem>>, %arg12: memref<128x128xbf16, #tpu.memory_space<vmem>>, %arg13: memref<1x128xf32, #tpu.memory_space<vmem>>, %arg14: memref<128x128xbf16, #tpu.memory_space<vmem>>, %arg15: memref<1x128xf32, #tpu.memory_space<vmem>>, %arg16: memref<128x256xbf16, #tpu.memory_space<vmem>>, %arg17: memref<1x256xf32, #tpu.memory_space<vmem>>, %arg18: memref<128x128xbf16, #tpu.memory_space<vmem>>, %arg19: memref<1x128xf32, #tpu.memory_space<vmem>>, %arg20: memref<1x128xf32, #tpu.memory_space<vmem>>, %arg21: memref<1x128xf32, #tpu.memory_space<vmem>>, %arg22: memref<1x128xf32, #tpu.memory_space<vmem>>, %arg23: memref<1x128xf32, #tpu.memory_space<vmem>>, %arg24: memref<1x128xf32, #tpu.memory_space<vmem>>, %arg25: memref<1x128xf32, #tpu.memory_space<vmem>>, %arg26: memref<128x256xbf16, #tpu.memory_space<vmem>>, %arg27: memref<1x256xf32, #tpu.memory_space<vmem>>, %arg28: memref<256x128xbf16, #tpu.memory_space<vmem>>, %arg29: memref<1x128xf32, #tpu.memory_space<vmem>>, %arg30: memref<1x16x128xf32, #tpu.memory_space<vmem>>, %arg31: memref<1x16x1xi32, #tpu.memory_space<vmem>>, %arg32: memref<4x32x32xbf16, #tpu.memory_space<vmem>>, %arg33: memref<4x32x32xbf16, #tpu.memory_space<vmem>>, %arg34: memref<4x48x32xbf16, #tpu.memory_space<vmem>>, %arg35: memref<4x48x32xbf16, #tpu.memory_space<vmem>>, %arg36: memref<16x128xbf16, #tpu.memory_space<vmem>>, %arg37: memref<16x48xf32, #tpu.memory_space<vmem>>) attributes {dimension_semantics = [#tpu.dimension_semantics<parallel>, #tpu.dimension_semantics<arbitrary>], iteration_bounds = array<i64: 2, 2>, scalar_prefetch = 0 : i64, scratch_operands = 6 : i64, tpu.core_type = #tpu.core_type<tc>, window_params = [{transform_indices = @transform_0, window_bounds = array<i64: 1, 32, 128>}, {transform_indices = @transform_1, window_bounds = array<i64: 1, 48, 128>}, {transform_indices = @transform_2, window_bounds = array<i64: 1, 16, 128>}, {transform_indices = @transform_3, window_bounds = array<i64: 1, 32, 1>}, {transform_indices = @transform_4, window_bounds = array<i64: 1, 1, 32>}, {transform_indices = @transform_5, window_bounds = array<i64: 1, 1, 48>}, {pipeline_mode = #tpu.pipeline_mode<synchronous>, transform_indices = @transform_6, window_bounds = array<i64: 128, 128>}, {pipeline_mode = #tpu.pipeline_mode<synchronous>, transform_indices = @transform_7, window_bounds = array<i64: 1, 128>}, {pipeline_mode = #tpu.pipeline_mode<synchronous>, transform_indices = @transform_8, window_bounds = array<i64: 128, 256>}, {pipeline_mode = #tpu.pipeline_mode<synchronous>, transform_indices = @transform_9, window_bounds = array<i64: 1, 256>}, {pipeline_mode = #tpu.pipeline_mode<synchronous>, transform_indices = @transform_10, window_bounds = array<i64: 128, 128>}, {pipeline_mode = #tpu.pipeline_mode<synchronous>, transform_indices = @transform_11, window_bounds = array<i64: 1, 128>}, {pipeline_mode = #tpu.pipeline_mode<synchronous>, transform_indices = @transform_12, window_bounds = array<i64: 128, 128>}, {pipeline_mode = #tpu.pipeline_mode<synchronous>, transform_indices = @transform_13, window_bounds = array<i64: 1, 128>}, {pipeline_mode = #tpu.pipeline_mode<synchronous>, transform_indices = @transform_14, window_bounds = array<i64: 128, 256>}, {pipeline_mode = #tpu.pipeline_mode<synchronous>, transform_indices = @transform_15, window_bounds = array<i64: 1, 256>}, {pipeline_mode = #tpu.pipeline_mode<synchronous>, transform_indices = @transform_16, window_bounds = array<i64: 128, 128>}, {pipeline_mode = #tpu.pipeline_mode<synchronous>, transform_indices = @transform_17, window_bounds = array<i64: 1, 128>}, {pipeline_mode = #tpu.pipeline_mode<synchronous>, transform_indices = @transform_18, window_bounds = array<i64: 1, 128>}, {pipeline_mode = #tpu.pipeline_mode<synchronous>, transform_indices = @transform_19, window_bounds = array<i64: 1, 128>}, {pipeline_mode = #tpu.pipeline_mode<synchronous>, transform_indices = @transform_20, window_bounds = array<i64: 1, 128>}, {pipeline_mode = #tpu.pipeline_mode<synchronous>, transform_indices = @transform_21, window_bounds = array<i64: 1, 128>}, {pipeline_mode = #tpu.pipeline_mode<synchronous>, transform_indices = @transform_22, window_bounds = array<i64: 1, 128>}, {pipeline_mode = #tpu.pipeline_mode<synchronous>, transform_indices = @transform_23, window_bounds = array<i64: 1, 128>}, {pipeline_mode = #tpu.pipeline_mode<synchronous>, transform_indices = @transform_24, window_bounds = array<i64: 128, 256>}, {pipeline_mode = #tpu.pipeline_mode<synchronous>, transform_indices = @transform_25, window_bounds = array<i64: 1, 256>}, {pipeline_mode = #tpu.pipeline_mode<synchronous>, transform_indices = @transform_26, window_bounds = array<i64: 256, 128>}, {pipeline_mode = #tpu.pipeline_mode<synchronous>, transform_indices = @transform_27, window_bounds = array<i64: 1, 128>}, {transform_indices = @transform_28, window_bounds = array<i64: 1, 16, 128>}, {transform_indices = @transform_29, window_bounds = array<i64: 1, 16, 1>}]} {
    %c0_i32 = arith.constant 0 : i32
    %0 = arith.cmpi eq, %arg1, %c0_i32 : i32
    %1 = arith.extui %0 : i1 to i32
    %c0_i32_0 = arith.constant 0 : i32
    %2 = arith.cmpi ne, %1, %c0_i32_0 : i32
    scf.if %2 {
      %c0_191 = arith.constant 0 : index
      %c0_192 = arith.constant 0 : index
      %c0_193 = arith.constant 0 : index
      %340 = vector.load %arg2[%c0_191, %c0_192, %c0_193] : memref<1x32x128xf32, #tpu.memory_space<vmem>>, vector<1x32x128xf32>
      %341 = vector.shape_cast %340 : vector<1x32x128xf32> to vector<32x128xf32>
      %cst_194 = arith.constant dense<0.000000e+00> : vector<32xf32>
      %342 = vector.multi_reduction <add>, %341, %cst_194 [1] : vector<32x128xf32> to vector<32xf32>
      %343 = vector.shape_cast %342 : vector<32xf32> to vector<32x1xf32>
      %cst_195 = arith.constant 1.280000e+02 : f32
      %344 = vector.broadcast %cst_195 : f32 to vector<32x1xf32>
      %345 = arith.divf %343, %344 : vector<32x1xf32>
      %346 = vector.broadcast %345 : vector<32x1xf32> to vector<32x128xf32>
      %347 = arith.subf %341, %346 : vector<32x128xf32>
      %348 = arith.mulf %347, %347 : vector<32x128xf32>
      %cst_196 = arith.constant dense<0.000000e+00> : vector<32xf32>
      %349 = vector.multi_reduction <add>, %348, %cst_196 [1] : vector<32x128xf32> to vector<32xf32>
      %350 = vector.shape_cast %349 : vector<32xf32> to vector<32x1xf32>
      %cst_197 = arith.constant 1.280000e+02 : f32
      %351 = vector.broadcast %cst_197 : f32 to vector<32x1xf32>
      %352 = arith.divf %350, %351 : vector<32x1xf32>
      %cst_198 = arith.constant 9.99999974E-6 : f32
      %353 = vector.broadcast %cst_198 : f32 to vector<32x1xf32>
      %354 = arith.addf %352, %353 : vector<32x1xf32>
      %355 = math.rsqrt %354 : vector<32x1xf32>
      %356 = vector.broadcast %355 : vector<32x1xf32> to vector<32x128xf32>
      %357 = arith.mulf %347, %356 : vector<32x128xf32>
      %c0_199 = arith.constant 0 : index
      %c0_200 = arith.constant 0 : index
      %358 = vector.load %arg20[%c0_199, %c0_200] : memref<1x128xf32, #tpu.memory_space<vmem>>, vector<1x128xf32>
      %359 = vector.broadcast %358 : vector<1x128xf32> to vector<32x128xf32>
      %360 = arith.mulf %357, %359 : vector<32x128xf32>
      %c0_201 = arith.constant 0 : index
      %c0_202 = arith.constant 0 : index
      %361 = vector.load %arg21[%c0_201, %c0_202] : memref<1x128xf32, #tpu.memory_space<vmem>>, vector<1x128xf32>
      %362 = vector.broadcast %361 : vector<1x128xf32> to vector<32x128xf32>
      %363 = arith.addf %360, %362 : vector<32x128xf32>
      %c0_203 = arith.constant 0 : index
      %c0_204 = arith.constant 0 : index
      %c0_205 = arith.constant 0 : index
      %364 = vector.load %arg5[%c0_203, %c0_204, %c0_205] : memref<1x32x1xf32, #tpu.memory_space<vmem>>, vector<1x32x1xf32>
      %365 = vector.shape_cast %364 : vector<1x32x1xf32> to vector<32x1xf32>
      %366 = vector.broadcast %365 : vector<32x1xf32> to vector<32x128xf32>
      %367 = arith.mulf %363, %366 : vector<32x128xf32>
      %368 = arith.truncf %367 : vector<32x128xf32> to vector<32x128xbf16>
      %c0_206 = arith.constant 0 : index
      %c0_207 = arith.constant 0 : index
      %369 = vector.load %arg10[%c0_206, %c0_207] : memref<128x256xbf16, #tpu.memory_space<vmem>>, vector<128x256xbf16>
      %cst_208 = arith.constant dense<0.000000e+00> : vector<32x256xf32>
      %370 = tpu.matmul %368, %369, %cst_208 {dimension_numbers = #tpu.dot_dimension_numbers<[1], [0], [0], [1], [0, 0, 1, 1], [], []>} : vector<32x128xbf16>, vector<128x256xbf16>, vector<32x256xf32> -> vector<32x256xf32>
      %c0_209 = arith.constant 0 : index
      %c0_210 = arith.constant 0 : index
      %371 = vector.load %arg11[%c0_209, %c0_210] : memref<1x256xf32, #tpu.memory_space<vmem>>, vector<1x256xf32>
      %372 = vector.broadcast %371 : vector<1x256xf32> to vector<32x256xf32>
      %373 = arith.addf %370, %372 : vector<32x256xf32>
      %c0_211 = arith.constant 0 : index
      %c0_212 = arith.constant 0 : index
      %c0_213 = arith.constant 0 : index
      %374 = vector.load %arg3[%c0_211, %c0_212, %c0_213] : memref<1x48x128xbf16, #tpu.memory_space<vmem>>, vector<1x48x128xbf16>
      %375 = vector.shape_cast %374 : vector<1x48x128xbf16> to vector<48x128xbf16>
      %c0_214 = arith.constant 0 : index
      %c0_215 = arith.constant 0 : index
      %376 = vector.load %arg16[%c0_214, %c0_215] : memref<128x256xbf16, #tpu.memory_space<vmem>>, vector<128x256xbf16>
      %cst_216 = arith.constant dense<0.000000e+00> : vector<48x256xf32>
      %377 = tpu.matmul %375, %376, %cst_216 {dimension_numbers = #tpu.dot_dimension_numbers<[1], [0], [0], [1], [0, 0, 1, 1], [], []>} : vector<48x128xbf16>, vector<128x256xbf16>, vector<48x256xf32> -> vector<48x256xf32>
      %c0_217 = arith.constant 0 : index
      %c0_218 = arith.constant 0 : index
      %378 = vector.load %arg17[%c0_217, %c0_218] : memref<1x256xf32, #tpu.memory_space<vmem>>, vector<1x256xf32>
      %379 = vector.broadcast %378 : vector<1x256xf32> to vector<48x256xf32>
      %380 = arith.addf %377, %379 : vector<48x256xf32>
      %381 = vector.extract_strided_slice %373 {offsets = [0, 0], sizes = [32, 32], strides = [1, 1]} : vector<32x256xf32> to vector<32x32xf32>
      %382 = arith.truncf %381 : vector<32x32xf32> to vector<32x32xbf16>
      %c0_219 = arith.constant 0 : index
      %c0_220 = arith.constant 0 : index
      %c0_221 = arith.constant 0 : index
      %383 = vector.load %arg32[%c0_219, %c0_220, %c0_221] : memref<4x32x32xbf16, #tpu.memory_space<vmem>>, vector<1x32x32xbf16>
      %384 = vector.shape_cast %383 : vector<1x32x32xbf16> to vector<32x32xbf16>
      %385 = vector.shape_cast %382 : vector<32x32xbf16> to vector<1x32x32xbf16>
      tpu.vector_store %arg32[%c0_219, %c0_220, %c0_221], %385 {strides = array<i32>} : memref<4x32x32xbf16, #tpu.memory_space<vmem>>, vector<1x32x32xbf16>,
      %386 = vector.extract_strided_slice %373 {offsets = [0, 128], sizes = [32, 32], strides = [1, 1]} : vector<32x256xf32> to vector<32x32xf32>
      %387 = arith.truncf %386 : vector<32x32xf32> to vector<32x32xbf16>
      %c0_222 = arith.constant 0 : index
      %c0_223 = arith.constant 0 : index
      %c0_224 = arith.constant 0 : index
      %388 = vector.load %arg33[%c0_222, %c0_223, %c0_224] : memref<4x32x32xbf16, #tpu.memory_space<vmem>>, vector<1x32x32xbf16>
      %389 = vector.shape_cast %388 : vector<1x32x32xbf16> to vector<32x32xbf16>
      %390 = vector.shape_cast %387 : vector<32x32xbf16> to vector<1x32x32xbf16>
      tpu.vector_store %arg33[%c0_222, %c0_223, %c0_224], %390 {strides = array<i32>} : memref<4x32x32xbf16, #tpu.memory_space<vmem>>, vector<1x32x32xbf16>,
      %391 = vector.extract_strided_slice %380 {offsets = [0, 0], sizes = [48, 32], strides = [1, 1]} : vector<48x256xf32> to vector<48x32xf32>
      %392 = arith.truncf %391 : vector<48x32xf32> to vector<48x32xbf16>
      %c0_225 = arith.constant 0 : index
      %c0_226 = arith.constant 0 : index
      %c0_227 = arith.constant 0 : index
      %393 = vector.load %arg34[%c0_225, %c0_226, %c0_227] : memref<4x48x32xbf16, #tpu.memory_space<vmem>>, vector<1x48x32xbf16>
      %394 = vector.shape_cast %393 : vector<1x48x32xbf16> to vector<48x32xbf16>
      %395 = vector.shape_cast %392 : vector<48x32xbf16> to vector<1x48x32xbf16>
      tpu.vector_store %arg34[%c0_225, %c0_226, %c0_227], %395 {strides = array<i32>} : memref<4x48x32xbf16, #tpu.memory_space<vmem>>, vector<1x48x32xbf16>,
      %396 = vector.extract_strided_slice %380 {offsets = [0, 128], sizes = [48, 32], strides = [1, 1]} : vector<48x256xf32> to vector<48x32xf32>
      %397 = arith.truncf %396 : vector<48x32xf32> to vector<48x32xbf16>
      %c0_228 = arith.constant 0 : index
      %c0_229 = arith.constant 0 : index
      %c0_230 = arith.constant 0 : index
      %398 = vector.load %arg35[%c0_228, %c0_229, %c0_230] : memref<4x48x32xbf16, #tpu.memory_space<vmem>>, vector<1x48x32xbf16>
      %399 = vector.shape_cast %398 : vector<1x48x32xbf16> to vector<48x32xbf16>
      %400 = vector.shape_cast %397 : vector<48x32xbf16> to vector<1x48x32xbf16>
      tpu.vector_store %arg35[%c0_228, %c0_229, %c0_230], %400 {strides = array<i32>} : memref<4x48x32xbf16, #tpu.memory_space<vmem>>, vector<1x48x32xbf16>,
      %401 = vector.extract_strided_slice %373 {offsets = [0, 32], sizes = [32, 32], strides = [1, 1]} : vector<32x256xf32> to vector<32x32xf32>
      %402 = arith.truncf %401 : vector<32x32xf32> to vector<32x32xbf16>
      %c1_231 = arith.constant 1 : index
      %c0_232 = arith.constant 0 : index
      %c0_233 = arith.constant 0 : index
      %403 = vector.load %arg32[%c1_231, %c0_232, %c0_233] : memref<4x32x32xbf16, #tpu.memory_space<vmem>>, vector<1x32x32xbf16>
      %404 = vector.shape_cast %403 : vector<1x32x32xbf16> to vector<32x32xbf16>
      %405 = vector.shape_cast %402 : vector<32x32xbf16> to vector<1x32x32xbf16>
      tpu.vector_store %arg32[%c1_231, %c0_232, %c0_233], %405 {strides = array<i32>} : memref<4x32x32xbf16, #tpu.memory_space<vmem>>, vector<1x32x32xbf16>,
      %406 = vector.extract_strided_slice %373 {offsets = [0, 160], sizes = [32, 32], strides = [1, 1]} : vector<32x256xf32> to vector<32x32xf32>
      %407 = arith.truncf %406 : vector<32x32xf32> to vector<32x32xbf16>
      %c1_234 = arith.constant 1 : index
      %c0_235 = arith.constant 0 : index
      %c0_236 = arith.constant 0 : index
      %408 = vector.load %arg33[%c1_234, %c0_235, %c0_236] : memref<4x32x32xbf16, #tpu.memory_space<vmem>>, vector<1x32x32xbf16>
      %409 = vector.shape_cast %408 : vector<1x32x32xbf16> to vector<32x32xbf16>
      %410 = vector.shape_cast %407 : vector<32x32xbf16> to vector<1x32x32xbf16>
      tpu.vector_store %arg33[%c1_234, %c0_235, %c0_236], %410 {strides = array<i32>} : memref<4x32x32xbf16, #tpu.memory_space<vmem>>, vector<1x32x32xbf16>,
      %411 = vector.extract_strided_slice %380 {offsets = [0, 32], sizes = [48, 32], strides = [1, 1]} : vector<48x256xf32> to vector<48x32xf32>
      %412 = arith.truncf %411 : vector<48x32xf32> to vector<48x32xbf16>
      %c1_237 = arith.constant 1 : index
      %c0_238 = arith.constant 0 : index
      %c0_239 = arith.constant 0 : index
      %413 = vector.load %arg34[%c1_237, %c0_238, %c0_239] : memref<4x48x32xbf16, #tpu.memory_space<vmem>>, vector<1x48x32xbf16>
      %414 = vector.shape_cast %413 : vector<1x48x32xbf16> to vector<48x32xbf16>
      %415 = vector.shape_cast %412 : vector<48x32xbf16> to vector<1x48x32xbf16>
      tpu.vector_store %arg34[%c1_237, %c0_238, %c0_239], %415 {strides = array<i32>} : memref<4x48x32xbf16, #tpu.memory_space<vmem>>, vector<1x48x32xbf16>,
      %416 = vector.extract_strided_slice %380 {offsets = [0, 160], sizes = [48, 32], strides = [1, 1]} : vector<48x256xf32> to vector<48x32xf32>
      %417 = arith.truncf %416 : vector<48x32xf32> to vector<48x32xbf16>
      %c1_240 = arith.constant 1 : index
      %c0_241 = arith.constant 0 : index
      %c0_242 = arith.constant 0 : index
      %418 = vector.load %arg35[%c1_240, %c0_241, %c0_242] : memref<4x48x32xbf16, #tpu.memory_space<vmem>>, vector<1x48x32xbf16>
      %419 = vector.shape_cast %418 : vector<1x48x32xbf16> to vector<48x32xbf16>
      %420 = vector.shape_cast %417 : vector<48x32xbf16> to vector<1x48x32xbf16>
      tpu.vector_store %arg35[%c1_240, %c0_241, %c0_242], %420 {strides = array<i32>} : memref<4x48x32xbf16, #tpu.memory_space<vmem>>, vector<1x48x32xbf16>,
      %421 = vector.extract_strided_slice %373 {offsets = [0, 64], sizes = [32, 32], strides = [1, 1]} : vector<32x256xf32> to vector<32x32xf32>
      %422 = arith.truncf %421 : vector<32x32xf32> to vector<32x32xbf16>
      %c2_243 = arith.constant 2 : index
      %c0_244 = arith.constant 0 : index
      %c0_245 = arith.constant 0 : index
      %423 = vector.load %arg32[%c2_243, %c0_244, %c0_245] : memref<4x32x32xbf16, #tpu.memory_space<vmem>>, vector<1x32x32xbf16>
      %424 = vector.shape_cast %423 : vector<1x32x32xbf16> to vector<32x32xbf16>
      %425 = vector.shape_cast %422 : vector<32x32xbf16> to vector<1x32x32xbf16>
      tpu.vector_store %arg32[%c2_243, %c0_244, %c0_245], %425 {strides = array<i32>} : memref<4x32x32xbf16, #tpu.memory_space<vmem>>, vector<1x32x32xbf16>,
      %426 = vector.extract_strided_slice %373 {offsets = [0, 192], sizes = [32, 32], strides = [1, 1]} : vector<32x256xf32> to vector<32x32xf32>
      %427 = arith.truncf %426 : vector<32x32xf32> to vector<32x32xbf16>
      %c2_246 = arith.constant 2 : index
      %c0_247 = arith.constant 0 : index
      %c0_248 = arith.constant 0 : index
      %428 = vector.load %arg33[%c2_246, %c0_247, %c0_248] : memref<4x32x32xbf16, #tpu.memory_space<vmem>>, vector<1x32x32xbf16>
      %429 = vector.shape_cast %428 : vector<1x32x32xbf16> to vector<32x32xbf16>
      %430 = vector.shape_cast %427 : vector<32x32xbf16> to vector<1x32x32xbf16>
      tpu.vector_store %arg33[%c2_246, %c0_247, %c0_248], %430 {strides = array<i32>} : memref<4x32x32xbf16, #tpu.memory_space<vmem>>, vector<1x32x32xbf16>,
      %431 = vector.extract_strided_slice %380 {offsets = [0, 64], sizes = [48, 32], strides = [1, 1]} : vector<48x256xf32> to vector<48x32xf32>
      %432 = arith.truncf %431 : vector<48x32xf32> to vector<48x32xbf16>
      %c2_249 = arith.constant 2 : index
      %c0_250 = arith.constant 0 : index
      %c0_251 = arith.constant 0 : index
      %433 = vector.load %arg34[%c2_249, %c0_250, %c0_251] : memref<4x48x32xbf16, #tpu.memory_space<vmem>>, vector<1x48x32xbf16>
      %434 = vector.shape_cast %433 : vector<1x48x32xbf16> to vector<48x32xbf16>
      %435 = vector.shape_cast %432 : vector<48x32xbf16> to vector<1x48x32xbf16>
      tpu.vector_store %arg34[%c2_249, %c0_250, %c0_251], %435 {strides = array<i32>} : memref<4x48x32xbf16, #tpu.memory_space<vmem>>, vector<1x48x32xbf16>,
      %436 = vector.extract_strided_slice %380 {offsets = [0, 192], sizes = [48, 32], strides = [1, 1]} : vector<48x256xf32> to vector<48x32xf32>
      %437 = arith.truncf %436 : vector<48x32xf32> to vector<48x32xbf16>
      %c2_252 = arith.constant 2 : index
      %c0_253 = arith.constant 0 : index
      %c0_254 = arith.constant 0 : index
      %438 = vector.load %arg35[%c2_252, %c0_253, %c0_254] : memref<4x48x32xbf16, #tpu.memory_space<vmem>>, vector<1x48x32xbf16>
      %439 = vector.shape_cast %438 : vector<1x48x32xbf16> to vector<48x32xbf16>
      %440 = vector.shape_cast %437 : vector<48x32xbf16> to vector<1x48x32xbf16>
      tpu.vector_store %arg35[%c2_252, %c0_253, %c0_254], %440 {strides = array<i32>} : memref<4x48x32xbf16, #tpu.memory_space<vmem>>, vector<1x48x32xbf16>,
      %441 = vector.extract_strided_slice %373 {offsets = [0, 96], sizes = [32, 32], strides = [1, 1]} : vector<32x256xf32> to vector<32x32xf32>
      %442 = arith.truncf %441 : vector<32x32xf32> to vector<32x32xbf16>
      %c3_255 = arith.constant 3 : index
      %c0_256 = arith.constant 0 : index
      %c0_257 = arith.constant 0 : index
      %443 = vector.load %arg32[%c3_255, %c0_256, %c0_257] : memref<4x32x32xbf16, #tpu.memory_space<vmem>>, vector<1x32x32xbf16>
      %444 = vector.shape_cast %443 : vector<1x32x32xbf16> to vector<32x32xbf16>
      %445 = vector.shape_cast %442 : vector<32x32xbf16> to vector<1x32x32xbf16>
      tpu.vector_store %arg32[%c3_255, %c0_256, %c0_257], %445 {strides = array<i32>} : memref<4x32x32xbf16, #tpu.memory_space<vmem>>, vector<1x32x32xbf16>,
      %446 = vector.extract_strided_slice %373 {offsets = [0, 224], sizes = [32, 32], strides = [1, 1]} : vector<32x256xf32> to vector<32x32xf32>
      %447 = arith.truncf %446 : vector<32x32xf32> to vector<32x32xbf16>
      %c3_258 = arith.constant 3 : index
      %c0_259 = arith.constant 0 : index
      %c0_260 = arith.constant 0 : index
      %448 = vector.load %arg33[%c3_258, %c0_259, %c0_260] : memref<4x32x32xbf16, #tpu.memory_space<vmem>>, vector<1x32x32xbf16>
      %449 = vector.shape_cast %448 : vector<1x32x32xbf16> to vector<32x32xbf16>
      %450 = vector.shape_cast %447 : vector<32x32xbf16> to vector<1x32x32xbf16>
      tpu.vector_store %arg33[%c3_258, %c0_259, %c0_260], %450 {strides = array<i32>} : memref<4x32x32xbf16, #tpu.memory_space<vmem>>, vector<1x32x32xbf16>,
      %451 = vector.extract_strided_slice %380 {offsets = [0, 96], sizes = [48, 32], strides = [1, 1]} : vector<48x256xf32> to vector<48x32xf32>
      %452 = arith.truncf %451 : vector<48x32xf32> to vector<48x32xbf16>
      %c3_261 = arith.constant 3 : index
      %c0_262 = arith.constant 0 : index
      %c0_263 = arith.constant 0 : index
      %453 = vector.load %arg34[%c3_261, %c0_262, %c0_263] : memref<4x48x32xbf16, #tpu.memory_space<vmem>>, vector<1x48x32xbf16>
      %454 = vector.shape_cast %453 : vector<1x48x32xbf16> to vector<48x32xbf16>
      %455 = vector.shape_cast %452 : vector<48x32xbf16> to vector<1x48x32xbf16>
      tpu.vector_store %arg34[%c3_261, %c0_262, %c0_263], %455 {strides = array<i32>} : memref<4x48x32xbf16, #tpu.memory_space<vmem>>, vector<1x48x32xbf16>,
      %456 = vector.extract_strided_slice %380 {offsets = [0, 224], sizes = [48, 32], strides = [1, 1]} : vector<48x256xf32> to vector<48x32xf32>
      %457 = arith.truncf %456 : vector<48x32xf32> to vector<48x32xbf16>
      %c3_264 = arith.constant 3 : index
      %c0_265 = arith.constant 0 : index
      %c0_266 = arith.constant 0 : index
      %458 = vector.load %arg35[%c3_264, %c0_265, %c0_266] : memref<4x48x32xbf16, #tpu.memory_space<vmem>>, vector<1x48x32xbf16>
      %459 = vector.shape_cast %458 : vector<1x48x32xbf16> to vector<48x32xbf16>
      %460 = vector.shape_cast %457 : vector<48x32xbf16> to vector<1x48x32xbf16>
      tpu.vector_store %arg35[%c3_264, %c0_265, %c0_266], %460 {strides = array<i32>} : memref<4x48x32xbf16, #tpu.memory_space<vmem>>, vector<1x48x32xbf16>,
    } else {
    }
    %c16_i32 = arith.constant 16 : i32
    %3 = arith.muli %arg1, %c16_i32 : i32
    %4 = tpu.assume_multiple %3, 16 : i32
    %c0 = arith.constant 0 : index
    %5 = arith.index_cast %4 : i32 to index
    %c0_1 = arith.constant 0 : index
    %6 = vector.load %arg2[%c0, %5, %c0_1] : memref<1x32x128xf32, #tpu.memory_space<vmem>>, vector<1x16x128xf32>
    %7 = vector.shape_cast %6 : vector<1x16x128xf32> to vector<16x128xf32>
    %c0_2 = arith.constant 0 : index
    %c0_3 = arith.constant 0 : index
    %c0_4 = arith.constant 0 : index
    %8 = vector.load %arg4[%c0_2, %c0_3, %c0_4] : memref<1x16x128xf32, #tpu.memory_space<vmem>>, vector<1x16x128xf32>
    %9 = vector.shape_cast %8 : vector<1x16x128xf32> to vector<16x128xf32>
    %c0_5 = arith.constant 0 : index
    %10 = arith.index_cast %4 : i32 to index
    %c0_6 = arith.constant 0 : index
    %11 = vector.load %arg5[%c0_5, %10, %c0_6] : memref<1x32x1xf32, #tpu.memory_space<vmem>>, vector<1x16x1xf32>
    %12 = vector.shape_cast %11 : vector<1x16x1xf32> to vector<16x1xf32>
    %cst = arith.constant dense<0.000000e+00> : vector<16xf32>
    %13 = vector.multi_reduction <add>, %7, %cst [1] : vector<16x128xf32> to vector<16xf32>
    %14 = vector.shape_cast %13 : vector<16xf32> to vector<16x1xf32>
    %cst_7 = arith.constant 1.280000e+02 : f32
    %15 = vector.broadcast %cst_7 : f32 to vector<16x1xf32>
    %16 = arith.divf %14, %15 : vector<16x1xf32>
    %17 = vector.broadcast %16 : vector<16x1xf32> to vector<16x128xf32>
    %18 = arith.subf %7, %17 : vector<16x128xf32>
    %19 = arith.mulf %18, %18 : vector<16x128xf32>
    %cst_8 = arith.constant dense<0.000000e+00> : vector<16xf32>
    %20 = vector.multi_reduction <add>, %19, %cst_8 [1] : vector<16x128xf32> to vector<16xf32>
    %21 = vector.shape_cast %20 : vector<16xf32> to vector<16x1xf32>
    %cst_9 = arith.constant 1.280000e+02 : f32
    %22 = vector.broadcast %cst_9 : f32 to vector<16x1xf32>
    %23 = arith.divf %21, %22 : vector<16x1xf32>
    %cst_10 = arith.constant 9.99999974E-6 : f32
    %24 = vector.broadcast %cst_10 : f32 to vector<16x1xf32>
    %25 = arith.addf %23, %24 : vector<16x1xf32>
    %26 = math.rsqrt %25 : vector<16x1xf32>
    %27 = vector.broadcast %26 : vector<16x1xf32> to vector<16x128xf32>
    %28 = arith.mulf %18, %27 : vector<16x128xf32>
    %c0_11 = arith.constant 0 : index
    %c0_12 = arith.constant 0 : index
    %29 = vector.load %arg20[%c0_11, %c0_12] : memref<1x128xf32, #tpu.memory_space<vmem>>, vector<1x128xf32>
    %30 = vector.broadcast %29 : vector<1x128xf32> to vector<16x128xf32>
    %31 = arith.mulf %28, %30 : vector<16x128xf32>
    %c0_13 = arith.constant 0 : index
    %c0_14 = arith.constant 0 : index
    %32 = vector.load %arg21[%c0_13, %c0_14] : memref<1x128xf32, #tpu.memory_space<vmem>>, vector<1x128xf32>
    %33 = vector.broadcast %32 : vector<1x128xf32> to vector<16x128xf32>
    %34 = arith.addf %31, %33 : vector<16x128xf32>
    %35 = vector.broadcast %12 : vector<16x1xf32> to vector<16x128xf32>
    %36 = arith.mulf %34, %35 : vector<16x128xf32>
    %37 = arith.addf %36, %9 : vector<16x128xf32>
    %38 = arith.truncf %37 : vector<16x128xf32> to vector<16x128xbf16>
    %c0_15 = arith.constant 0 : index
    %c0_16 = arith.constant 0 : index
    %39 = vector.load %arg8[%c0_15, %c0_16] : memref<128x128xbf16, #tpu.memory_space<vmem>>, vector<128x128xbf16>
    %cst_17 = arith.constant dense<0.000000e+00> : vector<16x128xf32>
    %40 = tpu.matmul %38, %39, %cst_17 {dimension_numbers = #tpu.dot_dimension_numbers<[1], [0], [0], [1], [0, 0, 1, 1], [], []>} : vector<16x128xbf16>, vector<128x128xbf16>, vector<16x128xf32> -> vector<16x128xf32>
    %c0_18 = arith.constant 0 : index
    %c0_19 = arith.constant 0 : index
    %41 = vector.load %arg9[%c0_18, %c0_19] : memref<1x128xf32, #tpu.memory_space<vmem>>, vector<1x128xf32>
    %42 = vector.broadcast %41 : vector<1x128xf32> to vector<16x128xf32>
    %43 = arith.addf %40, %42 : vector<16x128xf32>
    %cst_20 = arith.constant 0.176776692 : f32
    %44 = vector.broadcast %cst_20 : f32 to vector<16x128xf32>
    %45 = arith.mulf %43, %44 : vector<16x128xf32>
    %46 = arith.truncf %45 : vector<16x128xf32> to vector<16x128xbf16>
    %c0_21 = arith.constant 0 : index
    %c0_22 = arith.constant 0 : index
    %c0_23 = arith.constant 0 : index
    %47 = vector.load %arg6[%c0_21, %c0_22, %c0_23] : memref<1x1x32xf32, #tpu.memory_space<vmem>>, vector<1x1x32xf32>
    %48 = vector.shape_cast %47 : vector<1x1x32xf32> to vector<1x32xf32>
    %49 = vector.extract_strided_slice %46 {offsets = [0, 0], sizes = [16, 32], strides = [1, 1]} : vector<16x128xbf16> to vector<16x32xbf16>
    %c0_24 = arith.constant 0 : index
    %c0_25 = arith.constant 0 : index
    %c0_26 = arith.constant 0 : index
    %50 = vector.load %arg32[%c0_24, %c0_25, %c0_26] : memref<4x32x32xbf16, #tpu.memory_space<vmem>>, vector<1x32x32xbf16>
    %51 = vector.shape_cast %50 : vector<1x32x32xbf16> to vector<32x32xbf16>
    %cst_27 = arith.constant dense<0.000000e+00> : vector<16x32xf32>
    %52 = tpu.matmul %49, %51, %cst_27 {dimension_numbers = #tpu.dot_dimension_numbers<[1], [1], [0], [0], [0, 0, 1, 0], [], []>} : vector<16x32xbf16>, vector<32x32xbf16>, vector<16x32xf32> -> vector<16x32xf32>
    %53 = vector.broadcast %48 : vector<1x32xf32> to vector<16x32xf32>
    %54 = arith.addf %52, %53 : vector<16x32xf32>
    %cst_28 = arith.constant dense<0xFF800000> : vector<16xf32>
    %55 = vector.multi_reduction <maximumf>, %54, %cst_28 [1] : vector<16x32xf32> to vector<16xf32>
    %56 = vector.shape_cast %55 : vector<16xf32> to vector<16x1xf32>
    %57 = vector.broadcast %56 : vector<16x1xf32> to vector<16x32xf32>
    %58 = arith.subf %54, %57 : vector<16x32xf32>
    %59 = math.exp %58 : vector<16x32xf32>
    %cst_29 = arith.constant dense<0.000000e+00> : vector<16xf32>
    %60 = vector.multi_reduction <add>, %59, %cst_29 [1] : vector<16x32xf32> to vector<16xf32>
    %61 = vector.shape_cast %60 : vector<16xf32> to vector<16x1xf32>
    %62 = tpu.reciprocal %61 {approx = true} : vector<16x1xf32> -> vector<16x1xf32>
    %63 = vector.broadcast %62 : vector<16x1xf32> to vector<16x32xf32>
    %64 = arith.mulf %59, %63 : vector<16x32xf32>
    %65 = arith.truncf %64 : vector<16x32xf32> to vector<16x32xbf16>
    %c0_30 = arith.constant 0 : index
    %c0_31 = arith.constant 0 : index
    %c0_32 = arith.constant 0 : index
    %66 = vector.load %arg33[%c0_30, %c0_31, %c0_32] : memref<4x32x32xbf16, #tpu.memory_space<vmem>>, vector<1x32x32xbf16>
    %67 = vector.shape_cast %66 : vector<1x32x32xbf16> to vector<32x32xbf16>
    %cst_33 = arith.constant dense<0.000000e+00> : vector<16x32xf32>
    %68 = tpu.matmul %65, %67, %cst_33 {dimension_numbers = #tpu.dot_dimension_numbers<[1], [0], [0], [1], [0, 0, 1, 1], [], []>} : vector<16x32xbf16>, vector<32x32xbf16>, vector<16x32xf32> -> vector<16x32xf32>
    %69 = arith.truncf %68 : vector<16x32xf32> to vector<16x32xbf16>
    %c0_34 = arith.constant 0 : index
    %c0_35 = arith.constant 0 : index
    %70 = vector.load %arg36[%c0_34, %c0_35] : memref<16x128xbf16, #tpu.memory_space<vmem>>, vector<16x32xbf16>
    tpu.vector_store %arg36[%c0_34, %c0_35], %69 {strides = array<i32>} : memref<16x128xbf16, #tpu.memory_space<vmem>>, vector<16x32xbf16>,
    %71 = vector.extract_strided_slice %46 {offsets = [0, 32], sizes = [16, 32], strides = [1, 1]} : vector<16x128xbf16> to vector<16x32xbf16>
    %c1 = arith.constant 1 : index
    %c0_36 = arith.constant 0 : index
    %c0_37 = arith.constant 0 : index
    %72 = vector.load %arg32[%c1, %c0_36, %c0_37] : memref<4x32x32xbf16, #tpu.memory_space<vmem>>, vector<1x32x32xbf16>
    %73 = vector.shape_cast %72 : vector<1x32x32xbf16> to vector<32x32xbf16>
    %cst_38 = arith.constant dense<0.000000e+00> : vector<16x32xf32>
    %74 = tpu.matmul %71, %73, %cst_38 {dimension_numbers = #tpu.dot_dimension_numbers<[1], [1], [0], [0], [0, 0, 1, 0], [], []>} : vector<16x32xbf16>, vector<32x32xbf16>, vector<16x32xf32> -> vector<16x32xf32>
    %75 = vector.broadcast %48 : vector<1x32xf32> to vector<16x32xf32>
    %76 = arith.addf %74, %75 : vector<16x32xf32>
    %cst_39 = arith.constant dense<0xFF800000> : vector<16xf32>
    %77 = vector.multi_reduction <maximumf>, %76, %cst_39 [1] : vector<16x32xf32> to vector<16xf32>
    %78 = vector.shape_cast %77 : vector<16xf32> to vector<16x1xf32>
    %79 = vector.broadcast %78 : vector<16x1xf32> to vector<16x32xf32>
    %80 = arith.subf %76, %79 : vector<16x32xf32>
    %81 = math.exp %80 : vector<16x32xf32>
    %cst_40 = arith.constant dense<0.000000e+00> : vector<16xf32>
    %82 = vector.multi_reduction <add>, %81, %cst_40 [1] : vector<16x32xf32> to vector<16xf32>
    %83 = vector.shape_cast %82 : vector<16xf32> to vector<16x1xf32>
    %84 = tpu.reciprocal %83 {approx = true} : vector<16x1xf32> -> vector<16x1xf32>
    %85 = vector.broadcast %84 : vector<16x1xf32> to vector<16x32xf32>
    %86 = arith.mulf %81, %85 : vector<16x32xf32>
    %87 = arith.truncf %86 : vector<16x32xf32> to vector<16x32xbf16>
    %c1_41 = arith.constant 1 : index
    %c0_42 = arith.constant 0 : index
    %c0_43 = arith.constant 0 : index
    %88 = vector.load %arg33[%c1_41, %c0_42, %c0_43] : memref<4x32x32xbf16, #tpu.memory_space<vmem>>, vector<1x32x32xbf16>
    %89 = vector.shape_cast %88 : vector<1x32x32xbf16> to vector<32x32xbf16>
    %cst_44 = arith.constant dense<0.000000e+00> : vector<16x32xf32>
    %90 = tpu.matmul %87, %89, %cst_44 {dimension_numbers = #tpu.dot_dimension_numbers<[1], [0], [0], [1], [0, 0, 1, 1], [], []>} : vector<16x32xbf16>, vector<32x32xbf16>, vector<16x32xf32> -> vector<16x32xf32>
    %91 = arith.truncf %90 : vector<16x32xf32> to vector<16x32xbf16>
    %c0_45 = arith.constant 0 : index
    %c32 = arith.constant 32 : index
    %92 = vector.load %arg36[%c0_45, %c32] : memref<16x128xbf16, #tpu.memory_space<vmem>>, vector<16x32xbf16>
    tpu.vector_store %arg36[%c0_45, %c32], %91 {strides = array<i32>} : memref<16x128xbf16, #tpu.memory_space<vmem>>, vector<16x32xbf16>,
    %93 = vector.extract_strided_slice %46 {offsets = [0, 64], sizes = [16, 32], strides = [1, 1]} : vector<16x128xbf16> to vector<16x32xbf16>
    %c2 = arith.constant 2 : index
    %c0_46 = arith.constant 0 : index
    %c0_47 = arith.constant 0 : index
    %94 = vector.load %arg32[%c2, %c0_46, %c0_47] : memref<4x32x32xbf16, #tpu.memory_space<vmem>>, vector<1x32x32xbf16>
    %95 = vector.shape_cast %94 : vector<1x32x32xbf16> to vector<32x32xbf16>
    %cst_48 = arith.constant dense<0.000000e+00> : vector<16x32xf32>
    %96 = tpu.matmul %93, %95, %cst_48 {dimension_numbers = #tpu.dot_dimension_numbers<[1], [1], [0], [0], [0, 0, 1, 0], [], []>} : vector<16x32xbf16>, vector<32x32xbf16>, vector<16x32xf32> -> vector<16x32xf32>
    %97 = vector.broadcast %48 : vector<1x32xf32> to vector<16x32xf32>
    %98 = arith.addf %96, %97 : vector<16x32xf32>
    %cst_49 = arith.constant dense<0xFF800000> : vector<16xf32>
    %99 = vector.multi_reduction <maximumf>, %98, %cst_49 [1] : vector<16x32xf32> to vector<16xf32>
    %100 = vector.shape_cast %99 : vector<16xf32> to vector<16x1xf32>
    %101 = vector.broadcast %100 : vector<16x1xf32> to vector<16x32xf32>
    %102 = arith.subf %98, %101 : vector<16x32xf32>
    %103 = math.exp %102 : vector<16x32xf32>
    %cst_50 = arith.constant dense<0.000000e+00> : vector<16xf32>
    %104 = vector.multi_reduction <add>, %103, %cst_50 [1] : vector<16x32xf32> to vector<16xf32>
    %105 = vector.shape_cast %104 : vector<16xf32> to vector<16x1xf32>
    %106 = tpu.reciprocal %105 {approx = true} : vector<16x1xf32> -> vector<16x1xf32>
    %107 = vector.broadcast %106 : vector<16x1xf32> to vector<16x32xf32>
    %108 = arith.mulf %103, %107 : vector<16x32xf32>
    %109 = arith.truncf %108 : vector<16x32xf32> to vector<16x32xbf16>
    %c2_51 = arith.constant 2 : index
    %c0_52 = arith.constant 0 : index
    %c0_53 = arith.constant 0 : index
    %110 = vector.load %arg33[%c2_51, %c0_52, %c0_53] : memref<4x32x32xbf16, #tpu.memory_space<vmem>>, vector<1x32x32xbf16>
    %111 = vector.shape_cast %110 : vector<1x32x32xbf16> to vector<32x32xbf16>
    %cst_54 = arith.constant dense<0.000000e+00> : vector<16x32xf32>
    %112 = tpu.matmul %109, %111, %cst_54 {dimension_numbers = #tpu.dot_dimension_numbers<[1], [0], [0], [1], [0, 0, 1, 1], [], []>} : vector<16x32xbf16>, vector<32x32xbf16>, vector<16x32xf32> -> vector<16x32xf32>
    %113 = arith.truncf %112 : vector<16x32xf32> to vector<16x32xbf16>
    %c0_55 = arith.constant 0 : index
    %c64 = arith.constant 64 : index
    %114 = vector.load %arg36[%c0_55, %c64] : memref<16x128xbf16, #tpu.memory_space<vmem>>, vector<16x32xbf16>
    tpu.vector_store %arg36[%c0_55, %c64], %113 {strides = array<i32>} : memref<16x128xbf16, #tpu.memory_space<vmem>>, vector<16x32xbf16>,
    %115 = vector.extract_strided_slice %46 {offsets = [0, 96], sizes = [16, 32], strides = [1, 1]} : vector<16x128xbf16> to vector<16x32xbf16>
    %c3 = arith.constant 3 : index
    %c0_56 = arith.constant 0 : index
    %c0_57 = arith.constant 0 : index
    %116 = vector.load %arg32[%c3, %c0_56, %c0_57] : memref<4x32x32xbf16, #tpu.memory_space<vmem>>, vector<1x32x32xbf16>
    %117 = vector.shape_cast %116 : vector<1x32x32xbf16> to vector<32x32xbf16>
    %cst_58 = arith.constant dense<0.000000e+00> : vector<16x32xf32>
    %118 = tpu.matmul %115, %117, %cst_58 {dimension_numbers = #tpu.dot_dimension_numbers<[1], [1], [0], [0], [0, 0, 1, 0], [], []>} : vector<16x32xbf16>, vector<32x32xbf16>, vector<16x32xf32> -> vector<16x32xf32>
    %119 = vector.broadcast %48 : vector<1x32xf32> to vector<16x32xf32>
    %120 = arith.addf %118, %119 : vector<16x32xf32>
    %cst_59 = arith.constant dense<0xFF800000> : vector<16xf32>
    %121 = vector.multi_reduction <maximumf>, %120, %cst_59 [1] : vector<16x32xf32> to vector<16xf32>
    %122 = vector.shape_cast %121 : vector<16xf32> to vector<16x1xf32>
    %123 = vector.broadcast %122 : vector<16x1xf32> to vector<16x32xf32>
    %124 = arith.subf %120, %123 : vector<16x32xf32>
    %125 = math.exp %124 : vector<16x32xf32>
    %cst_60 = arith.constant dense<0.000000e+00> : vector<16xf32>
    %126 = vector.multi_reduction <add>, %125, %cst_60 [1] : vector<16x32xf32> to vector<16xf32>
    %127 = vector.shape_cast %126 : vector<16xf32> to vector<16x1xf32>
    %128 = tpu.reciprocal %127 {approx = true} : vector<16x1xf32> -> vector<16x1xf32>
    %129 = vector.broadcast %128 : vector<16x1xf32> to vector<16x32xf32>
    %130 = arith.mulf %125, %129 : vector<16x32xf32>
    %131 = arith.truncf %130 : vector<16x32xf32> to vector<16x32xbf16>
    %c3_61 = arith.constant 3 : index
    %c0_62 = arith.constant 0 : index
    %c0_63 = arith.constant 0 : index
    %132 = vector.load %arg33[%c3_61, %c0_62, %c0_63] : memref<4x32x32xbf16, #tpu.memory_space<vmem>>, vector<1x32x32xbf16>
    %133 = vector.shape_cast %132 : vector<1x32x32xbf16> to vector<32x32xbf16>
    %cst_64 = arith.constant dense<0.000000e+00> : vector<16x32xf32>
    %134 = tpu.matmul %131, %133, %cst_64 {dimension_numbers = #tpu.dot_dimension_numbers<[1], [0], [0], [1], [0, 0, 1, 1], [], []>} : vector<16x32xbf16>, vector<32x32xbf16>, vector<16x32xf32> -> vector<16x32xf32>
    %135 = arith.truncf %134 : vector<16x32xf32> to vector<16x32xbf16>
    %c0_65 = arith.constant 0 : index
    %c96 = arith.constant 96 : index
    %136 = vector.load %arg36[%c0_65, %c96] : memref<16x128xbf16, #tpu.memory_space<vmem>>, vector<16x32xbf16>
    tpu.vector_store %arg36[%c0_65, %c96], %135 {strides = array<i32>} : memref<16x128xbf16, #tpu.memory_space<vmem>>, vector<16x32xbf16>,
    %c0_66 = arith.constant 0 : index
    %c0_67 = arith.constant 0 : index
    %137 = vector.load %arg36[%c0_66, %c0_67] : memref<16x128xbf16, #tpu.memory_space<vmem>>, vector<16x128xbf16>
    %c0_68 = arith.constant 0 : index
    %c0_69 = arith.constant 0 : index
    %138 = vector.load %arg12[%c0_68, %c0_69] : memref<128x128xbf16, #tpu.memory_space<vmem>>, vector<128x128xbf16>
    %cst_70 = arith.constant dense<0.000000e+00> : vector<16x128xf32>
    %139 = tpu.matmul %137, %138, %cst_70 {dimension_numbers = #tpu.dot_dimension_numbers<[1], [0], [0], [1], [0, 0, 1, 1], [], []>} : vector<16x128xbf16>, vector<128x128xbf16>, vector<16x128xf32> -> vector<16x128xf32>
    %c0_71 = arith.constant 0 : index
    %c0_72 = arith.constant 0 : index
    %140 = vector.load %arg13[%c0_71, %c0_72] : memref<1x128xf32, #tpu.memory_space<vmem>>, vector<1x128xf32>
    %141 = vector.broadcast %140 : vector<1x128xf32> to vector<16x128xf32>
    %142 = arith.addf %139, %141 : vector<16x128xf32>
    %143 = arith.addf %7, %142 : vector<16x128xf32>
    %cst_73 = arith.constant dense<0.000000e+00> : vector<16xf32>
    %144 = vector.multi_reduction <add>, %143, %cst_73 [1] : vector<16x128xf32> to vector<16xf32>
    %145 = vector.shape_cast %144 : vector<16xf32> to vector<16x1xf32>
    %cst_74 = arith.constant 1.280000e+02 : f32
    %146 = vector.broadcast %cst_74 : f32 to vector<16x1xf32>
    %147 = arith.divf %145, %146 : vector<16x1xf32>
    %148 = vector.broadcast %147 : vector<16x1xf32> to vector<16x128xf32>
    %149 = arith.subf %143, %148 : vector<16x128xf32>
    %150 = arith.mulf %149, %149 : vector<16x128xf32>
    %cst_75 = arith.constant dense<0.000000e+00> : vector<16xf32>
    %151 = vector.multi_reduction <add>, %150, %cst_75 [1] : vector<16x128xf32> to vector<16xf32>
    %152 = vector.shape_cast %151 : vector<16xf32> to vector<16x1xf32>
    %cst_76 = arith.constant 1.280000e+02 : f32
    %153 = vector.broadcast %cst_76 : f32 to vector<16x1xf32>
    %154 = arith.divf %152, %153 : vector<16x1xf32>
    %cst_77 = arith.constant 9.99999974E-6 : f32
    %155 = vector.broadcast %cst_77 : f32 to vector<16x1xf32>
    %156 = arith.addf %154, %155 : vector<16x1xf32>
    %157 = math.rsqrt %156 : vector<16x1xf32>
    %158 = vector.broadcast %157 : vector<16x1xf32> to vector<16x128xf32>
    %159 = arith.mulf %149, %158 : vector<16x128xf32>
    %c0_78 = arith.constant 0 : index
    %c0_79 = arith.constant 0 : index
    %160 = vector.load %arg22[%c0_78, %c0_79] : memref<1x128xf32, #tpu.memory_space<vmem>>, vector<1x128xf32>
    %161 = vector.broadcast %160 : vector<1x128xf32> to vector<16x128xf32>
    %162 = arith.mulf %159, %161 : vector<16x128xf32>
    %c0_80 = arith.constant 0 : index
    %c0_81 = arith.constant 0 : index
    %163 = vector.load %arg23[%c0_80, %c0_81] : memref<1x128xf32, #tpu.memory_space<vmem>>, vector<1x128xf32>
    %164 = vector.broadcast %163 : vector<1x128xf32> to vector<16x128xf32>
    %165 = arith.addf %162, %164 : vector<16x128xf32>
    %166 = arith.addf %165, %9 : vector<16x128xf32>
    %167 = arith.truncf %166 : vector<16x128xf32> to vector<16x128xbf16>
    %c0_82 = arith.constant 0 : index
    %c0_83 = arith.constant 0 : index
    %168 = vector.load %arg14[%c0_82, %c0_83] : memref<128x128xbf16, #tpu.memory_space<vmem>>, vector<128x128xbf16>
    %cst_84 = arith.constant dense<0.000000e+00> : vector<16x128xf32>
    %169 = tpu.matmul %167, %168, %cst_84 {dimension_numbers = #tpu.dot_dimension_numbers<[1], [0], [0], [1], [0, 0, 1, 1], [], []>} : vector<16x128xbf16>, vector<128x128xbf16>, vector<16x128xf32> -> vector<16x128xf32>
    %c0_85 = arith.constant 0 : index
    %c0_86 = arith.constant 0 : index
    %170 = vector.load %arg15[%c0_85, %c0_86] : memref<1x128xf32, #tpu.memory_space<vmem>>, vector<1x128xf32>
    %171 = vector.broadcast %170 : vector<1x128xf32> to vector<16x128xf32>
    %172 = arith.addf %169, %171 : vector<16x128xf32>
    %cst_87 = arith.constant 0.176776692 : f32
    %173 = vector.broadcast %cst_87 : f32 to vector<16x128xf32>
    %174 = arith.mulf %172, %173 : vector<16x128xf32>
    %175 = arith.truncf %174 : vector<16x128xf32> to vector<16x128xbf16>
    %c0_88 = arith.constant 0 : index
    %c0_89 = arith.constant 0 : index
    %c0_90 = arith.constant 0 : index
    %176 = vector.load %arg7[%c0_88, %c0_89, %c0_90] : memref<1x1x48xf32, #tpu.memory_space<vmem>>, vector<1x1x48xf32>
    %177 = vector.shape_cast %176 : vector<1x1x48xf32> to vector<1x48xf32>
    %178 = vector.extract_strided_slice %175 {offsets = [0, 0], sizes = [16, 32], strides = [1, 1]} : vector<16x128xbf16> to vector<16x32xbf16>
    %c0_91 = arith.constant 0 : index
    %c0_92 = arith.constant 0 : index
    %c0_93 = arith.constant 0 : index
    %179 = vector.load %arg34[%c0_91, %c0_92, %c0_93] : memref<4x48x32xbf16, #tpu.memory_space<vmem>>, vector<1x48x32xbf16>
    %180 = vector.shape_cast %179 : vector<1x48x32xbf16> to vector<48x32xbf16>
    %cst_94 = arith.constant dense<0.000000e+00> : vector<16x48xf32>
    %181 = tpu.matmul %178, %180, %cst_94 {dimension_numbers = #tpu.dot_dimension_numbers<[1], [1], [0], [0], [0, 0, 1, 0], [], []>} : vector<16x32xbf16>, vector<48x32xbf16>, vector<16x48xf32> -> vector<16x48xf32>
    %182 = vector.broadcast %177 : vector<1x48xf32> to vector<16x48xf32>
    %183 = arith.addf %181, %182 : vector<16x48xf32>
    %cst_95 = arith.constant dense<0xFF800000> : vector<16xf32>
    %184 = vector.multi_reduction <maximumf>, %183, %cst_95 [1] : vector<16x48xf32> to vector<16xf32>
    %185 = vector.shape_cast %184 : vector<16xf32> to vector<16x1xf32>
    %186 = vector.broadcast %185 : vector<16x1xf32> to vector<16x48xf32>
    %187 = arith.subf %183, %186 : vector<16x48xf32>
    %188 = math.exp %187 : vector<16x48xf32>
    %cst_96 = arith.constant dense<0.000000e+00> : vector<16xf32>
    %189 = vector.multi_reduction <add>, %188, %cst_96 [1] : vector<16x48xf32> to vector<16xf32>
    %190 = vector.shape_cast %189 : vector<16xf32> to vector<16x1xf32>
    %191 = tpu.reciprocal %190 {approx = true} : vector<16x1xf32> -> vector<16x1xf32>
    %192 = vector.broadcast %191 : vector<16x1xf32> to vector<16x48xf32>
    %193 = arith.mulf %188, %192 : vector<16x48xf32>
    %c0_97 = arith.constant 0 : index
    %c0_98 = arith.constant 0 : index
    %194 = vector.load %arg37[%c0_97, %c0_98] : memref<16x48xf32, #tpu.memory_space<vmem>>, vector<16x48xf32>
    tpu.vector_store %arg37[%c0_97, %c0_98], %193 {strides = array<i32>} : memref<16x48xf32, #tpu.memory_space<vmem>>, vector<16x48xf32>,
    %195 = arith.truncf %193 : vector<16x48xf32> to vector<16x48xbf16>
    %c0_99 = arith.constant 0 : index
    %c0_100 = arith.constant 0 : index
    %c0_101 = arith.constant 0 : index
    %196 = vector.load %arg35[%c0_99, %c0_100, %c0_101] : memref<4x48x32xbf16, #tpu.memory_space<vmem>>, vector<1x48x32xbf16>
    %197 = vector.shape_cast %196 : vector<1x48x32xbf16> to vector<48x32xbf16>
    %cst_102 = arith.constant dense<0.000000e+00> : vector<16x32xf32>
    %198 = tpu.matmul %195, %197, %cst_102 {dimension_numbers = #tpu.dot_dimension_numbers<[1], [0], [0], [1], [0, 0, 1, 1], [], []>} : vector<16x48xbf16>, vector<48x32xbf16>, vector<16x32xf32> -> vector<16x32xf32>
    %199 = arith.truncf %198 : vector<16x32xf32> to vector<16x32xbf16>
    %c0_103 = arith.constant 0 : index
    %c0_104 = arith.constant 0 : index
    %200 = vector.load %arg36[%c0_103, %c0_104] : memref<16x128xbf16, #tpu.memory_space<vmem>>, vector<16x32xbf16>
    tpu.vector_store %arg36[%c0_103, %c0_104], %199 {strides = array<i32>} : memref<16x128xbf16, #tpu.memory_space<vmem>>, vector<16x32xbf16>,
    %201 = vector.extract_strided_slice %175 {offsets = [0, 32], sizes = [16, 32], strides = [1, 1]} : vector<16x128xbf16> to vector<16x32xbf16>
    %c1_105 = arith.constant 1 : index
    %c0_106 = arith.constant 0 : index
    %c0_107 = arith.constant 0 : index
    %202 = vector.load %arg34[%c1_105, %c0_106, %c0_107] : memref<4x48x32xbf16, #tpu.memory_space<vmem>>, vector<1x48x32xbf16>
    %203 = vector.shape_cast %202 : vector<1x48x32xbf16> to vector<48x32xbf16>
    %cst_108 = arith.constant dense<0.000000e+00> : vector<16x48xf32>
    %204 = tpu.matmul %201, %203, %cst_108 {dimension_numbers = #tpu.dot_dimension_numbers<[1], [1], [0], [0], [0, 0, 1, 0], [], []>} : vector<16x32xbf16>, vector<48x32xbf16>, vector<16x48xf32> -> vector<16x48xf32>
    %205 = vector.broadcast %177 : vector<1x48xf32> to vector<16x48xf32>
    %206 = arith.addf %204, %205 : vector<16x48xf32>
    %cst_109 = arith.constant dense<0xFF800000> : vector<16xf32>
    %207 = vector.multi_reduction <maximumf>, %206, %cst_109 [1] : vector<16x48xf32> to vector<16xf32>
    %208 = vector.shape_cast %207 : vector<16xf32> to vector<16x1xf32>
    %209 = vector.broadcast %208 : vector<16x1xf32> to vector<16x48xf32>
    %210 = arith.subf %206, %209 : vector<16x48xf32>
    %211 = math.exp %210 : vector<16x48xf32>
    %cst_110 = arith.constant dense<0.000000e+00> : vector<16xf32>
    %212 = vector.multi_reduction <add>, %211, %cst_110 [1] : vector<16x48xf32> to vector<16xf32>
    %213 = vector.shape_cast %212 : vector<16xf32> to vector<16x1xf32>
    %214 = tpu.reciprocal %213 {approx = true} : vector<16x1xf32> -> vector<16x1xf32>
    %215 = vector.broadcast %214 : vector<16x1xf32> to vector<16x48xf32>
    %216 = arith.mulf %211, %215 : vector<16x48xf32>
    %c0_111 = arith.constant 0 : index
    %c0_112 = arith.constant 0 : index
    %217 = vector.load %arg37[%c0_111, %c0_112] : memref<16x48xf32, #tpu.memory_space<vmem>>, vector<16x48xf32>
    %218 = arith.addf %217, %216 : vector<16x48xf32>
    %c0_113 = arith.constant 0 : index
    %c0_114 = arith.constant 0 : index
    %219 = vector.load %arg37[%c0_113, %c0_114] : memref<16x48xf32, #tpu.memory_space<vmem>>, vector<16x48xf32>
    tpu.vector_store %arg37[%c0_113, %c0_114], %218 {strides = array<i32>} : memref<16x48xf32, #tpu.memory_space<vmem>>, vector<16x48xf32>,
    %220 = arith.truncf %216 : vector<16x48xf32> to vector<16x48xbf16>
    %c1_115 = arith.constant 1 : index
    %c0_116 = arith.constant 0 : index
    %c0_117 = arith.constant 0 : index
    %221 = vector.load %arg35[%c1_115, %c0_116, %c0_117] : memref<4x48x32xbf16, #tpu.memory_space<vmem>>, vector<1x48x32xbf16>
    %222 = vector.shape_cast %221 : vector<1x48x32xbf16> to vector<48x32xbf16>
    %cst_118 = arith.constant dense<0.000000e+00> : vector<16x32xf32>
    %223 = tpu.matmul %220, %222, %cst_118 {dimension_numbers = #tpu.dot_dimension_numbers<[1], [0], [0], [1], [0, 0, 1, 1], [], []>} : vector<16x48xbf16>, vector<48x32xbf16>, vector<16x32xf32> -> vector<16x32xf32>
    %224 = arith.truncf %223 : vector<16x32xf32> to vector<16x32xbf16>
    %c0_119 = arith.constant 0 : index
    %c32_120 = arith.constant 32 : index
    %225 = vector.load %arg36[%c0_119, %c32_120] : memref<16x128xbf16, #tpu.memory_space<vmem>>, vector<16x32xbf16>
    tpu.vector_store %arg36[%c0_119, %c32_120], %224 {strides = array<i32>} : memref<16x128xbf16, #tpu.memory_space<vmem>>, vector<16x32xbf16>,
    %226 = vector.extract_strided_slice %175 {offsets = [0, 64], sizes = [16, 32], strides = [1, 1]} : vector<16x128xbf16> to vector<16x32xbf16>
    %c2_121 = arith.constant 2 : index
    %c0_122 = arith.constant 0 : index
    %c0_123 = arith.constant 0 : index
    %227 = vector.load %arg34[%c2_121, %c0_122, %c0_123] : memref<4x48x32xbf16, #tpu.memory_space<vmem>>, vector<1x48x32xbf16>
    %228 = vector.shape_cast %227 : vector<1x48x32xbf16> to vector<48x32xbf16>
    %cst_124 = arith.constant dense<0.000000e+00> : vector<16x48xf32>
    %229 = tpu.matmul %226, %228, %cst_124 {dimension_numbers = #tpu.dot_dimension_numbers<[1], [1], [0], [0], [0, 0, 1, 0], [], []>} : vector<16x32xbf16>, vector<48x32xbf16>, vector<16x48xf32> -> vector<16x48xf32>
    %230 = vector.broadcast %177 : vector<1x48xf32> to vector<16x48xf32>
    %231 = arith.addf %229, %230 : vector<16x48xf32>
    %cst_125 = arith.constant dense<0xFF800000> : vector<16xf32>
    %232 = vector.multi_reduction <maximumf>, %231, %cst_125 [1] : vector<16x48xf32> to vector<16xf32>
    %233 = vector.shape_cast %232 : vector<16xf32> to vector<16x1xf32>
    %234 = vector.broadcast %233 : vector<16x1xf32> to vector<16x48xf32>
    %235 = arith.subf %231, %234 : vector<16x48xf32>
    %236 = math.exp %235 : vector<16x48xf32>
    %cst_126 = arith.constant dense<0.000000e+00> : vector<16xf32>
    %237 = vector.multi_reduction <add>, %236, %cst_126 [1] : vector<16x48xf32> to vector<16xf32>
    %238 = vector.shape_cast %237 : vector<16xf32> to vector<16x1xf32>
    %239 = tpu.reciprocal %238 {approx = true} : vector<16x1xf32> -> vector<16x1xf32>
    %240 = vector.broadcast %239 : vector<16x1xf32> to vector<16x48xf32>
    %241 = arith.mulf %236, %240 : vector<16x48xf32>
    %c0_127 = arith.constant 0 : index
    %c0_128 = arith.constant 0 : index
    %242 = vector.load %arg37[%c0_127, %c0_128] : memref<16x48xf32, #tpu.memory_space<vmem>>, vector<16x48xf32>
    %243 = arith.addf %242, %241 : vector<16x48xf32>
    %c0_129 = arith.constant 0 : index
    %c0_130 = arith.constant 0 : index
    %244 = vector.load %arg37[%c0_129, %c0_130] : memref<16x48xf32, #tpu.memory_space<vmem>>, vector<16x48xf32>
    tpu.vector_store %arg37[%c0_129, %c0_130], %243 {strides = array<i32>} : memref<16x48xf32, #tpu.memory_space<vmem>>, vector<16x48xf32>,
    %245 = arith.truncf %241 : vector<16x48xf32> to vector<16x48xbf16>
    %c2_131 = arith.constant 2 : index
    %c0_132 = arith.constant 0 : index
    %c0_133 = arith.constant 0 : index
    %246 = vector.load %arg35[%c2_131, %c0_132, %c0_133] : memref<4x48x32xbf16, #tpu.memory_space<vmem>>, vector<1x48x32xbf16>
    %247 = vector.shape_cast %246 : vector<1x48x32xbf16> to vector<48x32xbf16>
    %cst_134 = arith.constant dense<0.000000e+00> : vector<16x32xf32>
    %248 = tpu.matmul %245, %247, %cst_134 {dimension_numbers = #tpu.dot_dimension_numbers<[1], [0], [0], [1], [0, 0, 1, 1], [], []>} : vector<16x48xbf16>, vector<48x32xbf16>, vector<16x32xf32> -> vector<16x32xf32>
    %249 = arith.truncf %248 : vector<16x32xf32> to vector<16x32xbf16>
    %c0_135 = arith.constant 0 : index
    %c64_136 = arith.constant 64 : index
    %250 = vector.load %arg36[%c0_135, %c64_136] : memref<16x128xbf16, #tpu.memory_space<vmem>>, vector<16x32xbf16>
    tpu.vector_store %arg36[%c0_135, %c64_136], %249 {strides = array<i32>} : memref<16x128xbf16, #tpu.memory_space<vmem>>, vector<16x32xbf16>,
    %251 = vector.extract_strided_slice %175 {offsets = [0, 96], sizes = [16, 32], strides = [1, 1]} : vector<16x128xbf16> to vector<16x32xbf16>
    %c3_137 = arith.constant 3 : index
    %c0_138 = arith.constant 0 : index
    %c0_139 = arith.constant 0 : index
    %252 = vector.load %arg34[%c3_137, %c0_138, %c0_139] : memref<4x48x32xbf16, #tpu.memory_space<vmem>>, vector<1x48x32xbf16>
    %253 = vector.shape_cast %252 : vector<1x48x32xbf16> to vector<48x32xbf16>
    %cst_140 = arith.constant dense<0.000000e+00> : vector<16x48xf32>
    %254 = tpu.matmul %251, %253, %cst_140 {dimension_numbers = #tpu.dot_dimension_numbers<[1], [1], [0], [0], [0, 0, 1, 0], [], []>} : vector<16x32xbf16>, vector<48x32xbf16>, vector<16x48xf32> -> vector<16x48xf32>
    %255 = vector.broadcast %177 : vector<1x48xf32> to vector<16x48xf32>
    %256 = arith.addf %254, %255 : vector<16x48xf32>
    %cst_141 = arith.constant dense<0xFF800000> : vector<16xf32>
    %257 = vector.multi_reduction <maximumf>, %256, %cst_141 [1] : vector<16x48xf32> to vector<16xf32>
    %258 = vector.shape_cast %257 : vector<16xf32> to vector<16x1xf32>
    %259 = vector.broadcast %258 : vector<16x1xf32> to vector<16x48xf32>
    %260 = arith.subf %256, %259 : vector<16x48xf32>
    %261 = math.exp %260 : vector<16x48xf32>
    %cst_142 = arith.constant dense<0.000000e+00> : vector<16xf32>
    %262 = vector.multi_reduction <add>, %261, %cst_142 [1] : vector<16x48xf32> to vector<16xf32>
    %263 = vector.shape_cast %262 : vector<16xf32> to vector<16x1xf32>
    %264 = tpu.reciprocal %263 {approx = true} : vector<16x1xf32> -> vector<16x1xf32>
    %265 = vector.broadcast %264 : vector<16x1xf32> to vector<16x48xf32>
    %266 = arith.mulf %261, %265 : vector<16x48xf32>
    %c0_143 = arith.constant 0 : index
    %c0_144 = arith.constant 0 : index
    %267 = vector.load %arg37[%c0_143, %c0_144] : memref<16x48xf32, #tpu.memory_space<vmem>>, vector<16x48xf32>
    %268 = arith.addf %267, %266 : vector<16x48xf32>
    %c0_145 = arith.constant 0 : index
    %c0_146 = arith.constant 0 : index
    %269 = vector.load %arg37[%c0_145, %c0_146] : memref<16x48xf32, #tpu.memory_space<vmem>>, vector<16x48xf32>
    tpu.vector_store %arg37[%c0_145, %c0_146], %268 {strides = array<i32>} : memref<16x48xf32, #tpu.memory_space<vmem>>, vector<16x48xf32>,
    %270 = arith.truncf %266 : vector<16x48xf32> to vector<16x48xbf16>
    %c3_147 = arith.constant 3 : index
    %c0_148 = arith.constant 0 : index
    %c0_149 = arith.constant 0 : index
    %271 = vector.load %arg35[%c3_147, %c0_148, %c0_149] : memref<4x48x32xbf16, #tpu.memory_space<vmem>>, vector<1x48x32xbf16>
    %272 = vector.shape_cast %271 : vector<1x48x32xbf16> to vector<48x32xbf16>
    %cst_150 = arith.constant dense<0.000000e+00> : vector<16x32xf32>
    %273 = tpu.matmul %270, %272, %cst_150 {dimension_numbers = #tpu.dot_dimension_numbers<[1], [0], [0], [1], [0, 0, 1, 1], [], []>} : vector<16x48xbf16>, vector<48x32xbf16>, vector<16x32xf32> -> vector<16x32xf32>
    %274 = arith.truncf %273 : vector<16x32xf32> to vector<16x32xbf16>
    %c0_151 = arith.constant 0 : index
    %c96_152 = arith.constant 96 : index
    %275 = vector.load %arg36[%c0_151, %c96_152] : memref<16x128xbf16, #tpu.memory_space<vmem>>, vector<16x32xbf16>
    tpu.vector_store %arg36[%c0_151, %c96_152], %274 {strides = array<i32>} : memref<16x128xbf16, #tpu.memory_space<vmem>>, vector<16x32xbf16>,
    %c0_153 = arith.constant 0 : index
    %c0_154 = arith.constant 0 : index
    %276 = vector.load %arg36[%c0_153, %c0_154] : memref<16x128xbf16, #tpu.memory_space<vmem>>, vector<16x128xbf16>
    %c0_155 = arith.constant 0 : index
    %c0_156 = arith.constant 0 : index
    %277 = vector.load %arg18[%c0_155, %c0_156] : memref<128x128xbf16, #tpu.memory_space<vmem>>, vector<128x128xbf16>
    %cst_157 = arith.constant dense<0.000000e+00> : vector<16x128xf32>
    %278 = tpu.matmul %276, %277, %cst_157 {dimension_numbers = #tpu.dot_dimension_numbers<[1], [0], [0], [1], [0, 0, 1, 1], [], []>} : vector<16x128xbf16>, vector<128x128xbf16>, vector<16x128xf32> -> vector<16x128xf32>
    %c0_158 = arith.constant 0 : index
    %c0_159 = arith.constant 0 : index
    %279 = vector.load %arg19[%c0_158, %c0_159] : memref<1x128xf32, #tpu.memory_space<vmem>>, vector<1x128xf32>
    %280 = vector.broadcast %279 : vector<1x128xf32> to vector<16x128xf32>
    %281 = arith.addf %278, %280 : vector<16x128xf32>
    %282 = arith.addf %143, %281 : vector<16x128xf32>
    %c0_160 = arith.constant 0 : index
    %c0_161 = arith.constant 0 : index
    %283 = vector.load %arg37[%c0_160, %c0_161] : memref<16x48xf32, #tpu.memory_space<vmem>>, vector<16x48xf32>
    %284 = tpu.iota {dimensions = array<i32: 1>} : vector<16x48xi32>
    %cst_162 = arith.constant dense<0xFF800000> : vector<16xf32>
    %285 = vector.multi_reduction <maximumf>, %283, %cst_162 [1] : vector<16x48xf32> to vector<16xf32>
    %286 = vector.shape_cast %285 : vector<16xf32> to vector<16x1xf32>
    %287 = vector.broadcast %286 : vector<16x1xf32> to vector<16x48xf32>
    %288 = arith.cmpf oeq, %283, %287 : vector<16x48xf32>
    %c48_i32 = arith.constant 48 : i32
    %289 = vector.broadcast %c48_i32 : i32 to vector<16x48xi32>
    %290 = arith.select %288, %284, %289 : vector<16x48xi1>, vector<16x48xi32>
    %cst_163 = arith.constant dense<2147483647> : vector<16xi32>
    %291 = vector.multi_reduction <minsi>, %290, %cst_163 [1] : vector<16x48xi32> to vector<16xi32>
    %292 = vector.shape_cast %291 : vector<16xi32> to vector<16x1xi32>
    %c0_164 = arith.constant 0 : index
    %c0_165 = arith.constant 0 : index
    %c0_166 = arith.constant 0 : index
    %293 = vector.load %arg31[%c0_164, %c0_165, %c0_166] : memref<1x16x1xi32, #tpu.memory_space<vmem>>, vector<1x16x1xi32>
    %294 = vector.shape_cast %293 : vector<1x16x1xi32> to vector<16x1xi32>
    %295 = vector.shape_cast %292 : vector<16x1xi32> to vector<1x16x1xi32>
    tpu.vector_store %arg31[%c0_164, %c0_165, %c0_166], %295 {strides = array<i32>} : memref<1x16x1xi32, #tpu.memory_space<vmem>>, vector<1x16x1xi32>,
    %cst_167 = arith.constant dense<0.000000e+00> : vector<16xf32>
    %296 = vector.multi_reduction <add>, %282, %cst_167 [1] : vector<16x128xf32> to vector<16xf32>
    %297 = vector.shape_cast %296 : vector<16xf32> to vector<16x1xf32>
    %cst_168 = arith.constant 1.280000e+02 : f32
    %298 = vector.broadcast %cst_168 : f32 to vector<16x1xf32>
    %299 = arith.divf %297, %298 : vector<16x1xf32>
    %300 = vector.broadcast %299 : vector<16x1xf32> to vector<16x128xf32>
    %301 = arith.subf %282, %300 : vector<16x128xf32>
    %302 = arith.mulf %301, %301 : vector<16x128xf32>
    %cst_169 = arith.constant dense<0.000000e+00> : vector<16xf32>
    %303 = vector.multi_reduction <add>, %302, %cst_169 [1] : vector<16x128xf32> to vector<16xf32>
    %304 = vector.shape_cast %303 : vector<16xf32> to vector<16x1xf32>
    %cst_170 = arith.constant 1.280000e+02 : f32
    %305 = vector.broadcast %cst_170 : f32 to vector<16x1xf32>
    %306 = arith.divf %304, %305 : vector<16x1xf32>
    %cst_171 = arith.constant 9.99999974E-6 : f32
    %307 = vector.broadcast %cst_171 : f32 to vector<16x1xf32>
    %308 = arith.addf %306, %307 : vector<16x1xf32>
    %309 = math.rsqrt %308 : vector<16x1xf32>
    %310 = vector.broadcast %309 : vector<16x1xf32> to vector<16x128xf32>
    %311 = arith.mulf %301, %310 : vector<16x128xf32>
    %c0_172 = arith.constant 0 : index
    %c0_173 = arith.constant 0 : index
    %312 = vector.load %arg24[%c0_172, %c0_173] : memref<1x128xf32, #tpu.memory_space<vmem>>, vector<1x128xf32>
    %313 = vector.broadcast %312 : vector<1x128xf32> to vector<16x128xf32>
    %314 = arith.mulf %311, %313 : vector<16x128xf32>
    %c0_174 = arith.constant 0 : index
    %c0_175 = arith.constant 0 : index
    %315 = vector.load %arg25[%c0_174, %c0_175] : memref<1x128xf32, #tpu.memory_space<vmem>>, vector<1x128xf32>
    %316 = vector.broadcast %315 : vector<1x128xf32> to vector<16x128xf32>
    %317 = arith.addf %314, %316 : vector<16x128xf32>
    %318 = arith.truncf %317 : vector<16x128xf32> to vector<16x128xbf16>
    %cst_176 = arith.constant 0.000000e+00 : f32
    %319 = vector.broadcast %cst_176 : f32 to vector<16x128xf32>
    %c0_177 = arith.constant 0 : index
    %c0_178 = arith.constant 0 : index
    %320 = vector.load %arg26[%c0_177, %c0_178] : memref<128x256xbf16, #tpu.memory_space<vmem>>, vector<128x256xbf16>
    %cst_179 = arith.constant dense<0.000000e+00> : vector<16x256xf32>
    %321 = tpu.matmul %318, %320, %cst_179 {dimension_numbers = #tpu.dot_dimension_numbers<[1], [0], [0], [1], [0, 0, 1, 1], [], []>} : vector<16x128xbf16>, vector<128x256xbf16>, vector<16x256xf32> -> vector<16x256xf32>
    %c0_180 = arith.constant 0 : index
    %c0_181 = arith.constant 0 : index
    %322 = vector.load %arg27[%c0_180, %c0_181] : memref<1x256xf32, #tpu.memory_space<vmem>>, vector<1x256xf32>
    %323 = vector.broadcast %322 : vector<1x256xf32> to vector<16x256xf32>
    %324 = arith.addf %321, %323 : vector<16x256xf32>
    %cst_182 = arith.constant 0.000000e+00 : f32
    %325 = vector.broadcast %cst_182 : f32 to vector<16x256xf32>
    %326 = arith.maximumf %324, %325 : vector<16x256xf32>
    %327 = arith.truncf %326 : vector<16x256xf32> to vector<16x256xbf16>
    %c0_183 = arith.constant 0 : index
    %c0_184 = arith.constant 0 : index
    %328 = vector.load %arg28[%c0_183, %c0_184] : memref<256x128xbf16, #tpu.memory_space<vmem>>, vector<256x128xbf16>
    %cst_185 = arith.constant dense<0.000000e+00> : vector<16x128xf32>
    %329 = tpu.matmul %327, %328, %cst_185 {dimension_numbers = #tpu.dot_dimension_numbers<[1], [0], [0], [1], [0, 0, 1, 1], [], []>} : vector<16x256xbf16>, vector<256x128xbf16>, vector<16x128xf32> -> vector<16x128xf32>
    %330 = arith.addf %319, %329 : vector<16x128xf32>
    %c0_186 = arith.constant 0 : index
    %c0_187 = arith.constant 0 : index
    %331 = vector.load %arg29[%c0_186, %c0_187] : memref<1x128xf32, #tpu.memory_space<vmem>>, vector<1x128xf32>
    %332 = vector.broadcast %331 : vector<1x128xf32> to vector<16x128xf32>
    %333 = arith.addf %330, %332 : vector<16x128xf32>
    %334 = arith.addf %282, %333 : vector<16x128xf32>
    %335 = vector.broadcast %12 : vector<16x1xf32> to vector<16x128xf32>
    %336 = arith.mulf %334, %335 : vector<16x128xf32>
    %c0_188 = arith.constant 0 : index
    %c0_189 = arith.constant 0 : index
    %c0_190 = arith.constant 0 : index
    %337 = vector.load %arg30[%c0_188, %c0_189, %c0_190] : memref<1x16x128xf32, #tpu.memory_space<vmem>>, vector<1x16x128xf32>
    %338 = vector.shape_cast %337 : vector<1x16x128xf32> to vector<16x128xf32>
    %339 = vector.shape_cast %336 : vector<16x128xf32> to vector<1x16x128xf32>
    tpu.vector_store %arg30[%c0_188, %c0_189, %c0_190], %339 {strides = array<i32>} : memref<1x16x128xf32, #tpu.memory_space<vmem>>, vector<1x16x128xf32>,
    return
  }
  func.func @transform_0(%arg0: i32, %arg1: i32) -> (i32, i32, i32) {
    %c0_i32 = arith.constant 0 : i32
    %c0_i32_0 = arith.constant 0 : i32
    %c0_i32_1 = arith.constant 0 : i32
    return %arg0, %c0_i32, %c0_i32_0 : i32, i32, i32
  }
  func.func @transform_1(%arg0: i32, %arg1: i32) -> (i32, i32, i32) {
    %c0_i32 = arith.constant 0 : i32
    %c0_i32_0 = arith.constant 0 : i32
    %c0_i32_1 = arith.constant 0 : i32
    return %arg0, %c0_i32, %c0_i32_0 : i32, i32, i32
  }
  func.func @transform_2(%arg0: i32, %arg1: i32) -> (i32, i32, i32) {
    %c0_i32 = arith.constant 0 : i32
    %c0_i32_0 = arith.constant 0 : i32
    return %arg0, %arg1, %c0_i32 : i32, i32, i32
  }
  func.func @transform_3(%arg0: i32, %arg1: i32) -> (i32, i32, i32) {
    %c0_i32 = arith.constant 0 : i32
    %c0_i32_0 = arith.constant 0 : i32
    %c0_i32_1 = arith.constant 0 : i32
    return %arg0, %c0_i32, %c0_i32_0 : i32, i32, i32
  }
  func.func @transform_4(%arg0: i32, %arg1: i32) -> (i32, i32, i32) {
    %c0_i32 = arith.constant 0 : i32
    %c0_i32_0 = arith.constant 0 : i32
    %c0_i32_1 = arith.constant 0 : i32
    return %arg0, %c0_i32, %c0_i32_0 : i32, i32, i32
  }
  func.func @transform_5(%arg0: i32, %arg1: i32) -> (i32, i32, i32) {
    %c0_i32 = arith.constant 0 : i32
    %c0_i32_0 = arith.constant 0 : i32
    %c0_i32_1 = arith.constant 0 : i32
    return %arg0, %c0_i32, %c0_i32_0 : i32, i32, i32
  }
  func.func @transform_6(%arg0: i32, %arg1: i32) -> (i32, i32) {
    %c0_i32 = arith.constant 0 : i32
    %c0_i32_0 = arith.constant 0 : i32
    %c0_i32_1 = arith.constant 0 : i32
    return %c0_i32, %c0_i32_0 : i32, i32
  }
  func.func @transform_7(%arg0: i32, %arg1: i32) -> (i32, i32) {
    %c0_i32 = arith.constant 0 : i32
    %c0_i32_0 = arith.constant 0 : i32
    %c0_i32_1 = arith.constant 0 : i32
    return %c0_i32, %c0_i32_0 : i32, i32
  }
  func.func @transform_8(%arg0: i32, %arg1: i32) -> (i32, i32) {
    %c0_i32 = arith.constant 0 : i32
    %c0_i32_0 = arith.constant 0 : i32
    %c0_i32_1 = arith.constant 0 : i32
    return %c0_i32, %c0_i32_0 : i32, i32
  }
  func.func @transform_9(%arg0: i32, %arg1: i32) -> (i32, i32) {
    %c0_i32 = arith.constant 0 : i32
    %c0_i32_0 = arith.constant 0 : i32
    %c0_i32_1 = arith.constant 0 : i32
    return %c0_i32, %c0_i32_0 : i32, i32
  }
  func.func @transform_10(%arg0: i32, %arg1: i32) -> (i32, i32) {
    %c0_i32 = arith.constant 0 : i32
    %c0_i32_0 = arith.constant 0 : i32
    %c0_i32_1 = arith.constant 0 : i32
    return %c0_i32, %c0_i32_0 : i32, i32
  }
  func.func @transform_11(%arg0: i32, %arg1: i32) -> (i32, i32) {
    %c0_i32 = arith.constant 0 : i32
    %c0_i32_0 = arith.constant 0 : i32
    %c0_i32_1 = arith.constant 0 : i32
    return %c0_i32, %c0_i32_0 : i32, i32
  }
  func.func @transform_12(%arg0: i32, %arg1: i32) -> (i32, i32) {
    %c0_i32 = arith.constant 0 : i32
    %c0_i32_0 = arith.constant 0 : i32
    %c0_i32_1 = arith.constant 0 : i32
    return %c0_i32, %c0_i32_0 : i32, i32
  }
  func.func @transform_13(%arg0: i32, %arg1: i32) -> (i32, i32) {
    %c0_i32 = arith.constant 0 : i32
    %c0_i32_0 = arith.constant 0 : i32
    %c0_i32_1 = arith.constant 0 : i32
    return %c0_i32, %c0_i32_0 : i32, i32
  }
  func.func @transform_14(%arg0: i32, %arg1: i32) -> (i32, i32) {
    %c0_i32 = arith.constant 0 : i32
    %c0_i32_0 = arith.constant 0 : i32
    %c0_i32_1 = arith.constant 0 : i32
    return %c0_i32, %c0_i32_0 : i32, i32
  }
  func.func @transform_15(%arg0: i32, %arg1: i32) -> (i32, i32) {
    %c0_i32 = arith.constant 0 : i32
    %c0_i32_0 = arith.constant 0 : i32
    %c0_i32_1 = arith.constant 0 : i32
    return %c0_i32, %c0_i32_0 : i32, i32
  }
  func.func @transform_16(%arg0: i32, %arg1: i32) -> (i32, i32) {
    %c0_i32 = arith.constant 0 : i32
    %c0_i32_0 = arith.constant 0 : i32
    %c0_i32_1 = arith.constant 0 : i32
    return %c0_i32, %c0_i32_0 : i32, i32
  }
  func.func @transform_17(%arg0: i32, %arg1: i32) -> (i32, i32) {
    %c0_i32 = arith.constant 0 : i32
    %c0_i32_0 = arith.constant 0 : i32
    %c0_i32_1 = arith.constant 0 : i32
    return %c0_i32, %c0_i32_0 : i32, i32
  }
  func.func @transform_18(%arg0: i32, %arg1: i32) -> (i32, i32) {
    %c0_i32 = arith.constant 0 : i32
    %c0_i32_0 = arith.constant 0 : i32
    %c0_i32_1 = arith.constant 0 : i32
    return %c0_i32, %c0_i32_0 : i32, i32
  }
  func.func @transform_19(%arg0: i32, %arg1: i32) -> (i32, i32) {
    %c0_i32 = arith.constant 0 : i32
    %c0_i32_0 = arith.constant 0 : i32
    %c0_i32_1 = arith.constant 0 : i32
    return %c0_i32, %c0_i32_0 : i32, i32
  }
  func.func @transform_20(%arg0: i32, %arg1: i32) -> (i32, i32) {
    %c0_i32 = arith.constant 0 : i32
    %c0_i32_0 = arith.constant 0 : i32
    %c0_i32_1 = arith.constant 0 : i32
    return %c0_i32, %c0_i32_0 : i32, i32
  }
  func.func @transform_21(%arg0: i32, %arg1: i32) -> (i32, i32) {
    %c0_i32 = arith.constant 0 : i32
    %c0_i32_0 = arith.constant 0 : i32
    %c0_i32_1 = arith.constant 0 : i32
    return %c0_i32, %c0_i32_0 : i32, i32
  }
  func.func @transform_22(%arg0: i32, %arg1: i32) -> (i32, i32) {
    %c0_i32 = arith.constant 0 : i32
    %c0_i32_0 = arith.constant 0 : i32
    %c0_i32_1 = arith.constant 0 : i32
    return %c0_i32, %c0_i32_0 : i32, i32
  }
  func.func @transform_23(%arg0: i32, %arg1: i32) -> (i32, i32) {
    %c0_i32 = arith.constant 0 : i32
    %c0_i32_0 = arith.constant 0 : i32
    %c0_i32_1 = arith.constant 0 : i32
    return %c0_i32, %c0_i32_0 : i32, i32
  }
  func.func @transform_24(%arg0: i32, %arg1: i32) -> (i32, i32) {
    %c0_i32 = arith.constant 0 : i32
    %c0_i32_0 = arith.constant 0 : i32
    %c0_i32_1 = arith.constant 0 : i32
    return %c0_i32, %c0_i32_0 : i32, i32
  }
  func.func @transform_25(%arg0: i32, %arg1: i32) -> (i32, i32) {
    %c0_i32 = arith.constant 0 : i32
    %c0_i32_0 = arith.constant 0 : i32
    %c0_i32_1 = arith.constant 0 : i32
    return %c0_i32, %c0_i32_0 : i32, i32
  }
  func.func @transform_26(%arg0: i32, %arg1: i32) -> (i32, i32) {
    %c0_i32 = arith.constant 0 : i32
    %c0_i32_0 = arith.constant 0 : i32
    %c0_i32_1 = arith.constant 0 : i32
    return %c0_i32, %c0_i32_0 : i32, i32
  }
  func.func @transform_27(%arg0: i32, %arg1: i32) -> (i32, i32) {
    %c0_i32 = arith.constant 0 : i32
    %c0_i32_0 = arith.constant 0 : i32
    %c0_i32_1 = arith.constant 0 : i32
    return %c0_i32, %c0_i32_0 : i32, i32
  }
  func.func @transform_28(%arg0: i32, %arg1: i32) -> (i32, i32, i32) {
    %c0_i32 = arith.constant 0 : i32
    %c0_i32_0 = arith.constant 0 : i32
    return %arg0, %arg1, %c0_i32 : i32, i32, i32
  }
  func.func @transform_29(%arg0: i32, %arg1: i32) -> (i32, i32, i32) {
    %c0_i32 = arith.constant 0 : i32
    %c0_i32_0 = arith.constant 0 : i32
    return %arg0, %arg1, %c0_i32 : i32, i32, i32
  }
}

</mosaic_0001>

<llo_original>
// kernel: tpu_custom_call.1
$region0: #{tpu_custom_call.1}
  #allocation0 [shape = 'u32[]', space=smem, size = 0x4, offset = 0x4, fixed_abs, tag = 'smem constant byte address 0x4 - core index']
  #allocation1 [shape = 'u32[72,128]{1,0:T(1,128)}', space=vmem, size = 0x9000, scoped, tag = 'internal scratch']
  #allocation2 [shape = 'bf16[4,32,32]{2,1,0:T(8,128)(2,1)}', space=vmem, size = 0x8000, scoped, tag = 'scratch operand']
  #allocation3 [shape = 'bf16[4,32,32]{2,1,0:T(8,128)(2,1)}', space=vmem, size = 0x8000, scoped, tag = 'scratch operand']
  #allocation4 [shape = 'bf16[4,48,32]{2,1,0:T(8,128)(2,1)}', space=vmem, size = 0xc000, scoped, tag = 'scratch operand']
  #allocation5 [shape = 'bf16[4,48,32]{2,1,0:T(8,128)(2,1)}', space=vmem, size = 0xc000, scoped, tag = 'scratch operand']
  #allocation6 [shape = 'bf16[16,128]{1,0:T(8,128)(2,1)}', space=vmem, size = 0x1000, scoped, tag = 'scratch operand']
  #allocation7 [shape = 'f32[16,48]{1,0:T(8,128)}', space=vmem, size = 0x2000, scoped, tag = 'scratch operand']
  %s0 = inlined_call_operand.smem [shape: u32[30], index: -1, kind: input, shape index: {}]
  %s1 = sld [smem:[%s0]]
  %s2 = scalar_lea.smem %s0, 1
  %s3 = sld [smem:[%s2]]
  %s4 = scalar_lea.smem %s0, 2
  %s5 = sld [smem:[%s4]]
  %s6 = scalar_lea.smem %s0, 3
  %s7 = sld [smem:[%s6]]
  %s8 = scalar_lea.smem %s0, 4
  %s9 = sld [smem:[%s8]]
  %s10 = scalar_lea.smem %s0, 5
  %s11 = sld [smem:[%s10]]
  %s12 = scalar_lea.smem %s0, 6
  %s13 = sld [smem:[%s12]]
  %s14 = scalar_lea.smem %s0, 7
  %s15 = sld [smem:[%s14]]
  %s16 = scalar_lea.smem %s0, 8
  %s17 = sld [smem:[%s16]]
  %s18 = scalar_lea.smem %s0, 9
  %s19 = sld [smem:[%s18]]
  %s20 = scalar_lea.smem %s0, 10
  %s21 = sld [smem:[%s20]]
  %s22 = scalar_lea.smem %s0, 11
  %s23 = sld [smem:[%s22]]
  %s24 = scalar_lea.smem %s0, 12
  %s25 = sld [smem:[%s24]]
  %s26 = scalar_lea.smem %s0, 13
  %s27 = sld [smem:[%s26]]
  %s28 = scalar_lea.smem %s0, 14
  %s29 = sld [smem:[%s28]]
  %s30 = scalar_lea.smem %s0, 15
  %s31 = sld [smem:[%s30]]
  %s32 = scalar_lea.smem %s0, 16
  %s33 = sld [smem:[%s32]]
  %s34 = scalar_lea.smem %s0, 17
  %s35 = sld [smem:[%s34]]
  %s36 = scalar_lea.smem %s0, 18
  %s37 = sld [smem:[%s36]]
  %s38 = scalar_lea.smem %s0, 19
  %s39 = sld [smem:[%s38]]
  %s40 = scalar_lea.smem %s0, 20
  %s41 = sld [smem:[%s40]]
  %s42 = scalar_lea.smem %s0, 21
  %s43 = sld [smem:[%s42]]
  %s44 = scalar_lea.smem %s0, 22
  %s45 = sld [smem:[%s44]]
  %s46 = scalar_lea.smem %s0, 23
  %s47 = sld [smem:[%s46]]
  %s48 = scalar_lea.smem %s0, 24
  %s49 = sld [smem:[%s48]]
  %s50 = scalar_lea.smem %s0, 25
  %s51 = sld [smem:[%s50]]
  %s52 = scalar_lea.smem %s0, 26
  %s53 = sld [smem:[%s52]]
  %s54 = scalar_lea.smem %s0, 27
  %s55 = sld [smem:[%s54]]
  %s56 = scalar_lea.smem %s0, 28
  %s57 = sld [smem:[%s56]]
  %s58 = scalar_lea.smem %s0, 29
  %s59 = sld [smem:[%s58]]
  %60 = xla_tuple %s57, %s59
  %s61 = sld [smem:[#allocation0]]
  $region201: #{tpu_custom_call.1} parent=0
    _
  %s63 = ssub.s32 1, %s61
  %s64 = scalar_select 0, %s63, %s61
  $region1: #{tpu_custom_call.1} parent=0
    #allocation8 [shape = 'u8[24576]{0}', space=vmem, size = 0x6000, scoped, tag = 'input window, operand 1']
    #allocation9 [shape = 's32[2]{0}', space=sflag, size = 0x8, scoped, tag = 'scoped memory for tpu_custom_call.1']
    #allocation10 [shape = 's32[2]{0}', space=sflag, size = 0x8, scoped, tag = 'scoped memory for tpu_custom_call.1']
    #allocation11 [shape = 'u8[16384]{0}', space=vmem, size = 0x4000, scoped, tag = 'input window, operand 2']
    #allocation12 [shape = 's32[2]{0}', space=sflag, size = 0x8, scoped, tag = 'scoped memory for tpu_custom_call.1']
    #allocation13 [shape = 'u8[32768]{0}', space=vmem, size = 0x8000, scoped, tag = 'input window, operand 6, single buffered']
    #allocation14 [shape = 'u8[512]{0}', space=vmem, size = 0x400, scoped, tag = 'input window, operand 7, single buffered']
    #allocation15 [shape = 's32[1]{0}', space=sflag, size = 0x4, scoped, tag = 'scoped memory for tpu_custom_call.1']
    #allocation16 [shape = 'u8[65536]{0}', space=vmem, size = 0x10000, scoped, tag = 'input window, operand 8, single buffered']
    #allocation17 [shape = 'u8[32768]{0}', space=vmem, size = 0x8000, scoped, tag = 'input window, operand 10, single buffered']
    #allocation18 [shape = 's32[1]{0}', space=sflag, size = 0x4, scoped, tag = 'scoped memory for tpu_custom_call.1']
    #allocation19 [shape = 'u8[32768]{0}', space=vmem, size = 0x8000, scoped, tag = 'input window, operand 12, single buffered']
    #allocation20 [shape = 'u8[65536]{0}', space=vmem, size = 0x10000, scoped, tag = 'input window, operand 14, single buffered']
    #allocation21 [shape = 's32[1]{0}', space=sflag, size = 0x4, scoped, tag = 'scoped memory for tpu_custom_call.1']
    #allocation22 [shape = 'u8[32768]{0}', space=vmem, size = 0x8000, scoped, tag = 'input window, operand 16, single buffered']
    #allocation23 [shape = 'u8[65536]{0}', space=vmem, size = 0x10000, scoped, tag = 'input window, operand 24, single buffered']
    #allocation24 [shape = 's32[1]{0}', space=sflag, size = 0x4, scoped, tag = 'scoped memory for tpu_custom_call.1']
    #allocation25 [shape = 'u8[65536]{0}', space=vmem, size = 0x10000, scoped, tag = 'input window, operand 26, single buffered']
    #allocation26 [shape = 'u8[16384]{0}', space=vmem, size = 0x4000, scoped, tag = 'output window, operand 0']
    %65 = vsyncpa [#allocation9], 0
    %s66 = scalar_lea.sflag [#allocation9], 1
    %67 = vsyncpa %s66, 0
    %68 = vsyncpa [#allocation12], 0
    %s69 = scalar_lea.sflag [#allocation12], 1
    %70 = vsyncpa %s69, 0
    %71 = vsyncpa [#allocation15], 0
    %72 = vsyncpa [#allocation18], 0
    %73 = vsyncpa [#allocation21], 0
    %74 = vsyncpa [#allocation24], 0
    %75 = vsyncpa [#allocation10], 0
    %s76 = scalar_lea.sflag [#allocation10], 1
    %77 = vsyncpa %s76, 0
    loop: start=0, step=1, limit=6
    $region2: #{tpu_custom_call.1} parent=1 // loop_pre_header
      _
    $region3: #{tpu_custom_call.1} parent=1 // loop_header
      %s79 = sphi 0, %s83
      %p80 = scmp.ge.s32.totalorder %s79, 6
      %s86 = sphi 0, %s98
      %s87 = sphi 0, %s94
      %s88 = sphi 0, %s86
      %s89 = sphi 0, %s87
      %s90 = sphi 0, %s88
      %s91 = sphi 0, %s89
      %s101 = sphi 0, %s103
      %s104 = sphi 0, %s101
      %s105 = sphi 0, %s104
      %s121 = sphi 0, %s105
      %s127 = sphi 0, %s129
      %s130 = sphi 0, %s127
      %s131 = sphi 0, %s130
      %s147 = sphi 0, %s131
      %s155 = sphi 0, %s157
      %s158 = sphi 0, %s155
      %s159 = sphi 0, %s158
      %s175 = sphi 0, %s159
      %s181 = sphi 0, %s183
      %s184 = sphi 0, %s181
      %s185 = sphi 0, %s184
      %s201 = sphi 0, %s185
      %s207 = sphi 0, %s209
      %s210 = sphi 0, %s207
      %s211 = sphi 0, %s210
      %s227 = sphi 0, %s211
      %s233 = sphi 0, %s235
      %s236 = sphi 0, %s233
      %s237 = sphi 0, %s236
      %s253 = sphi 0, %s237
      %s257 = sphi 0, %s257
      %s259 = sphi 0, %s257
      %s260 = sphi 0, %s259
      %s274 = sphi 0, %s260
      %s278 = sphi 0, %s278
      %s280 = sphi 0, %s278
      %s281 = sphi 0, %s280
      %s295 = sphi 0, %s281
      %s299 = sphi 0, %s299
      %s301 = sphi 0, %s299
      %s302 = sphi 0, %s301
      %s316 = sphi 0, %s302
      %s320 = sphi 0, %s320
      %s322 = sphi 0, %s320
      %s323 = sphi 0, %s322
      %s337 = sphi 0, %s323
      %s341 = sphi 0, %s341
      %s343 = sphi 0, %s341
      %s344 = sphi 0, %s343
      %s358 = sphi 0, %s344
      %s362 = sphi 0, %s362
      %s364 = sphi 0, %s362
      %s365 = sphi 0, %s364
      %s379 = sphi 0, %s365
      %s383 = sphi 0, %s383
      %s385 = sphi 0, %s383
      %s386 = sphi 0, %s385
      %s400 = sphi 0, %s386
      %s404 = sphi 0, %s404
      %s406 = sphi 0, %s404
      %s407 = sphi 0, %s406
      %s421 = sphi 0, %s407
      %s425 = sphi 0, %s425
      %s427 = sphi 0, %s425
      %s428 = sphi 0, %s427
      %s442 = sphi 0, %s428
      %s446 = sphi 0, %s446
      %s448 = sphi 0, %s446
      %s449 = sphi 0, %s448
      %s463 = sphi 0, %s449
      %s467 = sphi 0, %s467
      %s469 = sphi 0, %s467
      %s470 = sphi 0, %s469
      %s484 = sphi 0, %s470
      %s488 = sphi 0, %s488
      %s490 = sphi 0, %s488
      %s491 = sphi 0, %s490
      %s505 = sphi 0, %s491
      %s509 = sphi 0, %s509
      %s511 = sphi 0, %s509
      %s512 = sphi 0, %s511
      %s526 = sphi 0, %s512
      %s530 = sphi 0, %s530
      %s532 = sphi 0, %s530
      %s533 = sphi 0, %s532
      %s547 = sphi 0, %s533
      %s551 = sphi 0, %s551
      %s553 = sphi 0, %s551
      %s554 = sphi 0, %s553
      %s568 = sphi 0, %s554
      %s572 = sphi 0, %s572
      %s574 = sphi 0, %s572
      %s575 = sphi 0, %s574
      %s589 = sphi 0, %s575
      %s593 = sphi 0, %s593
      %s595 = sphi 0, %s593
      %s596 = sphi 0, %s595
      %s610 = sphi 0, %s596
      %s614 = sphi 0, %s614
      %s616 = sphi 0, %s614
      %s617 = sphi 0, %s616
      %s631 = sphi 0, %s617
      %s635 = sphi 0, %s635
      %s637 = sphi 0, %s635
      %s638 = sphi 0, %s637
      %s652 = sphi 0, %s638
      %s656 = sphi 0, %s656
      %s658 = sphi 0, %s656
      %s659 = sphi 0, %s658
      %s673 = sphi 0, %s659
      %s677 = sphi 0, %s677
      %s679 = sphi 0, %s677
      %s680 = sphi 0, %s679
      %s694 = sphi 0, %s680
      %s698 = sphi 0, %s698
      %s700 = sphi 0, %s698
      %s701 = sphi 0, %s700
      %s715 = sphi 0, %s701
      %s723 = sphi 0, %s725
      %s726 = sphi 0, %s723
      %s727 = sphi 0, %s726
      %s743 = sphi 0, %s727
      %s751 = sphi 0, %s753
      %s754 = sphi 0, %s751
      %s755 = sphi 0, %s754
      %s771 = sphi 0, %s755
    $region4: #{tpu_custom_call.1} parent=1 // loop_header_branch
      %82 = sbr.rel (%p80) target = $region8
    $region5: #{tpu_custom_call.1} parent=1 // loop_body
      %s84 = ssub.s32 %s79, 1
      %s85 = ssub.s32 %s79, 2
      %s92 = sadd.s32 1, %s87
      %p93 = scmp.ge.s32.totalorder %s92, 2
      %s94 = scalar_select %p93, 0, %s92
      %s95 = sadd.s32 1, %s86
      %s96 = scalar_select %p93, %s95, %s86
      %p97 = scmp.ge.s32.totalorder %s96, 2
      %s98 = scalar_select %p97, 0, %s96
      %s99 = ssub.s32 %s86, %s98
      %p100 = scmp.eq.s32.totalorder %s99, 0
      %s102 = sadd.s32 %s101, 1
      %s103 = scalar_select %p100, %s101, %s102
      %p106 = pneg %p100
      %p107 = scmp.eq.s32.totalorder %s79, 3
      %p108 = por %p106, %p107
      %p109 = scmp.ne.s32.totalorder %s101, %s104
      %p110 = scmp.eq.s32.totalorder %s79, 0
      %p111 = por %p109, %p110
      %p112 = scmp.ne.s32.totalorder %s101, %s104
      %p113 = scmp.eq.s32.totalorder %s84, 3
      %p114 = por %p112, %p113
      %p115 = scmp.ne.s32.totalorder %s104, %s105
      %p116 = scmp.eq.s32.totalorder %s84, 0
      %p117 = por %p115, %p116
      %p118 = scmp.ne.s32.totalorder %s104, %s105
      %p119 = scmp.eq.s32.totalorder %s85, 3
      %p120 = por %p118, %p119
      %p122 = scmp.ne.s32.totalorder %s105, %s121
      %p123 = scmp.eq.s32.totalorder %s85, 0
      %p124 = por %p122, %p123
      %s125 = ssub.s32 %s86, %s98
      %p126 = scmp.eq.s32.totalorder %s125, 0
      %s128 = sadd.s32 %s127, 1
      %s129 = scalar_select %p126, %s127, %s128
      %p132 = pneg %p126
      %p133 = scmp.eq.s32.totalorder %s79, 3
      %p134 = por %p132, %p133
      %p135 = scmp.ne.s32.totalorder %s127, %s130
      %p136 = scmp.eq.s32.totalorder %s79, 0
      %p137 = por %p135, %p136
      %p138 = scmp.ne.s32.totalorder %s127, %s130
      %p139 = scmp.eq.s32.totalorder %s84, 3
      %p140 = por %p138, %p139
      %p141 = scmp.ne.s32.totalorder %s130, %s131
      %p142 = scmp.eq.s32.totalorder %s84, 0
      %p143 = por %p141, %p142
      %p144 = scmp.ne.s32.totalorder %s130, %s131
      %p145 = scmp.eq.s32.totalorder %s85, 3
      %p146 = por %p144, %p145
      %p148 = scmp.ne.s32.totalorder %s131, %s147
      %p149 = scmp.eq.s32.totalorder %s85, 0
      %p150 = por %p148, %p149
      %s151 = ssub.s32 %s86, %s98
      %s152 = ssub.s32 %s87, %s94
      %s153 = sor.u32 %s151, %s152
      %p154 = scmp.eq.s32.totalorder %s153, 0
      %s156 = sadd.s32 %s155, 1
      %s157 = scalar_select %p154, %s155, %s156
      %p160 = pneg %p154
      %p161 = scmp.eq.s32.totalorder %s79, 3
      %p162 = por %p160, %p161
      %p163 = scmp.ne.s32.totalorder %s155, %s158
      %p164 = scmp.eq.s32.totalorder %s79, 0
      %p165 = por %p163, %p164
      %p166 = scmp.ne.s32.totalorder %s155, %s158
      %p167 = scmp.eq.s32.totalorder %s84, 3
      %p168 = por %p166, %p167
      %p169 = scmp.ne.s32.totalorder %s158, %s159
      %p170 = scmp.eq.s32.totalorder %s84, 0
      %p171 = por %p169, %p170
      %p172 = scmp.ne.s32.totalorder %s158, %s159
      %p173 = scmp.eq.s32.totalorder %s85, 3
      %p174 = por %p172, %p173
      %p176 = scmp.ne.s32.totalorder %s159, %s175
      %p177 = scmp.eq.s32.totalorder %s85, 0
      %p178 = por %p176, %p177
      %s179 = ssub.s32 %s86, %s98
      %p180 = scmp.eq.s32.totalorder %s179, 0
      %s182 = sadd.s32 %s181, 1
      %s183 = scalar_select %p180, %s181, %s182
      %p186 = pneg %p180
      %p187 = scmp.eq.s32.totalorder %s79, 3
      %p188 = por %p186, %p187
      %p189 = scmp.ne.s32.totalorder %s181, %s184
      %p190 = scmp.eq.s32.totalorder %s79, 0
      %p191 = por %p189, %p190
      %p192 = scmp.ne.s32.totalorder %s181, %s184
      %p193 = scmp.eq.s32.totalorder %s84, 3
      %p194 = por %p192, %p193
      %p195 = scmp.ne.s32.totalorder %s184, %s185
      %p196 = scmp.eq.s32.totalorder %s84, 0
      %p197 = por %p195, %p196
      %p198 = scmp.ne.s32.totalorder %s184, %s185
      %p199 = scmp.eq.s32.totalorder %s85, 3
      %p200 = por %p198, %p199
      %p202 = scmp.ne.s32.totalorder %s185, %s201
      %p203 = scmp.eq.s32.totalorder %s85, 0
      %p204 = por %p202, %p203
      %s205 = ssub.s32 %s86, %s98
      %p206 = scmp.eq.s32.totalorder %s205, 0
      %s208 = sadd.s32 %s207, 1
      %s209 = scalar_select %p206, %s207, %s208
      %p212 = pneg %p206
      %p213 = scmp.eq.s32.totalorder %s79, 3
      %p214 = por %p212, %p213
      %p215 = scmp.ne.s32.totalorder %s207, %s210
      %p216 = scmp.eq.s32.totalorder %s79, 0
      %p217 = por %p215, %p216
      %p218 = scmp.ne.s32.totalorder %s207, %s210
      %p219 = scmp.eq.s32.totalorder %s84, 3
      %p220 = por %p218, %p219
      %p221 = scmp.ne.s32.totalorder %s210, %s211
      %p222 = scmp.eq.s32.totalorder %s84, 0
      %p223 = por %p221, %p222
      %p224 = scmp.ne.s32.totalorder %s210, %s211
      %p225 = scmp.eq.s32.totalorder %s85, 3
      %p226 = por %p224, %p225
      %p228 = scmp.ne.s32.totalorder %s211, %s227
      %p229 = scmp.eq.s32.totalorder %s85, 0
      %p230 = por %p228, %p229
      %s231 = ssub.s32 %s86, %s98
      %p232 = scmp.eq.s32.totalorder %s231, 0
      %s234 = sadd.s32 %s233, 1
      %s235 = scalar_select %p232, %s233, %s234
      %p238 = pneg %p232
      %p239 = scmp.eq.s32.totalorder %s79, 3
      %p240 = por %p238, %p239
      %p241 = scmp.ne.s32.totalorder %s233, %s236
      %p242 = scmp.eq.s32.totalorder %s79, 0
      %p243 = por %p241, %p242
      %p244 = scmp.ne.s32.totalorder %s233, %s236
      %p245 = scmp.eq.s32.totalorder %s84, 3
      %p246 = por %p244, %p245
      %p247 = scmp.ne.s32.totalorder %s236, %s237
      %p248 = scmp.eq.s32.totalorder %s84, 0
      %p249 = por %p247, %p248
      %p250 = scmp.ne.s32.totalorder %s236, %s237
      %p251 = scmp.eq.s32.totalorder %s85, 3
      %p252 = por %p250, %p251
      %p254 = scmp.ne.s32.totalorder %s237, %s253
      %p255 = scmp.eq.s32.totalorder %s85, 0
      %p256 = por %p254, %p255
      %s258 = sadd.s32 %s257, 1
      %p261 = scmp.eq.s32.totalorder %s79, 3
      %p262 = scmp.ne.s32.totalorder %s257, %s259
      %p263 = scmp.eq.s32.totalorder %s79, 0
      %p264 = por %p262, %p263
      %p265 = scmp.ne.s32.totalorder %s257, %s259
      %p266 = scmp.eq.s32.totalorder %s84, 3
      %p267 = por %p265, %p266
      %p268 = scmp.ne.s32.totalorder %s259, %s260
      %p269 = scmp.eq.s32.totalorder %s84, 0
      %p270 = por %p268, %p269
      %p271 = scmp.ne.s32.totalorder %s259, %s260
      %p272 = scmp.eq.s32.totalorder %s85, 3
      %p273 = por %p271, %p272
      %p275 = scmp.ne.s32.totalorder %s260, %s274
      %p276 = scmp.eq.s32.totalorder %s85, 0
      %p277 = por %p275, %p276
      %s279 = sadd.s32 %s278, 1
      %p282 = scmp.eq.s32.totalorder %s79, 3
      %p283 = scmp.ne.s32.totalorder %s278, %s280
      %p284 = scmp.eq.s32.totalorder %s79, 0
      %p285 = por %p283, %p284
      %p286 = scmp.ne.s32.totalorder %s278, %s280
      %p287 = scmp.eq.s32.totalorder %s84, 3
      %p288 = por %p286, %p287
      %p289 = scmp.ne.s32.totalorder %s280, %s281
      %p290 = scmp.eq.s32.totalorder %s84, 0
      %p291 = por %p289, %p290
      %p292 = scmp.ne.s32.totalorder %s280, %s281
      %p293 = scmp.eq.s32.totalorder %s85, 3
      %p294 = por %p292, %p293
      %p296 = scmp.ne.s32.totalorder %s281, %s295
      %p297 = scmp.eq.s32.totalorder %s85, 0
      %p298 = por %p296, %p297
      %s300 = sadd.s32 %s299, 1
      %p303 = scmp.eq.s32.totalorder %s79, 3
      %p304 = scmp.ne.s32.totalorder %s299, %s301
      %p305 = scmp.eq.s32.totalorder %s79, 0
      %p306 = por %p304, %p305
      %p307 = scmp.ne.s32.totalorder %s299, %s301
      %p308 = scmp.eq.s32.totalorder %s84, 3
      %p309 = por %p307, %p308
      %p310 = scmp.ne.s32.totalorder %s301, %s302
      %p311 = scmp.eq.s32.totalorder %s84, 0
      %p312 = por %p310, %p311
      %p313 = scmp.ne.s32.totalorder %s301, %s302
      %p314 = scmp.eq.s32.totalorder %s85, 3
      %p315 = por %p313, %p314
      %p317 = scmp.ne.s32.totalorder %s302, %s316
      %p318 = scmp.eq.s32.totalorder %s85, 0
      %p319 = por %p317, %p318
      %s321 = sadd.s32 %s320, 1
      %p324 = scmp.eq.s32.totalorder %s79, 3
      %p325 = scmp.ne.s32.totalorder %s320, %s322
      %p326 = scmp.eq.s32.totalorder %s79, 0
      %p327 = por %p325, %p326
      %p328 = scmp.ne.s32.totalorder %s320, %s322
      %p329 = scmp.eq.s32.totalorder %s84, 3
      %p330 = por %p328, %p329
      %p331 = scmp.ne.s32.totalorder %s322, %s323
      %p332 = scmp.eq.s32.totalorder %s84, 0
      %p333 = por %p331, %p332
      %p334 = scmp.ne.s32.totalorder %s322, %s323
      %p335 = scmp.eq.s32.totalorder %s85, 3
      %p336 = por %p334, %p335
      %p338 = scmp.ne.s32.totalorder %s323, %s337
      %p339 = scmp.eq.s32.totalorder %s85, 0
      %p340 = por %p338, %p339
      %s342 = sadd.s32 %s341, 1
      %p345 = scmp.eq.s32.totalorder %s79, 3
      %p346 = scmp.ne.s32.totalorder %s341, %s343
      %p347 = scmp.eq.s32.totalorder %s79, 0
      %p348 = por %p346, %p347
      %p349 = scmp.ne.s32.totalorder %s341, %s343
      %p350 = scmp.eq.s32.totalorder %s84, 3
      %p351 = por %p349, %p350
      %p352 = scmp.ne.s32.totalorder %s343, %s344
      %p353 = scmp.eq.s32.totalorder %s84, 0
      %p354 = por %p352, %p353
      %p355 = scmp.ne.s32.totalorder %s343, %s344
      %p356 = scmp.eq.s32.totalorder %s85, 3
      %p357 = por %p355, %p356
      %p359 = scmp.ne.s32.totalorder %s344, %s358
      %p360 = scmp.eq.s32.totalorder %s85, 0
      %p361 = por %p359, %p360
      %s363 = sadd.s32 %s362, 1
      %p366 = scmp.eq.s32.totalorder %s79, 3
      %p367 = scmp.ne.s32.totalorder %s362, %s364
      %p368 = scmp.eq.s32.totalorder %s79, 0
      %p369 = por %p367, %p368
      %p370 = scmp.ne.s32.totalorder %s362, %s364
      %p371 = scmp.eq.s32.totalorder %s84, 3
      %p372 = por %p370, %p371
      %p373 = scmp.ne.s32.totalorder %s364, %s365
      %p374 = scmp.eq.s32.totalorder %s84, 0
      %p375 = por %p373, %p374
      %p376 = scmp.ne.s32.totalorder %s364, %s365
      %p377 = scmp.eq.s32.totalorder %s85, 3
      %p378 = por %p376, %p377
      %p380 = scmp.ne.s32.totalorder %s365, %s379
      %p381 = scmp.eq.s32.totalorder %s85, 0
      %p382 = por %p380, %p381
      %s384 = sadd.s32 %s383, 1
      %p387 = scmp.eq.s32.totalorder %s79, 3
      %p388 = scmp.ne.s32.totalorder %s383, %s385
      %p389 = scmp.eq.s32.totalorder %s79, 0
      %p390 = por %p388, %p389
      %p391 = scmp.ne.s32.totalorder %s383, %s385
      %p392 = scmp.eq.s32.totalorder %s84, 3
      %p393 = por %p391, %p392
      %p394 = scmp.ne.s32.totalorder %s385, %s386
      %p395 = scmp.eq.s32.totalorder %s84, 0
      %p396 = por %p394, %p395
      %p397 = scmp.ne.s32.totalorder %s385, %s386
      %p398 = scmp.eq.s32.totalorder %s85, 3
      %p399 = por %p397, %p398
      %p401 = scmp.ne.s32.totalorder %s386, %s400
      %p402 = scmp.eq.s32.totalorder %s85, 0
      %p403 = por %p401, %p402
      %s405 = sadd.s32 %s404, 1
      %p408 = scmp.eq.s32.totalorder %s79, 3
      %p409 = scmp.ne.s32.totalorder %s404, %s406
      %p410 = scmp.eq.s32.totalorder %s79, 0
      %p411 = por %p409, %p410
      %p412 = scmp.ne.s32.totalorder %s404, %s406
      %p413 = scmp.eq.s32.totalorder %s84, 3
      %p414 = por %p412, %p413
      %p415 = scmp.ne.s32.totalorder %s406, %s407
      %p416 = scmp.eq.s32.totalorder %s84, 0
      %p417 = por %p415, %p416
      %p418 = scmp.ne.s32.totalorder %s406, %s407
      %p419 = scmp.eq.s32.totalorder %s85, 3
      %p420 = por %p418, %p419
      %p422 = scmp.ne.s32.totalorder %s407, %s421
      %p423 = scmp.eq.s32.totalorder %s85, 0
      %p424 = por %p422, %p423
      %s426 = sadd.s32 %s425, 1
      %p429 = scmp.eq.s32.totalorder %s79, 3
      %p430 = scmp.ne.s32.totalorder %s425, %s427
      %p431 = scmp.eq.s32.totalorder %s79, 0
      %p432 = por %p430, %p431
      %p433 = scmp.ne.s32.totalorder %s425, %s427
      %p434 = scmp.eq.s32.totalorder %s84, 3
      %p435 = por %p433, %p434
      %p436 = scmp.ne.s32.totalorder %s427, %s428
      %p437 = scmp.eq.s32.totalorder %s84, 0
      %p438 = por %p436, %p437
      %p439 = scmp.ne.s32.totalorder %s427, %s428
      %p440 = scmp.eq.s32.totalorder %s85, 3
      %p441 = por %p439, %p440
      %p443 = scmp.ne.s32.totalorder %s428, %s442
      %p444 = scmp.eq.s32.totalorder %s85, 0
      %p445 = por %p443, %p444
      %s447 = sadd.s32 %s446, 1
      %p450 = scmp.eq.s32.totalorder %s79, 3
      %p451 = scmp.ne.s32.totalorder %s446, %s448
      %p452 = scmp.eq.s32.totalorder %s79, 0
      %p453 = por %p451, %p452
      %p454 = scmp.ne.s32.totalorder %s446, %s448
      %p455 = scmp.eq.s32.totalorder %s84, 3
      %p456 = por %p454, %p455
      %p457 = scmp.ne.s32.totalorder %s448, %s449
      %p458 = scmp.eq.s32.totalorder %s84, 0
      %p459 = por %p457, %p458
      %p460 = scmp.ne.s32.totalorder %s448, %s449
      %p461 = scmp.eq.s32.totalorder %s85, 3
      %p462 = por %p460, %p461
      %p464 = scmp.ne.s32.totalorder %s449, %s463
      %p465 = scmp.eq.s32.totalorder %s85, 0
      %p466 = por %p464, %p465
      %s468 = sadd.s32 %s467, 1
      %p471 = scmp.eq.s32.totalorder %s79, 3
      %p472 = scmp.ne.s32.totalorder %s467, %s469
      %p473 = scmp.eq.s32.totalorder %s79, 0
      %p474 = por %p472, %p473
      %p475 = scmp.ne.s32.totalorder %s467, %s469
      %p476 = scmp.eq.s32.totalorder %s84, 3
      %p477 = por %p475, %p476
      %p478 = scmp.ne.s32.totalorder %s469, %s470
      %p479 = scmp.eq.s32.totalorder %s84, 0
      %p480 = por %p478, %p479
      %p481 = scmp.ne.s32.totalorder %s469, %s470
      %p482 = scmp.eq.s32.totalorder %s85, 3
      %p483 = por %p481, %p482
      %p485 = scmp.ne.s32.totalorder %s470, %s484
      %p486 = scmp.eq.s32.totalorder %s85, 0
      %p487 = por %p485, %p486
      %s489 = sadd.s32 %s488, 1
      %p492 = scmp.eq.s32.totalorder %s79, 3
      %p493 = scmp.ne.s32.totalorder %s488, %s490
      %p494 = scmp.eq.s32.totalorder %s79, 0
      %p495 = por %p493, %p494
      %p496 = scmp.ne.s32.totalorder %s488, %s490
      %p497 = scmp.eq.s32.totalorder %s84, 3
      %p498 = por %p496, %p497
      %p499 = scmp.ne.s32.totalorder %s490, %s491
      %p500 = scmp.eq.s32.totalorder %s84, 0
      %p501 = por %p499, %p500
      %p502 = scmp.ne.s32.totalorder %s490, %s491
      %p503 = scmp.eq.s32.totalorder %s85, 3
      %p504 = por %p502, %p503
      %p506 = scmp.ne.s32.totalorder %s491, %s505
      %p507 = scmp.eq.s32.totalorder %s85, 0
      %p508 = por %p506, %p507
      %s510 = sadd.s32 %s509, 1
      %p513 = scmp.eq.s32.totalorder %s79, 3
      %p514 = scmp.ne.s32.totalorder %s509, %s511
      %p515 = scmp.eq.s32.totalorder %s79, 0
      %p516 = por %p514, %p515
      %p517 = scmp.ne.s32.totalorder %s509, %s511
      %p518 = scmp.eq.s32.totalorder %s84, 3
      %p519 = por %p517, %p518
      %p520 = scmp.ne.s32.totalorder %s511, %s512
      %p521 = scmp.eq.s32.totalorder %s84, 0
      %p522 = por %p520, %p521
      %p523 = scmp.ne.s32.totalorder %s511, %s512
      %p524 = scmp.eq.s32.totalorder %s85, 3
      %p525 = por %p523, %p524
      %p527 = scmp.ne.s32.totalorder %s512, %s526
      %p528 = scmp.eq.s32.totalorder %s85, 0
      %p529 = por %p527, %p528
      %s531 = sadd.s32 %s530, 1
      %p534 = scmp.eq.s32.totalorder %s79, 3
      %p535 = scmp.ne.s32.totalorder %s530, %s532
      %p536 = scmp.eq.s32.totalorder %s79, 0
      %p537 = por %p535, %p536
      %p538 = scmp.ne.s32.totalorder %s530, %s532
      %p539 = scmp.eq.s32.totalorder %s84, 3
      %p540 = por %p538, %p539
      %p541 = scmp.ne.s32.totalorder %s532, %s533
      %p542 = scmp.eq.s32.totalorder %s84, 0
      %p543 = por %p541, %p542
      %p544 = scmp.ne.s32.totalorder %s532, %s533
      %p545 = scmp.eq.s32.totalorder %s85, 3
      %p546 = por %p544, %p545
      %p548 = scmp.ne.s32.totalorder %s533, %s547
      %p549 = scmp.eq.s32.totalorder %s85, 0
      %p550 = por %p548, %p549
      %s552 = sadd.s32 %s551, 1
      %p555 = scmp.eq.s32.totalorder %s79, 3
      %p556 = scmp.ne.s32.totalorder %s551, %s553
      %p557 = scmp.eq.s32.totalorder %s79, 0
      %p558 = por %p556, %p557
      %p559 = scmp.ne.s32.totalorder %s551, %s553
      %p560 = scmp.eq.s32.totalorder %s84, 3
      %p561 = por %p559, %p560
      %p562 = scmp.ne.s32.totalorder %s553, %s554
      %p563 = scmp.eq.s32.totalorder %s84, 0
      %p564 = por %p562, %p563
      %p565 = scmp.ne.s32.totalorder %s553, %s554
      %p566 = scmp.eq.s32.totalorder %s85, 3
      %p567 = por %p565, %p566
      %p569 = scmp.ne.s32.totalorder %s554, %s568
      %p570 = scmp.eq.s32.totalorder %s85, 0
      %p571 = por %p569, %p570
      %s573 = sadd.s32 %s572, 1
      %p576 = scmp.eq.s32.totalorder %s79, 3
      %p577 = scmp.ne.s32.totalorder %s572, %s574
      %p578 = scmp.eq.s32.totalorder %s79, 0
      %p579 = por %p577, %p578
      %p580 = scmp.ne.s32.totalorder %s572, %s574
      %p581 = scmp.eq.s32.totalorder %s84, 3
      %p582 = por %p580, %p581
      %p583 = scmp.ne.s32.totalorder %s574, %s575
      %p584 = scmp.eq.s32.totalorder %s84, 0
      %p585 = por %p583, %p584
      %p586 = scmp.ne.s32.totalorder %s574, %s575
      %p587 = scmp.eq.s32.totalorder %s85, 3
      %p588 = por %p586, %p587
      %p590 = scmp.ne.s32.totalorder %s575, %s589
      %p591 = scmp.eq.s32.totalorder %s85, 0
      %p592 = por %p590, %p591
      %s594 = sadd.s32 %s593, 1
      %p597 = scmp.eq.s32.totalorder %s79, 3
      %p598 = scmp.ne.s32.totalorder %s593, %s595
      %p599 = scmp.eq.s32.totalorder %s79, 0
      %p600 = por %p598, %p599
      %p601 = scmp.ne.s32.totalorder %s593, %s595
      %p602 = scmp.eq.s32.totalorder %s84, 3
      %p603 = por %p601, %p602
      %p604 = scmp.ne.s32.totalorder %s595, %s596
      %p605 = scmp.eq.s32.totalorder %s84, 0
      %p606 = por %p604, %p605
      %p607 = scmp.ne.s32.totalorder %s595, %s596
      %p608 = scmp.eq.s32.totalorder %s85, 3
      %p609 = por %p607, %p608
      %p611 = scmp.ne.s32.totalorder %s596, %s610
      %p612 = scmp.eq.s32.totalorder %s85, 0
      %p613 = por %p611, %p612
      %s615 = sadd.s32 %s614, 1
      %p618 = scmp.eq.s32.totalorder %s79, 3
      %p619 = scmp.ne.s32.totalorder %s614, %s616
      %p620 = scmp.eq.s32.totalorder %s79, 0
      %p621 = por %p619, %p620
      %p622 = scmp.ne.s32.totalorder %s614, %s616
      %p623 = scmp.eq.s32.totalorder %s84, 3
      %p624 = por %p622, %p623
      %p625 = scmp.ne.s32.totalorder %s616, %s617
      %p626 = scmp.eq.s32.totalorder %s84, 0
      %p627 = por %p625, %p626
      %p628 = scmp.ne.s32.totalorder %s616, %s617
      %p629 = scmp.eq.s32.totalorder %s85, 3
      %p630 = por %p628, %p629
      %p632 = scmp.ne.s32.totalorder %s617, %s631
      %p633 = scmp.eq.s32.totalorder %s85, 0
      %p634 = por %p632, %p633
      %s636 = sadd.s32 %s635, 1
      %p639 = scmp.eq.s32.totalorder %s79, 3
      %p640 = scmp.ne.s32.totalorder %s635, %s637
      %p641 = scmp.eq.s32.totalorder %s79, 0
      %p642 = por %p640, %p641
      %p643 = scmp.ne.s32.totalorder %s635, %s637
      %p644 = scmp.eq.s32.totalorder %s84, 3
      %p645 = por %p643, %p644
      %p646 = scmp.ne.s32.totalorder %s637, %s638
      %p647 = scmp.eq.s32.totalorder %s84, 0
      %p648 = por %p646, %p647
      %p649 = scmp.ne.s32.totalorder %s637, %s638
      %p650 = scmp.eq.s32.totalorder %s85, 3
      %p651 = por %p649, %p650
      %p653 = scmp.ne.s32.totalorder %s638, %s652
      %p654 = scmp.eq.s32.totalorder %s85, 0
      %p655 = por %p653, %p654
      %s657 = sadd.s32 %s656, 1
      %p660 = scmp.eq.s32.totalorder %s79, 3
      %p661 = scmp.ne.s32.totalorder %s656, %s658
      %p662 = scmp.eq.s32.totalorder %s79, 0
      %p663 = por %p661, %p662
      %p664 = scmp.ne.s32.totalorder %s656, %s658
      %p665 = scmp.eq.s32.totalorder %s84, 3
      %p666 = por %p664, %p665
      %p667 = scmp.ne.s32.totalorder %s658, %s659
      %p668 = scmp.eq.s32.totalorder %s84, 0
      %p669 = por %p667, %p668
      %p670 = scmp.ne.s32.totalorder %s658, %s659
      %p671 = scmp.eq.s32.totalorder %s85, 3
      %p672 = por %p670, %p671
      %p674 = scmp.ne.s32.totalorder %s659, %s673
      %p675 = scmp.eq.s32.totalorder %s85, 0
      %p676 = por %p674, %p675
      %s678 = sadd.s32 %s677, 1
      %p681 = scmp.eq.s32.totalorder %s79, 3
      %p682 = scmp.ne.s32.totalorder %s677, %s679
      %p683 = scmp.eq.s32.totalorder %s79, 0
      %p684 = por %p682, %p683
      %p685 = scmp.ne.s32.totalorder %s677, %s679
      %p686 = scmp.eq.s32.totalorder %s84, 3
      %p687 = por %p685, %p686
      %p688 = scmp.ne.s32.totalorder %s679, %s680
      %p689 = scmp.eq.s32.totalorder %s84, 0
      %p690 = por %p688, %p689
      %p691 = scmp.ne.s32.totalorder %s679, %s680
      %p692 = scmp.eq.s32.totalorder %s85, 3
      %p693 = por %p691, %p692
      %p695 = scmp.ne.s32.totalorder %s680, %s694
      %p696 = scmp.eq.s32.totalorder %s85, 0
      %p697 = por %p695, %p696
      %s699 = sadd.s32 %s698, 1
      %p702 = scmp.eq.s32.totalorder %s79, 3
      %p703 = scmp.ne.s32.totalorder %s698, %s700
      %p704 = scmp.eq.s32.totalorder %s79, 0
      %p705 = por %p703, %p704
      %p706 = scmp.ne.s32.totalorder %s698, %s700
      %p707 = scmp.eq.s32.totalorder %s84, 3
      %p708 = por %p706, %p707
      %p709 = scmp.ne.s32.totalorder %s700, %s701
      %p710 = scmp.eq.s32.totalorder %s84, 0
      %p711 = por %p709, %p710
      %p712 = scmp.ne.s32.totalorder %s700, %s701
      %p713 = scmp.eq.s32.totalorder %s85, 3
      %p714 = por %p712, %p713
      %p716 = scmp.ne.s32.totalorder %s701, %s715
      %p717 = scmp.eq.s32.totalorder %s85, 0
      %p718 = por %p716, %p717
      %s719 = ssub.s32 %s86, %s98
      %s720 = ssub.s32 %s87, %s94
      %s721 = sor.u32 %s719, %s720
      %p722 = scmp.eq.s32.totalorder %s721, 0
      %s724 = sadd.s32 %s723, 1
      %s725 = scalar_select %p722, %s723, %s724
      %p728 = pneg %p722
      %p729 = scmp.eq.s32.totalorder %s79, 3
      %p730 = por %p728, %p729
      %p731 = scmp.ne.s32.totalorder %s723, %s726
      %p732 = scmp.eq.s32.totalorder %s79, 0
      %p733 = por %p731, %p732
      %p734 = scmp.ne.s32.totalorder %s723, %s726
      %p735 = scmp.eq.s32.totalorder %s84, 3
      %p736 = por %p734, %p735
      %p737 = scmp.ne.s32.totalorder %s726, %s727
      %p738 = scmp.eq.s32.totalorder %s84, 0
      %p739 = por %p737, %p738
      %p740 = scmp.ne.s32.totalorder %s726, %s727
      %p741 = scmp.eq.s32.totalorder %s85, 3
      %p742 = por %p740, %p741
      %p744 = scmp.ne.s32.totalorder %s727, %s743
      %p745 = scmp.eq.s32.totalorder %s85, 0
      %p746 = por %p744, %p745
      %s747 = ssub.s32 %s86, %s98
      %s748 = ssub.s32 %s87, %s94
      %s749 = sor.u32 %s747, %s748
      %p750 = scmp.eq.s32.totalorder %s749, 0
      %s752 = sadd.s32 %s751, 1
      %s753 = scalar_select %p750, %s751, %s752
      %p756 = pneg %p750
      %p757 = scmp.eq.s32.totalorder %s79, 3
      %p758 = por %p756, %p757
      %p759 = scmp.ne.s32.totalorder %s751, %s754
      %p760 = scmp.eq.s32.totalorder %s79, 0
      %p761 = por %p759, %p760
      %p762 = scmp.ne.s32.totalorder %s751, %s754
      %p763 = scmp.eq.s32.totalorder %s84, 3
      %p764 = por %p762, %p763
      %p765 = scmp.ne.s32.totalorder %s754, %s755
      %p766 = scmp.eq.s32.totalorder %s84, 0
      %p767 = por %p765, %p766
      %p768 = scmp.ne.s32.totalorder %s754, %s755
      %p769 = scmp.eq.s32.totalorder %s85, 3
      %p770 = por %p768, %p769
      %p772 = scmp.ne.s32.totalorder %s755, %s771
      %p773 = scmp.eq.s32.totalorder %s85, 0
      %p774 = por %p772, %p773
      %p775 = scmp.le.s32.totalorder 1, %s79
      %p776 = scmp.lt.s32.totalorder %s79, 5
      %p777 = pnand %p775, %p776
      %p778 = pneg %p777
      // Predicated region
      $region9: #{tpu_custom_call.1} parent=5 // pred_check
        _
      $region10: #{tpu_custom_call.1} parent=5 // pred_check_branch
        %780 = sbr.rel (%p777) target = $region12
      $region11: #{tpu_custom_call.1} parent=5 // pred_region
        %s781 = ssub.s32 %s79, 1
        // Predicated region
        $region13: #{tpu_custom_call.1} parent=11 // pred_check
          %p782 = pneg %p270
        $region14: #{tpu_custom_call.1} parent=11 // pred_check_branch
          %784 = sbr.rel (%p782) target = $region16
        $region15: #{tpu_custom_call.1} parent=11 // pred_region
          %786 = vsyncadd [#allocation12], 0
          %s787 = sshll.u32 %s13, 4
          %s788 = int_to_ptr.hbm [resolvable:$true] %s787
          %s789 = sshll.u32 [#allocation13], 4
          %s790 = int_to_ptr.vmem [resolvable:$true] %s789
          %795 = dma.hbm_to_vmem [thread:$0]  %s788, 1024, %s790, [#allocation12], 64, 64, 4
        $region16: #{tpu_custom_call.1} parent=11 // pred_fallthru
          _
        // Predicated region
        $region17: #{tpu_custom_call.1} parent=11 // pred_check
          %p796 = pneg %p291
        $region18: #{tpu_custom_call.1} parent=11 // pred_check_branch
          %798 = sbr.rel (%p796) target = $region20
        $region19: #{tpu_custom_call.1} parent=11 // pred_region
          %800 = vsyncadd [#allocation15], 0
          %s802 = sshll.u32 %s15, 4
          %s803 = int_to_ptr.hbm [resolvable:$true] %s802
          %s804 = sshll.u32 [#allocation14], 4
          %s805 = int_to_ptr.vmem [resolvable:$true] %s804
          %807 = dma.hbm_to_vmem [thread:$0]  %s803, 16, %s805, [#allocation15]
        $region20: #{tpu_custom_call.1} parent=11 // pred_fallthru
          _
        // Predicated region
        $region21: #{tpu_custom_call.1} parent=11 // pred_check
          %p808 = pneg %p312
        $region22: #{tpu_custom_call.1} parent=11 // pred_check_branch
          %810 = sbr.rel (%p808) target = $region24
        $region23: #{tpu_custom_call.1} parent=11 // pred_region
          %812 = vsyncadd [#allocation15], 0
          %s813 = sshll.u32 %s17, 4
          %s814 = int_to_ptr.hbm [resolvable:$true] %s813
          %s815 = sshll.u32 [#allocation16], 4
          %s816 = int_to_ptr.vmem [resolvable:$true] %s815
          %821 = dma.hbm_to_vmem [thread:$0]  %s814, 2048, %s816, [#allocation15], 128, 128, 8
        $region24: #{tpu_custom_call.1} parent=11 // pred_fallthru
          _
        // Predicated region
        $region25: #{tpu_custom_call.1} parent=11 // pred_check
          %p822 = pneg %p333
        $region26: #{tpu_custom_call.1} parent=11 // pred_check_branch
          %824 = sbr.rel (%p822) target = $region28
        $region27: #{tpu_custom_call.1} parent=11 // pred_region
          _
        $region28: #{tpu_custom_call.1} parent=11 // pred_fallthru
          _
        // Predicated region
        $region29: #{tpu_custom_call.1} parent=11 // pred_check
          %p825 = pneg %p354
        $region30: #{tpu_custom_call.1} parent=11 // pred_check_branch
          %827 = sbr.rel (%p825) target = $region32
        $region31: #{tpu_custom_call.1} parent=11 // pred_region
          %829 = vsyncadd [#allocation18], 0
          %s830 = sshll.u32 %s21, 4
          %s831 = int_to_ptr.hbm [resolvable:$true] %s830
          %s832 = sshll.u32 [#allocation17], 4
          %s833 = int_to_ptr.vmem [resolvable:$true] %s832
          %838 = dma.hbm_to_vmem [thread:$0]  %s831, 1024, %s833, [#allocation18], 64, 64, 4
        $region32: #{tpu_custom_call.1} parent=11 // pred_fallthru
          _
        // Predicated region
        $region33: #{tpu_custom_call.1} parent=11 // pred_check
          %p839 = pneg %p375
        $region34: #{tpu_custom_call.1} parent=11 // pred_check_branch
          %841 = sbr.rel (%p839) target = $region36
        $region35: #{tpu_custom_call.1} parent=11 // pred_region
          _
        $region36: #{tpu_custom_call.1} parent=11 // pred_fallthru
          _
        // Predicated region
        $region37: #{tpu_custom_call.1} parent=11 // pred_check
          %p842 = pneg %p396
        $region38: #{tpu_custom_call.1} parent=11 // pred_check_branch
          %844 = sbr.rel (%p842) target = $region40
        $region39: #{tpu_custom_call.1} parent=11 // pred_region
          %846 = vsyncadd [#allocation18], 0
          %s847 = sshll.u32 %s25, 4
          %s848 = int_to_ptr.hbm [resolvable:$true] %s847
          %s849 = sshll.u32 [#allocation19], 4
          %s850 = int_to_ptr.vmem [resolvable:$true] %s849
          %855 = dma.hbm_to_vmem [thread:$0]  %s848, 1024, %s850, [#allocation18], 64, 64, 4
        $region40: #{tpu_custom_call.1} parent=11 // pred_fallthru
          _
        // Predicated region
        $region41: #{tpu_custom_call.1} parent=11 // pred_check
          %p856 = pneg %p417
        $region42: #{tpu_custom_call.1} parent=11 // pred_check_branch
          %858 = sbr.rel (%p856) target = $region44
        $region43: #{tpu_custom_call.1} parent=11 // pred_region
          _
        $region44: #{tpu_custom_call.1} parent=11 // pred_fallthru
          _
        // Predicated region
        $region45: #{tpu_custom_call.1} parent=11 // pred_check
          %p859 = pneg %p438
        $region46: #{tpu_custom_call.1} parent=11 // pred_check_branch
          %861 = sbr.rel (%p859) target = $region48
        $region47: #{tpu_custom_call.1} parent=11 // pred_region
          %863 = vsyncadd [#allocation21], 0
          %s864 = sshll.u32 %s29, 4
          %s865 = int_to_ptr.hbm [resolvable:$true] %s864
          %s866 = sshll.u32 [#allocation20], 4
          %s867 = int_to_ptr.vmem [resolvable:$true] %s866
          %872 = dma.hbm_to_vmem [thread:$0]  %s865, 2048, %s867, [#allocation21], 128, 128, 8
        $region48: #{tpu_custom_call.1} parent=11 // pred_fallthru
          _
        // Predicated region
        $region49: #{tpu_custom_call.1} parent=11 // pred_check
          %p873 = pneg %p459
        $region50: #{tpu_custom_call.1} parent=11 // pred_check_branch
          %875 = sbr.rel (%p873) target = $region52
        $region51: #{tpu_custom_call.1} parent=11 // pred_region
          _
        $region52: #{tpu_custom_call.1} parent=11 // pred_fallthru
          _
        // Predicated region
        $region53: #{tpu_custom_call.1} parent=11 // pred_check
          %p876 = pneg %p480
        $region54: #{tpu_custom_call.1} parent=11 // pred_check_branch
          %878 = sbr.rel (%p876) target = $region56
        $region55: #{tpu_custom_call.1} parent=11 // pred_region
          %880 = vsyncadd [#allocation21], 0
          %s881 = sshll.u32 %s33, 4
          %s882 = int_to_ptr.hbm [resolvable:$true] %s881
          %s883 = sshll.u32 [#allocation22], 4
          %s884 = int_to_ptr.vmem [resolvable:$true] %s883
          %889 = dma.hbm_to_vmem [thread:$0]  %s882, 1024, %s884, [#allocation21], 64, 64, 4
        $region56: #{tpu_custom_call.1} parent=11 // pred_fallthru
          _
        // Predicated region
        $region57: #{tpu_custom_call.1} parent=11 // pred_check
          %p890 = pneg %p501
        $region58: #{tpu_custom_call.1} parent=11 // pred_check_branch
          %892 = sbr.rel (%p890) target = $region60
        $region59: #{tpu_custom_call.1} parent=11 // pred_region
          _
        $region60: #{tpu_custom_call.1} parent=11 // pred_fallthru
          _
        // Predicated region
        $region61: #{tpu_custom_call.1} parent=11 // pred_check
          %p893 = pneg %p522
        $region62: #{tpu_custom_call.1} parent=11 // pred_check_branch
          %895 = sbr.rel (%p893) target = $region64
        $region63: #{tpu_custom_call.1} parent=11 // pred_region
          _
        $region64: #{tpu_custom_call.1} parent=11 // pred_fallthru
          _
        // Predicated region
        $region65: #{tpu_custom_call.1} parent=11 // pred_check
          %p896 = pneg %p543
        $region66: #{tpu_custom_call.1} parent=11 // pred_check_branch
          %898 = sbr.rel (%p896) target = $region68
        $region67: #{tpu_custom_call.1} parent=11 // pred_region
          _
        $region68: #{tpu_custom_call.1} parent=11 // pred_fallthru
          _
        // Predicated region
        $region69: #{tpu_custom_call.1} parent=11 // pred_check
          %p899 = pneg %p564
        $region70: #{tpu_custom_call.1} parent=11 // pred_check_branch
          %901 = sbr.rel (%p899) target = $region72
        $region71: #{tpu_custom_call.1} parent=11 // pred_region
          _
        $region72: #{tpu_custom_call.1} parent=11 // pred_fallthru
          _
        // Predicated region
        $region73: #{tpu_custom_call.1} parent=11 // pred_check
          %p902 = pneg %p585
        $region74: #{tpu_custom_call.1} parent=11 // pred_check_branch
          %904 = sbr.rel (%p902) target = $region76
        $region75: #{tpu_custom_call.1} parent=11 // pred_region
          _
        $region76: #{tpu_custom_call.1} parent=11 // pred_fallthru
          _
        // Predicated region
        $region77: #{tpu_custom_call.1} parent=11 // pred_check
          %p905 = pneg %p606
        $region78: #{tpu_custom_call.1} parent=11 // pred_check_branch
          %907 = sbr.rel (%p905) target = $region80
        $region79: #{tpu_custom_call.1} parent=11 // pred_region
          _
        $region80: #{tpu_custom_call.1} parent=11 // pred_fallthru
          _
        // Predicated region
        $region81: #{tpu_custom_call.1} parent=11 // pred_check
          %p908 = pneg %p627
        $region82: #{tpu_custom_call.1} parent=11 // pred_check_branch
          %910 = sbr.rel (%p908) target = $region84
        $region83: #{tpu_custom_call.1} parent=11 // pred_region
          _
        $region84: #{tpu_custom_call.1} parent=11 // pred_fallthru
          _
        // Predicated region
        $region85: #{tpu_custom_call.1} parent=11 // pred_check
          %p911 = pneg %p648
        $region86: #{tpu_custom_call.1} parent=11 // pred_check_branch
          %913 = sbr.rel (%p911) target = $region88
        $region87: #{tpu_custom_call.1} parent=11 // pred_region
          %915 = vsyncadd [#allocation24], 0
          %s916 = sshll.u32 %s49, 4
          %s917 = int_to_ptr.hbm [resolvable:$true] %s916
          %s918 = sshll.u32 [#allocation23], 4
          %s919 = int_to_ptr.vmem [resolvable:$true] %s918
          %924 = dma.hbm_to_vmem [thread:$0]  %s917, 2048, %s919, [#allocation24], 128, 128, 8
        $region88: #{tpu_custom_call.1} parent=11 // pred_fallthru
          _
        // Predicated region
        $region89: #{tpu_custom_call.1} parent=11 // pred_check
          %p925 = pneg %p669
        $region90: #{tpu_custom_call.1} parent=11 // pred_check_branch
          %927 = sbr.rel (%p925) target = $region92
        $region91: #{tpu_custom_call.1} parent=11 // pred_region
          _
        $region92: #{tpu_custom_call.1} parent=11 // pred_fallthru
          _
        // Predicated region
        $region93: #{tpu_custom_call.1} parent=11 // pred_check
          %p928 = pneg %p690
        $region94: #{tpu_custom_call.1} parent=11 // pred_check_branch
          %930 = sbr.rel (%p928) target = $region96
        $region95: #{tpu_custom_call.1} parent=11 // pred_region
          %932 = vsyncadd [#allocation24], 0
          %s933 = sshll.u32 %s53, 4
          %s934 = int_to_ptr.hbm [resolvable:$true] %s933
          %s935 = sshll.u32 [#allocation25], 4
          %s936 = int_to_ptr.vmem [resolvable:$true] %s935
          %941 = dma.hbm_to_vmem [thread:$0]  %s934, 2048, %s936, [#allocation24], 64, 64, 4
        $region96: #{tpu_custom_call.1} parent=11 // pred_fallthru
          _
        // Predicated region
        $region97: #{tpu_custom_call.1} parent=11 // pred_check
          %p942 = pneg %p711
        $region98: #{tpu_custom_call.1} parent=11 // pred_check_branch
          %944 = sbr.rel (%p942) target = $region100
        $region99: #{tpu_custom_call.1} parent=11 // pred_region
          _
        $region100: #{tpu_custom_call.1} parent=11 // pred_fallthru
          _
      $region12: #{tpu_custom_call.1} parent=5 // pred_fallthru
        _
      %p945 = scmp.lt.s32.totalorder %s79, 4
      // Predicated region
      $region101: #{tpu_custom_call.1} parent=5 // pred_check
        %p946 = pneg %p945
      $region102: #{tpu_custom_call.1} parent=5 // pred_check_branch
        %948 = sbr.rel (%p946) target = $region104
      $region103: #{tpu_custom_call.1} parent=5 // pred_region
        // Predicated region
        $region105: #{tpu_custom_call.1} parent=103 // pred_check
          %p949 = pneg %p111
        $region106: #{tpu_custom_call.1} parent=103 // pred_check_branch
          %951 = sbr.rel (%p949) target = $region108
        $region107: #{tpu_custom_call.1} parent=103 // pred_region
          %p952 = scmp.lt.s32.totalorder %s86, 1
          %s953 = scalar_select %p952, %s86, 1
          %s954 = smul.addr %s953, 4
          %s955 = smul.addr %s954, 8
          %s956 = scalar_lea.vmem %s1, %s955
        $region108: #{tpu_custom_call.1} parent=103 // pred_fallthru
          _
        // Predicated region
        $region109: #{tpu_custom_call.1} parent=103 // pred_check
          %p957 = pneg %p137
        $region110: #{tpu_custom_call.1} parent=103 // pred_check_branch
          %959 = sbr.rel (%p957) target = $region112
        $region111: #{tpu_custom_call.1} parent=103 // pred_region
          %s960 = sand.u32 %s127, 1
          %s961 = scalar_lea.sflag [#allocation9], %s960
          %s962 = sand.u32 %s127, 1
          %s963 = smul.addr %s962, 24
          %s964 = scalar_lea.vmem [#allocation8], %s963
          %966 = vsyncadd %s961, 0
          %s967 = smul.addr %s86, 6
          %s968 = smul.addr %s967, 4
          %s969 = scalar_lea.hbm %s3, %s968
          %s970 = sshll.u32 %s969, 4
          %s971 = int_to_ptr.hbm [resolvable:$true] %s970
          %s972 = sshll.u32 %s964, 4
          %s973 = int_to_ptr.vmem [resolvable:$true] %s972
          %978 = dma.hbm_to_vmem [thread:$0]  %s971, 384, %s973, %s961, 64, 64, 4
        $region112: #{tpu_custom_call.1} parent=103 // pred_fallthru
          _
        // Predicated region
        $region113: #{tpu_custom_call.1} parent=103 // pred_check
          %p979 = pneg %p165
        $region114: #{tpu_custom_call.1} parent=103 // pred_check_branch
          %981 = sbr.rel (%p979) target = $region116
        $region115: #{tpu_custom_call.1} parent=103 // pred_region
          %s982 = sand.u32 %s79, 1
          %s983 = scalar_lea.sflag [#allocation12], %s982
          %s984 = sand.u32 %s155, 1
          %s985 = smul.addr %s984, 16
          %s986 = scalar_lea.vmem [#allocation11], %s985
          %s987 = smul.u32 2, %s87
          %989 = vsyncadd %s983, 0
          %s990 = smul.addr %s86, 4
          %s991 = sadd.s32 %s987, %s990
          %s992 = smul.addr %s991, 8
          %s993 = scalar_lea.hbm %s5, %s992
          %s994 = sshll.u32 %s993, 4
          %s995 = int_to_ptr.hbm [resolvable:$true] %s994
          %s996 = sshll.u32 %s986, 4
          %s997 = int_to_ptr.vmem [resolvable:$true] %s996
          %1002 = dma.hbm_to_vmem [thread:$0]  %s995, 256, %s997, %s983, 128, 128, 8
        $region116: #{tpu_custom_call.1} parent=103 // pred_fallthru
          _
        // Predicated region
        $region117: #{tpu_custom_call.1} parent=103 // pred_check
          %p1003 = pneg %p191
        $region118: #{tpu_custom_call.1} parent=103 // pred_check_branch
          %1005 = sbr.rel (%p1003) target = $region120
        $region119: #{tpu_custom_call.1} parent=103 // pred_region
          %p1006 = scmp.lt.s32.totalorder %s86, 1
          %s1007 = scalar_select %p1006, %s86, 1
          %s1008 = smul.addr %s1007, 4
          %s1009 = smul.addr %s1008, 8
          %s1010 = scalar_lea.vmem %s7, %s1009
        $region120: #{tpu_custom_call.1} parent=103 // pred_fallthru
          _
        // Predicated region
        $region121: #{tpu_custom_call.1} parent=103 // pred_check
          %p1011 = pneg %p217
        $region122: #{tpu_custom_call.1} parent=103 // pred_check_branch
          %1013 = sbr.rel (%p1011) target = $region124
        $region123: #{tpu_custom_call.1} parent=103 // pred_region
          %p1014 = scmp.lt.s32.totalorder %s86, 1
          %s1015 = scalar_select %p1014, %s86, 1
          %s1016 = scalar_lea.vmem %s9, %s1015
        $region124: #{tpu_custom_call.1} parent=103 // pred_fallthru
          _
        // Predicated region
        $region125: #{tpu_custom_call.1} parent=103 // pred_check
          %p1017 = pneg %p243
        $region126: #{tpu_custom_call.1} parent=103 // pred_check_branch
          %1019 = sbr.rel (%p1017) target = $region128
        $region127: #{tpu_custom_call.1} parent=103 // pred_region
          %p1020 = scmp.lt.s32.totalorder %s86, 1
          %s1021 = scalar_select %p1020, %s86, 1
          %s1022 = scalar_lea.vmem %s11, %s1021
        $region128: #{tpu_custom_call.1} parent=103 // pred_fallthru
          _
      $region104: #{tpu_custom_call.1} parent=5 // pred_fallthru
        _
      %p1023 = scmp.le.s32.totalorder 1, %s79
      %p1024 = scmp.lt.s32.totalorder %s79, 5
      %p1025 = pnand %p1023, %p1024
      %p1026 = pneg %p1025
      // Predicated region
      $region129: #{tpu_custom_call.1} parent=5 // pred_check
        _
      $region130: #{tpu_custom_call.1} parent=5 // pred_check_branch
        %1028 = sbr.rel (%p1025) target = $region132
      $region131: #{tpu_custom_call.1} parent=5 // pred_region
        %s1029 = ssub.s32 %s79, 1
        %s1030 = sand.u32 %s130, 1
        %s1031 = scalar_lea.sflag [#allocation9], %s1030
        %s1032 = sand.u32 %s130, 1
        %s1033 = smul.addr %s1032, 24
        %s1034 = scalar_lea.vmem [#allocation8], %s1033
        // Predicated region
        $region133: #{tpu_custom_call.1} parent=131 // pred_check
          %p1035 = pneg %p143
        $region134: #{tpu_custom_call.1} parent=131 // pred_check_branch
          %1037 = sbr.rel (%p1035) target = $region136
        $region135: #{tpu_custom_call.1} parent=131 // pred_region
          %1039 = dma.done %s1031, 384
        $region136: #{tpu_custom_call.1} parent=131 // pred_fallthru
          _
        %s1040 = sand.u32 %s84, 1
        %s1041 = scalar_lea.sflag [#allocation12], %s1040
        %s1042 = sand.u32 %s158, 1
        %s1043 = smul.addr %s1042, 16
        %s1044 = scalar_lea.vmem [#allocation11], %s1043
        // Predicated region
        $region137: #{tpu_custom_call.1} parent=131 // pred_check
          %p1045 = pneg %p171
        $region138: #{tpu_custom_call.1} parent=131 // pred_check_branch
          %1047 = sbr.rel (%p1045) target = $region140
        $region139: #{tpu_custom_call.1} parent=131 // pred_region
          %1049 = dma.done %s1041, 256
        $region140: #{tpu_custom_call.1} parent=131 // pred_fallthru
          _
        // Predicated region
        $region141: #{tpu_custom_call.1} parent=131 // pred_check
          %p1050 = pneg %p270
        $region142: #{tpu_custom_call.1} parent=131 // pred_check_branch
          %1052 = sbr.rel (%p1050) target = $region144
        $region143: #{tpu_custom_call.1} parent=131 // pred_region
          %1054 = dma.done [#allocation12], 1024
        $region144: #{tpu_custom_call.1} parent=131 // pred_fallthru
          _
        // Predicated region
        $region145: #{tpu_custom_call.1} parent=131 // pred_check
          %p1055 = pneg %p291
        $region146: #{tpu_custom_call.1} parent=131 // pred_check_branch
          %1057 = sbr.rel (%p1055) target = $region148
        $region147: #{tpu_custom_call.1} parent=131 // pred_region
          %1059 = dma.done [#allocation15], 16
        $region148: #{tpu_custom_call.1} parent=131 // pred_fallthru
          _
        // Predicated region
        $region149: #{tpu_custom_call.1} parent=131 // pred_check
          %p1060 = pneg %p312
        $region150: #{tpu_custom_call.1} parent=131 // pred_check_branch
          %1062 = sbr.rel (%p1060) target = $region152
        $region151: #{tpu_custom_call.1} parent=131 // pred_region
          %1064 = dma.done [#allocation15], 2048
        $region152: #{tpu_custom_call.1} parent=131 // pred_fallthru
          _
        // Predicated region
        $region153: #{tpu_custom_call.1} parent=131 // pred_check
          %p1065 = pneg %p354
        $region154: #{tpu_custom_call.1} parent=131 // pred_check_branch
          %1067 = sbr.rel (%p1065) target = $region156
        $region155: #{tpu_custom_call.1} parent=131 // pred_region
          %1069 = dma.done [#allocation18], 1024
        $region156: #{tpu_custom_call.1} parent=131 // pred_fallthru
          _
        // Predicated region
        $region157: #{tpu_custom_call.1} parent=131 // pred_check
          %p1070 = pneg %p396
        $region158: #{tpu_custom_call.1} parent=131 // pred_check_branch
          %1072 = sbr.rel (%p1070) target = $region160
        $region159: #{tpu_custom_call.1} parent=131 // pred_region
          %1074 = dma.done [#allocation18], 1024
        $region160: #{tpu_custom_call.1} parent=131 // pred_fallthru
          _
        // Predicated region
        $region161: #{tpu_custom_call.1} parent=131 // pred_check
          %p1075 = pneg %p438
        $region162: #{tpu_custom_call.1} parent=131 // pred_check_branch
          %1077 = sbr.rel (%p1075) target = $region164
        $region163: #{tpu_custom_call.1} parent=131 // pred_region
          %1079 = dma.done [#allocation21], 2048
        $region164: #{tpu_custom_call.1} parent=131 // pred_fallthru
          _
        // Predicated region
        $region165: #{tpu_custom_call.1} parent=131 // pred_check
          %p1080 = pneg %p480
        $region166: #{tpu_custom_call.1} parent=131 // pred_check_branch
          %1082 = sbr.rel (%p1080) target = $region168
        $region167: #{tpu_custom_call.1} parent=131 // pred_region
          %1084 = dma.done [#allocation21], 1024
        $region168: #{tpu_custom_call.1} parent=131 // pred_fallthru
          _
        // Predicated region
        $region169: #{tpu_custom_call.1} parent=131 // pred_check
          %p1085 = pneg %p648
        $region170: #{tpu_custom_call.1} parent=131 // pred_check_branch
          %1087 = sbr.rel (%p1085) target = $region172
        $region171: #{tpu_custom_call.1} parent=131 // pred_region
          %1089 = dma.done [#allocation24], 2048
        $region172: #{tpu_custom_call.1} parent=131 // pred_fallthru
          _
        // Predicated region
        $region173: #{tpu_custom_call.1} parent=131 // pred_check
          %p1090 = pneg %p690
        $region174: #{tpu_custom_call.1} parent=131 // pred_check_branch
          %1092 = sbr.rel (%p1090) target = $region176
        $region175: #{tpu_custom_call.1} parent=131 // pred_region
          %1094 = dma.done [#allocation24], 2048
        $region176: #{tpu_custom_call.1} parent=131 // pred_fallthru
          _
        %p1095 = scmp.lt.s32.totalorder %s88, 1
        %s1096 = scalar_select %p1095, %s88, 1
        %s1097 = smul.addr %s1096, 4
        %s1098 = smul.addr %s1097, 8
        %s1099 = scalar_lea.vmem %s1, %s1098
        %p1100 = pneg %p117
        %p1101 = pneg %p114
        %s1102 = sand.u32 %s130, 1
        %s1103 = scalar_lea.sflag [#allocation9], %s1102
        %s1104 = sand.u32 %s130, 1
        %s1105 = smul.addr %s1104, 24
        %s1106 = scalar_lea.vmem [#allocation8], %s1105
        %p1107 = pneg %p143
        %p1108 = pneg %p140
        %s1109 = sand.u32 %s84, 1
        %s1110 = scalar_lea.sflag [#allocation12], %s1109
        %s1111 = sand.u32 %s158, 1
        %s1112 = smul.addr %s1111, 16
        %s1113 = scalar_lea.vmem [#allocation11], %s1112
        %p1114 = pneg %p171
        %p1115 = pneg %p168
        %p1116 = scmp.lt.s32.totalorder %s88, 1
        %s1117 = scalar_select %p1116, %s88, 1
        %s1118 = smul.addr %s1117, 4
        %s1119 = smul.addr %s1118, 8
        %s1120 = scalar_lea.vmem %s7, %s1119
        %p1121 = pneg %p197
        %p1122 = pneg %p194
        %p1123 = scmp.lt.s32.totalorder %s88, 1
        %s1124 = scalar_select %p1123, %s88, 1
        %s1125 = scalar_lea.vmem %s9, %s1124
        %p1126 = pneg %p223
        %p1127 = pneg %p220
        %p1128 = scmp.lt.s32.totalorder %s88, 1
        %s1129 = scalar_select %p1128, %s88, 1
        %s1130 = scalar_lea.vmem %s11, %s1129
        %p1131 = pneg %p249
        %p1132 = pneg %p246
        %p1133 = pneg %p270
        %p1134 = pneg %p267
        %p1135 = pneg %p291
        %p1136 = pneg %p288
        %p1137 = pneg %p312
        %p1138 = pneg %p309
        %p1139 = pneg %p333
        %p1140 = pneg %p330
        %p1141 = pneg %p354
        %p1142 = pneg %p351
        %p1143 = pneg %p375
        %p1144 = pneg %p372
        %p1145 = pneg %p396
        %p1146 = pneg %p393
        %p1147 = pneg %p417
        %p1148 = pneg %p414
        %p1149 = pneg %p438
        %p1150 = pneg %p435
        %p1151 = pneg %p459
        %p1152 = pneg %p456
        %p1153 = pneg %p480
        %p1154 = pneg %p477
        %p1155 = pneg %p501
        %p1156 = pneg %p498
        %p1157 = pneg %p522
        %p1158 = pneg %p519
        %p1159 = pneg %p543
        %p1160 = pneg %p540
        %p1161 = pneg %p564
        %p1162 = pneg %p561
        %p1163 = pneg %p585
        %p1164 = pneg %p582
        %p1165 = pneg %p606
        %p1166 = pneg %p603
        %p1167 = pneg %p627
        %p1168 = pneg %p624
        %p1169 = pneg %p648
        %p1170 = pneg %p645
        %p1171 = pneg %p669
        %p1172 = pneg %p666
        %p1173 = pneg %p690
        %p1174 = pneg %p687
        %p1175 = pneg %p711
        %p1176 = pneg %p708
        %p1177 = pneg %p739
        %p1178 = pneg %p736
        %s1179 = sand.u32 %s726, 1
        %s1180 = scalar_lea.sflag [#allocation10], %s1179
        %s1181 = sand.u32 %s726, 1
        %s1182 = smul.addr %s1181, 16
        %s1183 = scalar_lea.vmem [#allocation26], %s1182
        %p1184 = pneg %p767
        %p1185 = pneg %p764
        %s1186 = smul.u32 2, %s89
        %p1187 = scmp.lt.s32.totalorder %s88, 1
        %s1188 = scalar_select %p1187, %s88, 1
        %p1189 = scmp.lt.s32.totalorder %s1186, 3
        %s1190 = scalar_select %p1189, %s1186, 3
        %s1191 = smul.addr %s1188, 4
        %s1192 = sadd.s32 %s1190, %s1191
        %s1193 = smul.addr %s1192, 8
        %s1194 = scalar_lea.vmem %s59, %s1193
        %p1195 = scmp.lt.s32.totalorder %s88, 1
        %s1196 = scalar_select %p1195, %s88, 1
        %s1197 = smul.addr %s1196, 4
        %s1198 = smul.addr %s1197, 8
        %s1199 = scalar_lea.vmem %s1, %s1198
        %s1200 = smul.u32 2, %s89
        %p1201 = scmp.lt.s32.totalorder %s88, 1
        %s1202 = scalar_select %p1201, %s88, 1
        %s1203 = smul.addr %s1202, 4
        %s1204 = smul.addr %s1203, 8
        %s1205 = scalar_lea.vmem %s7, %s1204
        %p1206 = scmp.lt.s32.totalorder %s88, 1
        %s1207 = scalar_select %p1206, %s88, 1
        %s1208 = scalar_lea.vmem %s9, %s1207
        %p1209 = scmp.lt.s32.totalorder %s88, 1
        %s1210 = scalar_select %p1209, %s88, 1
        %s1211 = scalar_lea.vmem %s11, %s1210
        %s1212 = smul.u32 2, %s89
        %s1213 = smul.u32 2, %s89
        %p1214 = scmp.lt.s32.totalorder %s88, 1
        %s1215 = scalar_select %p1214, %s88, 1
        %p1216 = scmp.lt.s32.totalorder %s1213, 3
        %s1217 = scalar_select %p1216, %s1213, 3
        %s1218 = smul.addr %s1215, 4
        %s1219 = sadd.s32 %s1217, %s1218
        %s1220 = smul.addr %s1219, 8
        %s1221 = scalar_lea.vmem %s59, %s1220
        %s1222 = smul.u32 2, %s89
        %p1224 = scmp.eq.s32.totalorder %s89, 0
        // Predicated region
        $region177: #{tpu_custom_call.1} parent=131 // pred_check
          %p1225 = pneg %p1224
        $region178: #{tpu_custom_call.1} parent=131 // pred_check_branch
          %1227 = sbr.rel (%p1225) target = $region180
        $region179: #{tpu_custom_call.1} parent=131 // pred_region
          %v1228 = vld [vmem:[%s1199] sm:$0xff]
          %v1229 = vld [vmem:[%s1199 + $0x8] sm:$0xff]
          %v1230 = vld [vmem:[%s1199 + $0x10] sm:$0xff]
          %v1231 = vld [vmem:[%s1199 + $0x18] sm:$0xff]
          %1232 = vadd.xlane.f32.xlu0 %v1228
          %v1233 = vpop.xlane.xlu0 %1232
          %1234 = vadd.xlane.f32.xlu0 %v1229
          %v1235 = vpop.xlane.xlu0 %1234
          %1236 = vadd.xlane.f32.xlu0 %v1230
          %v1237 = vpop.xlane.xlu0 %1236
          %1238 = vadd.xlane.f32.xlu0 %v1231
          %v1239 = vpop.xlane.xlu0 %1238
          %v1240 = vrcp.pop 128.0
          %v1241 = vmul.f32 128.0, %v1240
          %v1242 = vsub.f32 1.0, %v1241
          %v1243 = vmul.f32 %v1240, %v1242
          %v1244 = vadd.f32 %v1240, %v1243
          %vm1245 = vweird.f32 %v1240
          %v1246 = vsel %vm1245, %v1240, %v1244
          %v1247 = vmul.f32 %v1233, %v1246
          %v1248 = vmul.f32 %v1235, %v1246
          %v1249 = vmul.f32 %v1237, %v1246
          %v1250 = vmul.f32 %v1239, %v1246
          %v1251 = vsub.f32 %v1228, %v1247
          %v1252 = vsub.f32 %v1229, %v1248
          %v1253 = vsub.f32 %v1230, %v1249
          %v1254 = vsub.f32 %v1231, %v1250
          %v1255 = vmul.f32 %v1251, %v1251
          %v1256 = vmul.f32 %v1252, %v1252
          %v1257 = vmul.f32 %v1253, %v1253
          %v1258 = vmul.f32 %v1254, %v1254
          %1259 = vadd.xlane.f32.xlu0 %v1255
          %v1260 = vpop.xlane.xlu0 %1259
          %1261 = vadd.xlane.f32.xlu0 %v1256
          %v1262 = vpop.xlane.xlu0 %1261
          %1263 = vadd.xlane.f32.xlu0 %v1257
          %v1264 = vpop.xlane.xlu0 %1263
          %1265 = vadd.xlane.f32.xlu0 %v1258
          %v1266 = vpop.xlane.xlu0 %1265
          %v1267 = vmul.f32 %v1260, %v1246
          %v1268 = vmul.f32 %v1262, %v1246
          %v1269 = vmul.f32 %v1264, %v1246
          %v1270 = vmul.f32 %v1266, %v1246
          %v1271 = vadd.f32 %v1267, 1e-05
          %v1272 = vadd.f32 %v1268, 1e-05
          %v1273 = vadd.f32 %v1269, 1e-05
          %v1274 = vadd.f32 %v1270, 1e-05
          %v1275 = vrsqrt.pop %v1271
          %v1276 = vmul.f32 %v1275, %v1271
          %v1277 = vmul.f32 %v1276, %v1275
          %v1278 = vmul.f32 0.5, %v1277
          %v1279 = vsub.f32 1.5, %v1278
          %v1280 = vmul.f32 %v1275, %v1279
          %vm1281 = vweird.f32 %v1271
          %vm1282 = vweird.f32 %v1275
          %vm1283 = vmor %vm1281, %vm1282
          %v1284 = vsel %vm1283, %v1275, %v1280
          %v1285 = vrsqrt.pop %v1272
          %v1286 = vmul.f32 %v1285, %v1272
          %v1287 = vmul.f32 %v1286, %v1285
          %v1288 = vmul.f32 0.5, %v1287
          %v1289 = vsub.f32 1.5, %v1288
          %v1290 = vmul.f32 %v1285, %v1289
          %vm1291 = vweird.f32 %v1272
          %vm1292 = vweird.f32 %v1285
          %vm1293 = vmor %vm1291, %vm1292
          %v1294 = vsel %vm1293, %v1285, %v1290
          %v1295 = vrsqrt.pop %v1273
          %v1296 = vmul.f32 %v1295, %v1273
          %v1297 = vmul.f32 %v1296, %v1295
          %v1298 = vmul.f32 0.5, %v1297
          %v1299 = vsub.f32 1.5, %v1298
          %v1300 = vmul.f32 %v1295, %v1299
          %vm1301 = vweird.f32 %v1273
          %vm1302 = vweird.f32 %v1295
          %vm1303 = vmor %vm1301, %vm1302
          %v1304 = vsel %vm1303, %v1295, %v1300
          %v1305 = vrsqrt.pop %v1274
          %v1306 = vmul.f32 %v1305, %v1274
          %v1307 = vmul.f32 %v1306, %v1305
          %v1308 = vmul.f32 0.5, %v1307
          %v1309 = vsub.f32 1.5, %v1308
          %v1310 = vmul.f32 %v1305, %v1309
          %vm1311 = vweird.f32 %v1274
          %vm1312 = vweird.f32 %v1305
          %vm1313 = vmor %vm1311, %vm1312
          %v1314 = vsel %vm1313, %v1305, %v1310
          %v1315 = vmul.f32 %v1251, %v1284
          %v1316 = vmul.f32 %v1252, %v1294
          %v1317 = vmul.f32 %v1253, %v1304
          %v1318 = vmul.f32 %v1254, %v1314
          %v1319 = vld [vmem:[%s37] sm:$0x1]
          %v1321 = vperm.slane %v1319, 0
          %v1323 = vmul.f32 %v1315, %v1321
          %v1324 = vmul.f32 %v1316, %v1321
          %v1325 = vmul.f32 %v1317, %v1321
          %v1326 = vmul.f32 %v1318, %v1321
          %v1327 = vld [vmem:[%s39] sm:$0x1]
          %v1329 = vperm.slane %v1327, 0
          %v1331 = vadd.f32 %v1323, %v1329
          %v1332 = vadd.f32 %v1324, %v1329
          %v1333 = vadd.f32 %v1325, %v1329
          %v1334 = vadd.f32 %v1326, %v1329
          %v1335 = vld [vmem:[%s1205] sm:$0xff]
          %v1336 = vld [vmem:[%s1205 + $0x8] sm:$0xff]
          %v1337 = vld [vmem:[%s1205 + $0x10] sm:$0xff]
          %v1338 = vld [vmem:[%s1205 + $0x18] sm:$0xff]
          %1340 = vset.pattern.permute.xlu0 0
          %1341 = vperm.xlu0 %1340, %v1335
          %v1342 = vpop.permute.xlu0 %1341
          %1345 = vset.pattern.permute.xlu0 0
          %1346 = vperm.xlu0 %1345, %v1336
          %v1347 = vpop.permute.xlu0 %1346
          %1350 = vset.pattern.permute.xlu0 0
          %1351 = vperm.xlu0 %1350, %v1337
          %v1352 = vpop.permute.xlu0 %1351
          %1355 = vset.pattern.permute.xlu0 0
          %1356 = vperm.xlu0 %1355, %v1338
          %v1357 = vpop.permute.xlu0 %1356
          %v1359 = vmul.f32 %v1331, %v1342
          %v1360 = vmul.f32 %v1332, %v1347
          %v1361 = vmul.f32 %v1333, %v1352
          %v1362 = vmul.f32 %v1334, %v1357
          %v1363 = vpack.c.bf16 %v1360, %v1359
          %v1364 = vpack.c.bf16 %v1362, %v1361
          %v1365 = vld [vmem:[#allocation16] sm:$0xff]
          %v1366 = vld [vmem:[#allocation16 + $0x8] sm:$0xff]
          %v1367 = vld [vmem:[#allocation16 + $0x10] sm:$0xff]
          %v1368 = vld [vmem:[#allocation16 + $0x18] sm:$0xff]
          %v1369 = vld [vmem:[#allocation16 + $0x20] sm:$0xff]
          %v1370 = vld [vmem:[#allocation16 + $0x28] sm:$0xff]
          %v1371 = vld [vmem:[#allocation16 + $0x30] sm:$0xff]
          %v1372 = vld [vmem:[#allocation16 + $0x38] sm:$0xff]
          %v1373 = vld [vmem:[#allocation16 + $0x40] sm:$0xff]
          %v1374 = vld [vmem:[#allocation16 + $0x48] sm:$0xff]
          %v1375 = vld [vmem:[#allocation16 + $0x50] sm:$0xff]
          %v1376 = vld [vmem:[#allocation16 + $0x58] sm:$0xff]
          %v1377 = vld [vmem:[#allocation16 + $0x60] sm:$0xff]
          %v1378 = vld [vmem:[#allocation16 + $0x68] sm:$0xff]
          %v1379 = vld [vmem:[#allocation16 + $0x70] sm:$0xff]
          %v1380 = vld [vmem:[#allocation16 + $0x78] sm:$0xff]
          %v1381 = vld [vmem:[%s19] sm:$0x3]
          %v1383 = vperm.slane %v1381, 0
          %v1384 = vperm.slane %v1381, 1
          %v1403 = vunpack.c.l.b16 %v1365
          %v1404 = vunpack.c.h.b16 %v1365
          %v1405 = vunpack.c.l.b16 %v1366
          %v1406 = vunpack.c.h.b16 %v1366
          %v1407 = vunpack.c.l.b16 %v1367
          %v1408 = vunpack.c.h.b16 %v1367
          %v1409 = vunpack.c.l.b16 %v1368
          %v1410 = vunpack.c.h.b16 %v1368
          %v1411 = vunpack.c.l.b16 %v1369
          %v1412 = vunpack.c.h.b16 %v1369
          %v1413 = vunpack.c.l.b16 %v1370
          %v1414 = vunpack.c.h.b16 %v1370
          %v1415 = vunpack.c.l.b16 %v1371
          %v1416 = vunpack.c.h.b16 %v1371
          %v1417 = vunpack.c.l.b16 %v1372
          %v1418 = vunpack.c.h.b16 %v1372
          %v1419 = vunpack.c.l.b16 %v1373
          %v1420 = vunpack.c.h.b16 %v1373
          %v1421 = vunpack.c.l.b16 %v1374
          %v1422 = vunpack.c.h.b16 %v1374
          %v1423 = vunpack.c.l.b16 %v1375
          %v1424 = vunpack.c.h.b16 %v1375
          %v1425 = vunpack.c.l.b16 %v1376
          %v1426 = vunpack.c.h.b16 %v1376
          %v1427 = vunpack.c.l.b16 %v1377
          %v1428 = vunpack.c.h.b16 %v1377
          %v1429 = vunpack.c.l.b16 %v1378
          %v1430 = vunpack.c.h.b16 %v1378
          %v1431 = vunpack.c.l.b16 %v1379
          %v1432 = vunpack.c.h.b16 %v1379
          %v1433 = vunpack.c.l.b16 %v1380
          %v1434 = vunpack.c.h.b16 %v1380
          %v1435 = vpack.c.b16 %v1405, %v1403
          %v1436 = vpack.c.b16 %v1406, %v1404
          %v1437 = vpack.c.b16 %v1409, %v1407
          %v1438 = vpack.c.b16 %v1410, %v1408
          %v1439 = vpack.c.b16 %v1413, %v1411
          %v1440 = vpack.c.b16 %v1414, %v1412
          %v1441 = vpack.c.b16 %v1417, %v1415
          %v1442 = vpack.c.b16 %v1418, %v1416
          %v1443 = vpack.c.b16 %v1421, %v1419
          %v1444 = vpack.c.b16 %v1422, %v1420
          %v1445 = vpack.c.b16 %v1425, %v1423
          %v1446 = vpack.c.b16 %v1426, %v1424
          %v1447 = vpack.c.b16 %v1429, %v1427
          %v1448 = vpack.c.b16 %v1430, %v1428
          %v1449 = vpack.c.b16 %v1433, %v1431
          %v1450 = vpack.c.b16 %v1434, %v1432
          %1467 = vmatpush.bf16.msra.mxu0 %v1449
          %1468 = vmatpush.bf16.msra.mxu0 %v1447
          %1469 = vmatpush.bf16.msra.mxu0 %v1445
          %1470 = vmatpush.bf16.msra.mxu0 %v1443
          %1471 = vmatpush.bf16.msra.mxu0 %v1441
          %1472 = vmatpush.bf16.msra.mxu0 %v1439
          %1473 = vmatpush.bf16.msra.mxu0 %v1437
          %1474 = vmatpush.bf16.msra.mxu0 %v1435
          %1475 = vmatmul.bf16.gmra.mxu0 %v1363
          %v1476 = vpop.f32.mrf.mxu0
          %v1477 = vadd.f32 %v1383, %v1476
          %v1478 = vpop.f32.mrf.mxu0
          %v1479 = vadd.f32 %v1383, %v1478
          %1480 = vmatmul.bf16.gmra.mxu0 %v1364
          %v1481 = vpop.f32.mrf.mxu0
          %v1482 = vadd.f32 %v1383, %v1481
          %v1483 = vpop.f32.mrf.mxu0
          %v1484 = vadd.f32 %v1383, %v1483
          %1485 = vdwg.mxu0
          %1486 = vmatpush.bf16.msra.mxu0 %v1450
          %1487 = vmatpush.bf16.msra.mxu0 %v1448
          %1488 = vmatpush.bf16.msra.mxu0 %v1446
          %1489 = vmatpush.bf16.msra.mxu0 %v1444
          %1490 = vmatpush.bf16.msra.mxu0 %v1442
          %1491 = vmatpush.bf16.msra.mxu0 %v1440
          %1492 = vmatpush.bf16.msra.mxu0 %v1438
          %1493 = vmatpush.bf16.msra.mxu0 %v1436
          %1494 = vmatmul.bf16.gmra.mxu0 %v1363
          %v1495 = vpop.f32.mrf.mxu0
          %v1496 = vadd.f32 %v1384, %v1495
          %v1497 = vpop.f32.mrf.mxu0
          %v1498 = vadd.f32 %v1384, %v1497
          %1499 = vmatmul.bf16.gmra.mxu0 %v1364
          %v1500 = vpop.f32.mrf.mxu0
          %v1501 = vadd.f32 %v1384, %v1500
          %v1502 = vpop.f32.mrf.mxu0
          %v1503 = vadd.f32 %v1384, %v1502
          %1504 = vdwg.mxu0
          %v1505 = vld [vmem:[%s1034] sm:$0xf]
          %v1506 = vld [vmem:[%s1034 + $0x4] sm:$0xf]
          %v1507 = vld [vmem:[%s1034 + $0x8] sm:$0xf]
          %v1508 = vld [vmem:[%s1034 + $0xc] sm:$0xf]
          %v1509 = vld [vmem:[%s1034 + $0x10] sm:$0xf]
          %v1510 = vld [vmem:[%s1034 + $0x14] sm:$0xf]
          %v1511 = vld [vmem:[#allocation20] sm:$0xff]
          %v1512 = vld [vmem:[#allocation20 + $0x8] sm:$0xff]
          %v1513 = vld [vmem:[#allocation20 + $0x10] sm:$0xff]
          %v1514 = vld [vmem:[#allocation20 + $0x18] sm:$0xff]
          %v1515 = vld [vmem:[#allocation20 + $0x20] sm:$0xff]
          %v1516 = vld [vmem:[#allocation20 + $0x28] sm:$0xff]
          %v1517 = vld [vmem:[#allocation20 + $0x30] sm:$0xff]
          %v1518 = vld [vmem:[#allocation20 + $0x38] sm:$0xff]
          %v1519 = vld [vmem:[#allocation20 + $0x40] sm:$0xff]
          %v1520 = vld [vmem:[#allocation20 + $0x48] sm:$0xff]
          %v1521 = vld [vmem:[#allocation20 + $0x50] sm:$0xff]
          %v1522 = vld [vmem:[#allocation20 + $0x58] sm:$0xff]
          %v1523 = vld [vmem:[#allocation20 + $0x60] sm:$0xff]
          %v1524 = vld [vmem:[#allocation20 + $0x68] sm:$0xff]
          %v1525 = vld [vmem:[#allocation20 + $0x70] sm:$0xff]
          %v1526 = vld [vmem:[#allocation20 + $0x78] sm:$0xff]
          %v1527 = vld [vmem:[%s31] sm:$0x3]
          %v1529 = vperm.slane %v1527, 0
          %v1530 = vperm.slane %v1527, 1
          %v1539 = vunpack.c.l.b16 %v1505
          %v1540 = vunpack.c.l.b16 %v1506
          %v1541 = vunpack.c.l.b16 %v1507
          %v1542 = vunpack.c.l.b16 %v1508
          %v1543 = vunpack.c.l.b16 %v1509
          %v1544 = vunpack.c.l.b16 %v1510
          %v1545 = vpack.c.b16 %v1540, %v1539
          %v1546 = vpack.c.b16 %v1542, %v1541
          %v1547 = vpack.c.b16 %v1544, %v1543
          %v1567 = vunpack.c.l.b16 %v1511
          %v1568 = vunpack.c.h.b16 %v1511
          %v1569 = vunpack.c.l.b16 %v1512
          %v1570 = vunpack.c.h.b16 %v1512
          %v1571 = vunpack.c.l.b16 %v1513
          %v1572 = vunpack.c.h.b16 %v1513
          %v1573 = vunpack.c.l.b16 %v1514
          %v1574 = vunpack.c.h.b16 %v1514
          %v1575 = vunpack.c.l.b16 %v1515
          %v1576 = vunpack.c.h.b16 %v1515
          %v1577 = vunpack.c.l.b16 %v1516
          %v1578 = vunpack.c.h.b16 %v1516
          %v1579 = vunpack.c.l.b16 %v1517
          %v1580 = vunpack.c.h.b16 %v1517
          %v1581 = vunpack.c.l.b16 %v1518
          %v1582 = vunpack.c.h.b16 %v1518
          %v1583 = vunpack.c.l.b16 %v1519
          %v1584 = vunpack.c.h.b16 %v1519
          %v1585 = vunpack.c.l.b16 %v1520
          %v1586 = vunpack.c.h.b16 %v1520
          %v1587 = vunpack.c.l.b16 %v1521
          %v1588 = vunpack.c.h.b16 %v1521
          %v1589 = vunpack.c.l.b16 %v1522
          %v1590 = vunpack.c.h.b16 %v1522
          %v1591 = vunpack.c.l.b16 %v1523
          %v1592 = vunpack.c.h.b16 %v1523
          %v1593 = vunpack.c.l.b16 %v1524
          %v1594 = vunpack.c.h.b16 %v1524
          %v1595 = vunpack.c.l.b16 %v1525
          %v1596 = vunpack.c.h.b16 %v1525
          %v1597 = vunpack.c.l.b16 %v1526
          %v1598 = vunpack.c.h.b16 %v1526
          %v1599 = vpack.c.b16 %v1569, %v1567
          %v1600 = vpack.c.b16 %v1570, %v1568
          %v1601 = vpack.c.b16 %v1573, %v1571
          %v1602 = vpack.c.b16 %v1574, %v1572
          %v1603 = vpack.c.b16 %v1577, %v1575
          %v1604 = vpack.c.b16 %v1578, %v1576
          %v1605 = vpack.c.b16 %v1581, %v1579
          %v1606 = vpack.c.b16 %v1582, %v1580
          %v1607 = vpack.c.b16 %v1585, %v1583
          %v1608 = vpack.c.b16 %v1586, %v1584
          %v1609 = vpack.c.b16 %v1589, %v1587
          %v1610 = vpack.c.b16 %v1590, %v1588
          %v1611 = vpack.c.b16 %v1593, %v1591
          %v1612 = vpack.c.b16 %v1594, %v1592
          %v1613 = vpack.c.b16 %v1597, %v1595
          %v1614 = vpack.c.b16 %v1598, %v1596
          %1631 = vmatpush.bf16.msra.mxu0 %v1613
          %1632 = vmatpush.bf16.msra.mxu0 %v1611
          %1633 = vmatpush.bf16.msra.mxu0 %v1609
          %1634 = vmatpush.bf16.msra.mxu0 %v1607
          %1635 = vmatpush.bf16.msra.mxu0 %v1605
          %1636 = vmatpush.bf16.msra.mxu0 %v1603
          %1637 = vmatpush.bf16.msra.mxu0 %v1601
          %1638 = vmatpush.bf16.msra.mxu0 %v1599
          %1639 = vmatmul.bf16.gmra.mxu0 %v1545
          %v1640 = vpop.f32.mrf.mxu0
          %v1641 = vadd.f32 %v1529, %v1640
          %v1642 = vpop.f32.mrf.mxu0
          %v1643 = vadd.f32 %v1529, %v1642
          %1644 = vmatmul.bf16.gmra.mxu0 %v1546
          %v1645 = vpop.f32.mrf.mxu0
          %v1646 = vadd.f32 %v1529, %v1645
          %v1647 = vpop.f32.mrf.mxu0
          %v1648 = vadd.f32 %v1529, %v1647
          %1649 = vmatmul.bf16.gmra.mxu0 %v1547
          %v1650 = vpop.f32.mrf.mxu0
          %v1651 = vadd.f32 %v1529, %v1650
          %v1652 = vpop.f32.mrf.mxu0
          %v1653 = vadd.f32 %v1529, %v1652
          %1654 = vdwg.mxu0
          %1655 = vmatpush.bf16.msra.mxu0 %v1614
          %1656 = vmatpush.bf16.msra.mxu0 %v1612
          %1657 = vmatpush.bf16.msra.mxu0 %v1610
          %1658 = vmatpush.bf16.msra.mxu0 %v1608
          %1659 = vmatpush.bf16.msra.mxu0 %v1606
          %1660 = vmatpush.bf16.msra.mxu0 %v1604
          %1661 = vmatpush.bf16.msra.mxu0 %v1602
          %1662 = vmatpush.bf16.msra.mxu0 %v1600
          %1663 = vmatmul.bf16.gmra.mxu0 %v1545
          %v1664 = vpop.f32.mrf.mxu0
          %v1665 = vadd.f32 %v1530, %v1664
          %v1666 = vpop.f32.mrf.mxu0
          %v1667 = vadd.f32 %v1530, %v1666
          %1668 = vmatmul.bf16.gmra.mxu0 %v1546
          %v1669 = vpop.f32.mrf.mxu0
          %v1670 = vadd.f32 %v1530, %v1669
          %v1671 = vpop.f32.mrf.mxu0
          %v1672 = vadd.f32 %v1530, %v1671
          %1673 = vmatmul.bf16.gmra.mxu0 %v1547
          %v1674 = vpop.f32.mrf.mxu0
          %v1675 = vadd.f32 %v1530, %v1674
          %v1676 = vpop.f32.mrf.mxu0
          %v1677 = vadd.f32 %v1530, %v1676
          %1678 = vdwg.mxu0
          %v1679 = vpack.c.bf16 %v1477, %v1477
          %v1680 = vpack.c.bf16 %v1479, %v1479
          %v1681 = vpack.c.bf16 %v1482, %v1482
          %v1682 = vpack.c.bf16 %v1484, %v1484
          %vm1683 = vcmask 257024
          %1684 = vst.msk [vmem:[#allocation2] sm:$0xf] %vm1683, %v1679
          %1685 = vst.msk [vmem:[#allocation2 + $0x4] sm:$0xf] %vm1683, %v1680
          %1686 = vst.msk [vmem:[#allocation2 + $0x8] sm:$0xf] %vm1683, %v1681
          %1687 = vst.msk [vmem:[#allocation2 + $0xc] sm:$0xf] %vm1683, %v1682
          %v1688 = vpack.c.bf16 %v1496, %v1496
          %v1689 = vpack.c.bf16 %v1498, %v1498
          %v1690 = vpack.c.bf16 %v1501, %v1501
          %v1691 = vpack.c.bf16 %v1503, %v1503
          %1692 = vst.msk [vmem:[#allocation3] sm:$0xf] %vm1683, %v1688
          %1693 = vst.msk [vmem:[#allocation3 + $0x4] sm:$0xf] %vm1683, %v1689
          %1694 = vst.msk [vmem:[#allocation3 + $0x8] sm:$0xf] %vm1683, %v1690
          %1695 = vst.msk [vmem:[#allocation3 + $0xc] sm:$0xf] %vm1683, %v1691
          %v1696 = vpack.c.bf16 %v1641, %v1641
          %v1697 = vpack.c.bf16 %v1643, %v1643
          %v1698 = vpack.c.bf16 %v1646, %v1646
          %v1699 = vpack.c.bf16 %v1648, %v1648
          %v1700 = vpack.c.bf16 %v1651, %v1651
          %v1701 = vpack.c.bf16 %v1653, %v1653
          %1702 = vst.msk [vmem:[#allocation4] sm:$0xf] %vm1683, %v1696
          %1703 = vst.msk [vmem:[#allocation4 + $0x4] sm:$0xf] %vm1683, %v1697
          %1704 = vst.msk [vmem:[#allocation4 + $0x8] sm:$0xf] %vm1683, %v1698
          %1705 = vst.msk [vmem:[#allocation4 + $0xc] sm:$0xf] %vm1683, %v1699
          %1706 = vst.msk [vmem:[#allocation4 + $0x10] sm:$0xf] %vm1683, %v1700
          %1707 = vst.msk [vmem:[#allocation4 + $0x14] sm:$0xf] %vm1683, %v1701
          %v1708 = vpack.c.bf16 %v1665, %v1665
          %v1709 = vpack.c.bf16 %v1667, %v1667
          %v1710 = vpack.c.bf16 %v1670, %v1670
          %v1711 = vpack.c.bf16 %v1672, %v1672
          %v1712 = vpack.c.bf16 %v1675, %v1675
          %v1713 = vpack.c.bf16 %v1677, %v1677
          %1714 = vst.msk [vmem:[#allocation5] sm:$0xf] %vm1683, %v1708
          %1715 = vst.msk [vmem:[#allocation5 + $0x4] sm:$0xf] %vm1683, %v1709
          %1716 = vst.msk [vmem:[#allocation5 + $0x8] sm:$0xf] %vm1683, %v1710
          %1717 = vst.msk [vmem:[#allocation5 + $0xc] sm:$0xf] %vm1683, %v1711
          %1718 = vst.msk [vmem:[#allocation5 + $0x10] sm:$0xf] %vm1683, %v1712
          %1719 = vst.msk [vmem:[#allocation5 + $0x14] sm:$0xf] %vm1683, %v1713
          %1724 = vrot.lane.b32.xlu0 %v1679, 96
          %v1725 = vpop.permute.xlu0 %1724
          %1726 = vrot.lane.b32.xlu0 %v1680, 96
          %v1727 = vpop.permute.xlu0 %1726
          %1728 = vrot.lane.b32.xlu0 %v1681, 96
          %v1729 = vpop.permute.xlu0 %1728
          %1730 = vrot.lane.b32.xlu0 %v1682, 96
          %v1731 = vpop.permute.xlu0 %1730
          %s1736 = scalar_lea.vmem [#allocation2], 16
          %1737 = vst.msk [vmem:[%s1736] sm:$0xf] %vm1683, %v1725
          %1738 = vst.msk [vmem:[%s1736 + $0x4] sm:$0xf] %vm1683, %v1727
          %1739 = vst.msk [vmem:[%s1736 + $0x8] sm:$0xf] %vm1683, %v1729
          %1740 = vst.msk [vmem:[%s1736 + $0xc] sm:$0xf] %vm1683, %v1731
          %1745 = vrot.lane.b32.xlu0 %v1688, 96
          %v1746 = vpop.permute.xlu0 %1745
          %1747 = vrot.lane.b32.xlu0 %v1689, 96
          %v1748 = vpop.permute.xlu0 %1747
          %1749 = vrot.lane.b32.xlu0 %v1690, 96
          %v1750 = vpop.permute.xlu0 %1749
          %1751 = vrot.lane.b32.xlu0 %v1691, 96
          %v1752 = vpop.permute.xlu0 %1751
          %s1757 = scalar_lea.vmem [#allocation3], 16
          %1758 = vst.msk [vmem:[%s1757] sm:$0xf] %vm1683, %v1746
          %1759 = vst.msk [vmem:[%s1757 + $0x4] sm:$0xf] %vm1683, %v1748
          %1760 = vst.msk [vmem:[%s1757 + $0x8] sm:$0xf] %vm1683, %v1750
          %1761 = vst.msk [vmem:[%s1757 + $0xc] sm:$0xf] %vm1683, %v1752
          %1768 = vrot.lane.b32.xlu0 %v1696, 96
          %v1769 = vpop.permute.xlu0 %1768
          %1770 = vrot.lane.b32.xlu0 %v1697, 96
          %v1771 = vpop.permute.xlu0 %1770
          %1772 = vrot.lane.b32.xlu0 %v1698, 96
          %v1773 = vpop.permute.xlu0 %1772
          %1774 = vrot.lane.b32.xlu0 %v1699, 96
          %v1775 = vpop.permute.xlu0 %1774
          %1776 = vrot.lane.b32.xlu0 %v1700, 96
          %v1777 = vpop.permute.xlu0 %1776
          %1778 = vrot.lane.b32.xlu0 %v1701, 96
          %v1779 = vpop.permute.xlu0 %1778
          %s1786 = scalar_lea.vmem [#allocation4], 24
          %1787 = vst.msk [vmem:[%s1786] sm:$0xf] %vm1683, %v1769
          %1788 = vst.msk [vmem:[%s1786 + $0x4] sm:$0xf] %vm1683, %v1771
          %1789 = vst.msk [vmem:[%s1786 + $0x8] sm:$0xf] %vm1683, %v1773
          %1790 = vst.msk [vmem:[%s1786 + $0xc] sm:$0xf] %vm1683, %v1775
          %1791 = vst.msk [vmem:[%s1786 + $0x10] sm:$0xf] %vm1683, %v1777
          %1792 = vst.msk [vmem:[%s1786 + $0x14] sm:$0xf] %vm1683, %v1779
          %1799 = vrot.lane.b32.xlu0 %v1708, 96
          %v1800 = vpop.permute.xlu0 %1799
          %1801 = vrot.lane.b32.xlu0 %v1709, 96
          %v1802 = vpop.permute.xlu0 %1801
          %1803 = vrot.lane.b32.xlu0 %v1710, 96
          %v1804 = vpop.permute.xlu0 %1803
          %1805 = vrot.lane.b32.xlu0 %v1711, 96
          %v1806 = vpop.permute.xlu0 %1805
          %1807 = vrot.lane.b32.xlu0 %v1712, 96
          %v1808 = vpop.permute.xlu0 %1807
          %1809 = vrot.lane.b32.xlu0 %v1713, 96
          %v1810 = vpop.permute.xlu0 %1809
          %s1817 = scalar_lea.vmem [#allocation5], 24
          %1818 = vst.msk [vmem:[%s1817] sm:$0xf] %vm1683, %v1800
          %1819 = vst.msk [vmem:[%s1817 + $0x4] sm:$0xf] %vm1683, %v1802
          %1820 = vst.msk [vmem:[%s1817 + $0x8] sm:$0xf] %vm1683, %v1804
          %1821 = vst.msk [vmem:[%s1817 + $0xc] sm:$0xf] %vm1683, %v1806
          %1822 = vst.msk [vmem:[%s1817 + $0x10] sm:$0xf] %vm1683, %v1808
          %1823 = vst.msk [vmem:[%s1817 + $0x14] sm:$0xf] %vm1683, %v1810
          %1824 = vrot.lane.b32.xlu0 %v1679, 64
          %v1825 = vpop.permute.xlu0 %1824
          %1826 = vrot.lane.b32.xlu0 %v1680, 64
          %v1827 = vpop.permute.xlu0 %1826
          %1828 = vrot.lane.b32.xlu0 %v1681, 64
          %v1829 = vpop.permute.xlu0 %1828
          %1830 = vrot.lane.b32.xlu0 %v1682, 64
          %v1831 = vpop.permute.xlu0 %1830
          %s1836 = scalar_lea.vmem [#allocation2], 32
          %1837 = vst.msk [vmem:[%s1836] sm:$0xf] %vm1683, %v1825
          %1838 = vst.msk [vmem:[%s1836 + $0x4] sm:$0xf] %vm1683, %v1827
          %1839 = vst.msk [vmem:[%s1836 + $0x8] sm:$0xf] %vm1683, %v1829
          %1840 = vst.msk [vmem:[%s1836 + $0xc] sm:$0xf] %vm1683, %v1831
          %1841 = vrot.lane.b32.xlu0 %v1688, 64
          %v1842 = vpop.permute.xlu0 %1841
          %1843 = vrot.lane.b32.xlu0 %v1689, 64
          %v1844 = vpop.permute.xlu0 %1843
          %1845 = vrot.lane.b32.xlu0 %v1690, 64
          %v1846 = vpop.permute.xlu0 %1845
          %1847 = vrot.lane.b32.xlu0 %v1691, 64
          %v1848 = vpop.permute.xlu0 %1847
          %s1853 = scalar_lea.vmem [#allocation3], 32
          %1854 = vst.msk [vmem:[%s1853] sm:$0xf] %vm1683, %v1842
          %1855 = vst.msk [vmem:[%s1853 + $0x4] sm:$0xf] %vm1683, %v1844
          %1856 = vst.msk [vmem:[%s1853 + $0x8] sm:$0xf] %vm1683, %v1846
          %1857 = vst.msk [vmem:[%s1853 + $0xc] sm:$0xf] %vm1683, %v1848
          %1858 = vrot.lane.b32.xlu0 %v1696, 64
          %v1859 = vpop.permute.xlu0 %1858
          %1860 = vrot.lane.b32.xlu0 %v1697, 64
          %v1861 = vpop.permute.xlu0 %1860
          %1862 = vrot.lane.b32.xlu0 %v1698, 64
          %v1863 = vpop.permute.xlu0 %1862
          %1864 = vrot.lane.b32.xlu0 %v1699, 64
          %v1865 = vpop.permute.xlu0 %1864
          %1866 = vrot.lane.b32.xlu0 %v1700, 64
          %v1867 = vpop.permute.xlu0 %1866
          %1868 = vrot.lane.b32.xlu0 %v1701, 64
          %v1869 = vpop.permute.xlu0 %1868
          %s1876 = scalar_lea.vmem [#allocation4], 48
          %1877 = vst.msk [vmem:[%s1876] sm:$0xf] %vm1683, %v1859
          %1878 = vst.msk [vmem:[%s1876 + $0x4] sm:$0xf] %vm1683, %v1861
          %1879 = vst.msk [vmem:[%s1876 + $0x8] sm:$0xf] %vm1683, %v1863
          %1880 = vst.msk [vmem:[%s1876 + $0xc] sm:$0xf] %vm1683, %v1865
          %1881 = vst.msk [vmem:[%s1876 + $0x10] sm:$0xf] %vm1683, %v1867
          %1882 = vst.msk [vmem:[%s1876 + $0x14] sm:$0xf] %vm1683, %v1869
          %1883 = vrot.lane.b32.xlu0 %v1708, 64
          %v1884 = vpop.permute.xlu0 %1883
          %1885 = vrot.lane.b32.xlu0 %v1709, 64
          %v1886 = vpop.permute.xlu0 %1885
          %1887 = vrot.lane.b32.xlu0 %v1710, 64
          %v1888 = vpop.permute.xlu0 %1887
          %1889 = vrot.lane.b32.xlu0 %v1711, 64
          %v1890 = vpop.permute.xlu0 %1889
          %1891 = vrot.lane.b32.xlu0 %v1712, 64
          %v1892 = vpop.permute.xlu0 %1891
          %1893 = vrot.lane.b32.xlu0 %v1713, 64
          %v1894 = vpop.permute.xlu0 %1893
          %s1901 = scalar_lea.vmem [#allocation5], 48
          %1902 = vst.msk [vmem:[%s1901] sm:$0xf] %vm1683, %v1884
          %1903 = vst.msk [vmem:[%s1901 + $0x4] sm:$0xf] %vm1683, %v1886
          %1904 = vst.msk [vmem:[%s1901 + $0x8] sm:$0xf] %vm1683, %v1888
          %1905 = vst.msk [vmem:[%s1901 + $0xc] sm:$0xf] %vm1683, %v1890
          %1906 = vst.msk [vmem:[%s1901 + $0x10] sm:$0xf] %vm1683, %v1892
          %1907 = vst.msk [vmem:[%s1901 + $0x14] sm:$0xf] %vm1683, %v1894
          %1908 = vrot.lane.b32.xlu0 %v1679, 32
          %v1909 = vpop.permute.xlu0 %1908
          %1910 = vrot.lane.b32.xlu0 %v1680, 32
          %v1911 = vpop.permute.xlu0 %1910
          %1912 = vrot.lane.b32.xlu0 %v1681, 32
          %v1913 = vpop.permute.xlu0 %1912
          %1914 = vrot.lane.b32.xlu0 %v1682, 32
          %v1915 = vpop.permute.xlu0 %1914
          %s1920 = scalar_lea.vmem [#allocation2], 48
          %1921 = vst.msk [vmem:[%s1920] sm:$0xf] %vm1683, %v1909
          %1922 = vst.msk [vmem:[%s1920 + $0x4] sm:$0xf] %vm1683, %v1911
          %1923 = vst.msk [vmem:[%s1920 + $0x8] sm:$0xf] %vm1683, %v1913
          %1924 = vst.msk [vmem:[%s1920 + $0xc] sm:$0xf] %vm1683, %v1915
          %1925 = vrot.lane.b32.xlu0 %v1688, 32
          %v1926 = vpop.permute.xlu0 %1925
          %1927 = vrot.lane.b32.xlu0 %v1689, 32
          %v1928 = vpop.permute.xlu0 %1927
          %1929 = vrot.lane.b32.xlu0 %v1690, 32
          %v1930 = vpop.permute.xlu0 %1929
          %1931 = vrot.lane.b32.xlu0 %v1691, 32
          %v1932 = vpop.permute.xlu0 %1931
          %s1937 = scalar_lea.vmem [#allocation3], 48
          %1938 = vst.msk [vmem:[%s1937] sm:$0xf] %vm1683, %v1926
          %1939 = vst.msk [vmem:[%s1937 + $0x4] sm:$0xf] %vm1683, %v1928
          %1940 = vst.msk [vmem:[%s1937 + $0x8] sm:$0xf] %vm1683, %v1930
          %1941 = vst.msk [vmem:[%s1937 + $0xc] sm:$0xf] %vm1683, %v1932
          %1942 = vrot.lane.b32.xlu0 %v1696, 32
          %v1943 = vpop.permute.xlu0 %1942
          %1944 = vrot.lane.b32.xlu0 %v1697, 32
          %v1945 = vpop.permute.xlu0 %1944
          %1946 = vrot.lane.b32.xlu0 %v1698, 32
          %v1947 = vpop.permute.xlu0 %1946
          %1948 = vrot.lane.b32.xlu0 %v1699, 32
          %v1949 = vpop.permute.xlu0 %1948
          %1950 = vrot.lane.b32.xlu0 %v1700, 32
          %v1951 = vpop.permute.xlu0 %1950
          %1952 = vrot.lane.b32.xlu0 %v1701, 32
          %v1953 = vpop.permute.xlu0 %1952
          %s1960 = scalar_lea.vmem [#allocation4], 72
          %1961 = vst.msk [vmem:[%s1960] sm:$0xf] %vm1683, %v1943
          %1962 = vst.msk [vmem:[%s1960 + $0x4] sm:$0xf] %vm1683, %v1945
          %1963 = vst.msk [vmem:[%s1960 + $0x8] sm:$0xf] %vm1683, %v1947
          %1964 = vst.msk [vmem:[%s1960 + $0xc] sm:$0xf] %vm1683, %v1949
          %1965 = vst.msk [vmem:[%s1960 + $0x10] sm:$0xf] %vm1683, %v1951
          %1966 = vst.msk [vmem:[%s1960 + $0x14] sm:$0xf] %vm1683, %v1953
          %1967 = vrot.lane.b32.xlu0 %v1708, 32
          %v1968 = vpop.permute.xlu0 %1967
          %1969 = vrot.lane.b32.xlu0 %v1709, 32
          %v1970 = vpop.permute.xlu0 %1969
          %1971 = vrot.lane.b32.xlu0 %v1710, 32
          %v1972 = vpop.permute.xlu0 %1971
          %1973 = vrot.lane.b32.xlu0 %v1711, 32
          %v1974 = vpop.permute.xlu0 %1973
          %1975 = vrot.lane.b32.xlu0 %v1712, 32
          %v1976 = vpop.permute.xlu0 %1975
          %1977 = vrot.lane.b32.xlu0 %v1713, 32
          %v1978 = vpop.permute.xlu0 %1977
          %s1985 = scalar_lea.vmem [#allocation5], 72
          %1986 = vst.msk [vmem:[%s1985] sm:$0xf] %vm1683, %v1968
          %1987 = vst.msk [vmem:[%s1985 + $0x4] sm:$0xf] %vm1683, %v1970
          %1988 = vst.msk [vmem:[%s1985 + $0x8] sm:$0xf] %vm1683, %v1972
          %1989 = vst.msk [vmem:[%s1985 + $0xc] sm:$0xf] %vm1683, %v1974
          %1990 = vst.msk [vmem:[%s1985 + $0x10] sm:$0xf] %vm1683, %v1976
          %1991 = vst.msk [vmem:[%s1985 + $0x14] sm:$0xf] %vm1683, %v1978
        $region180: #{tpu_custom_call.1} parent=131 // pred_fallthru
          _
        %s1992 = smul.u32 %s89, 16
        %s1993 = scalar_lea.vmem %s1199, %s1992
        %v1994 = vld [vmem:[%s1993] sm:$0xff]
        %v1995 = vld [vmem:[%s1993 + $0x8] sm:$0xff]
        %v1996 = vld [vmem:[%s1044] sm:$0xff]
        %v1997 = vld [vmem:[%s1044 + $0x8] sm:$0xff]
        %s1998 = scalar_lea.vmem %s1205, %s1992
        %v1999 = vld [vmem:[%s1998] sm:$0xff]
        %v2000 = vld [vmem:[%s1998 + $0x8] sm:$0xff]
        %2001 = vadd.xlane.f32.xlu0 %v1994
        %v2002 = vpop.xlane.xlu0 %2001
        %2003 = vadd.xlane.f32.xlu0 %v1995
        %v2004 = vpop.xlane.xlu0 %2003
        %v2005 = vrcp.pop 128.0
        %v2006 = vmul.f32 128.0, %v2005
        %v2007 = vsub.f32 1.0, %v2006
        %v2008 = vmul.f32 %v2005, %v2007
        %v2009 = vadd.f32 %v2005, %v2008
        %vm2010 = vweird.f32 %v2005
        %v2011 = vsel %vm2010, %v2005, %v2009
        %v2012 = vmul.f32 %v2002, %v2011
        %v2013 = vmul.f32 %v2004, %v2011
        %v2014 = vsub.f32 %v1994, %v2012
        %v2015 = vsub.f32 %v1995, %v2013
        %v2016 = vmul.f32 %v2014, %v2014
        %v2017 = vmul.f32 %v2015, %v2015
        %2018 = vadd.xlane.f32.xlu0 %v2016
        %v2019 = vpop.xlane.xlu0 %2018
        %2020 = vadd.xlane.f32.xlu0 %v2017
        %v2021 = vpop.xlane.xlu0 %2020
        %v2022 = vmul.f32 %v2019, %v2011
        %v2023 = vmul.f32 %v2021, %v2011
        %v2024 = vadd.f32 %v2022, 1e-05
        %v2025 = vadd.f32 %v2023, 1e-05
        %v2026 = vrsqrt.pop %v2024
        %v2027 = vmul.f32 %v2026, %v2024
        %v2028 = vmul.f32 %v2027, %v2026
        %v2029 = vmul.f32 0.5, %v2028
        %v2030 = vsub.f32 1.5, %v2029
        %v2031 = vmul.f32 %v2026, %v2030
        %vm2032 = vweird.f32 %v2024
        %vm2033 = vweird.f32 %v2026
        %vm2034 = vmor %vm2032, %vm2033
        %v2035 = vsel %vm2034, %v2026, %v2031
        %v2036 = vrsqrt.pop %v2025
        %v2037 = vmul.f32 %v2036, %v2025
        %v2038 = vmul.f32 %v2037, %v2036
        %v2039 = vmul.f32 0.5, %v2038
        %v2040 = vsub.f32 1.5, %v2039
        %v2041 = vmul.f32 %v2036, %v2040
        %vm2042 = vweird.f32 %v2025
        %vm2043 = vweird.f32 %v2036
        %vm2044 = vmor %vm2042, %vm2043
        %v2045 = vsel %vm2044, %v2036, %v2041
        %v2046 = vmul.f32 %v2014, %v2035
        %v2047 = vmul.f32 %v2015, %v2045
        %v2048 = vld [vmem:[%s37] sm:$0x1]
        %v2050 = vperm.slane %v2048, 0
        %v2052 = vmul.f32 %v2046, %v2050
        %v2053 = vmul.f32 %v2047, %v2050
        %v2054 = vld [vmem:[%s39] sm:$0x1]
        %v2056 = vperm.slane %v2054, 0
        %v2058 = vadd.f32 %v2052, %v2056
        %v2059 = vadd.f32 %v2053, %v2056
        %2061 = vset.pattern.permute.xlu0 0
        %2062 = vperm.xlu0 %2061, %v1999
        %v2063 = vpop.permute.xlu0 %2062
        %2066 = vset.pattern.permute.xlu0 0
        %2067 = vperm.xlu0 %2066, %v2000
        %v2068 = vpop.permute.xlu0 %2067
        %v2070 = vmul.f32 %v2058, %v2063
        %v2071 = vmul.f32 %v2059, %v2068
        %v2072 = vadd.f32 %v2070, %v1996
        %v2073 = vadd.f32 %v2071, %v1997
        %v2074 = vpack.c.bf16 %v2073, %v2072
        %v2075 = vld [vmem:[#allocation13] sm:$0xf]
        %v2076 = vld [vmem:[#allocation13 + $0x4] sm:$0xf]
        %v2077 = vld [vmem:[#allocation13 + $0x8] sm:$0xf]
        %v2078 = vld [vmem:[#allocation13 + $0xc] sm:$0xf]
        %v2079 = vld [vmem:[#allocation13 + $0x10] sm:$0xf]
        %v2080 = vld [vmem:[#allocation13 + $0x14] sm:$0xf]
        %v2081 = vld [vmem:[#allocation13 + $0x18] sm:$0xf]
        %v2082 = vld [vmem:[#allocation13 + $0x1c] sm:$0xf]
        %v2083 = vld [vmem:[#allocation13 + $0x20] sm:$0xf]
        %v2084 = vld [vmem:[#allocation13 + $0x24] sm:$0xf]
        %v2085 = vld [vmem:[#allocation13 + $0x28] sm:$0xf]
        %v2086 = vld [vmem:[#allocation13 + $0x2c] sm:$0xf]
        %v2087 = vld [vmem:[#allocation13 + $0x30] sm:$0xf]
        %v2088 = vld [vmem:[#allocation13 + $0x34] sm:$0xf]
        %v2089 = vld [vmem:[#allocation13 + $0x38] sm:$0xf]
        %v2090 = vld [vmem:[#allocation13 + $0x3c] sm:$0xf]
        %v2091 = vld [vmem:[#allocation14] sm:$0x1]
        %v2093 = vperm.slane %v2091, 0
        %v2111 = vunpack.c.l.b16 %v2075
        %v2112 = vunpack.c.l.b16 %v2076
        %v2113 = vunpack.c.l.b16 %v2077
        %v2114 = vunpack.c.l.b16 %v2078
        %v2115 = vunpack.c.l.b16 %v2079
        %v2116 = vunpack.c.l.b16 %v2080
        %v2117 = vunpack.c.l.b16 %v2081
        %v2118 = vunpack.c.l.b16 %v2082
        %v2119 = vunpack.c.l.b16 %v2083
        %v2120 = vunpack.c.l.b16 %v2084
        %v2121 = vunpack.c.l.b16 %v2085
        %v2122 = vunpack.c.l.b16 %v2086
        %v2123 = vunpack.c.l.b16 %v2087
        %v2124 = vunpack.c.l.b16 %v2088
        %v2125 = vunpack.c.l.b16 %v2089
        %v2126 = vunpack.c.l.b16 %v2090
        %v2127 = vpack.c.b16 %v2112, %v2111
        %v2128 = vpack.c.b16 %v2114, %v2113
        %v2129 = vpack.c.b16 %v2116, %v2115
        %v2130 = vpack.c.b16 %v2118, %v2117
        %v2131 = vpack.c.b16 %v2120, %v2119
        %v2132 = vpack.c.b16 %v2122, %v2121
        %v2133 = vpack.c.b16 %v2124, %v2123
        %v2134 = vpack.c.b16 %v2126, %v2125
        %2143 = vmatpush.bf16.msra.mxu0 %v2134
        %2144 = vmatpush.bf16.msra.mxu0 %v2133
        %2145 = vmatpush.bf16.msra.mxu0 %v2132
        %2146 = vmatpush.bf16.msra.mxu0 %v2131
        %2147 = vmatpush.bf16.msra.mxu0 %v2130
        %2148 = vmatpush.bf16.msra.mxu0 %v2129
        %2149 = vmatpush.bf16.msra.mxu0 %v2128
        %2150 = vmatpush.bf16.msra.mxu0 %v2127
        %2151 = vmatmul.bf16.gmra.mxu0 %v2074
        %v2152 = vpop.f32.mrf.mxu0
        %v2153 = vadd.f32 %v2093, %v2152
        %v2154 = vpop.f32.mrf.mxu0
        %v2155 = vadd.f32 %v2093, %v2154
        %2156 = vdwg.mxu0
        %v2157 = vmul.f32 %v2153, 0.17677669
        %v2158 = vmul.f32 %v2155, 0.17677669
        %v2159 = vpack.c.bf16 %v2157, %v2157
        %v2160 = vpack.c.bf16 %v2158, %v2158
        %v2161 = vld [vmem:[%s1208] sm:$0x1]
        %v2162 = vld [vmem:[#allocation2] sm:$0xf]
        %v2163 = vld [vmem:[#allocation2 + $0x4] sm:$0xf]
        %v2164 = vld [vmem:[#allocation2 + $0x8] sm:$0xf]
        %v2165 = vld [vmem:[#allocation2 + $0xc] sm:$0xf]
        %v2167 = vperm.slane %v2161, 0
        %v2171 = vunpack.c.l.b16 %v2159
        %v2172 = vunpack.c.l.b16 %v2160
        %v2173 = vpack.c.b16 %v2172, %v2171
        %v2178 = vunpack.c.l.b16 %v2162
        %v2179 = vunpack.c.l.b16 %v2163
        %v2180 = vunpack.c.l.b16 %v2164
        %v2181 = vunpack.c.l.b16 %v2165
        %v2182 = vpack.c.b16 %v2179, %v2178
        %v2183 = vpack.c.b16 %v2181, %v2180
        %vm2184 = vcmask 261120
        %v2186 = vsel %vm2184, %v2173, 0
        %v2189 = vsel %vm2184, %v2182, 0
        %v2192 = vsel %vm2184, %v2183, 0
        %2194 = vmatpush.bf16.xpose.msra.mxu0 0
        %2195 = vmatpush.bf16.xpose.msra.mxu0 0
        %2196 = vmatpush.bf16.xpose.msra.mxu0 0
        %2197 = vmatpush.bf16.xpose.msra.mxu0 0
        %2198 = vmatpush.bf16.xpose.msra.mxu0 0
        %2199 = vmatpush.bf16.xpose.msra.mxu0 0
        %2200 = vmatpush.bf16.xpose.msra.mxu0 %v2192
        %2201 = vmatpush.bf16.xpose.msra.mxu0 %v2189
        %2202 = vmatmul.bf16.gmra.mxu0 %v2186
        %v2203 = vpop.f32.mrf.mxu0
        %v2204 = vadd.f32 %v2167, %v2203
        %v2205 = vpop.f32.mrf.mxu0
        %v2206 = vadd.f32 %v2167, %v2205
        %2207 = vdwg.mxu0
        %v2208 = vsel %vm2184, %v2204, -inf
        %2209 = vmax.xlane.f32.xlu0 %v2208
        %v2210 = vpop.xlane.xlu0 %2209
        %v2211 = vsel %vm2184, %v2206, -inf
        %2212 = vmax.xlane.f32.xlu0 %v2211
        %v2213 = vpop.xlane.xlu0 %2212
        %v2214 = vsub.f32 %v2204, %v2210
        %v2215 = vsub.f32 %v2206, %v2213
        %v2216 = vmul.f32 %v2214, 1.442695
        %v2217 = vpow.pop %v2216
        %v2218 = vmul.f32 %v2215, 1.442695
        %v2219 = vpow.pop %v2218
        %v2220 = vsel %vm2184, %v2217, 0.0
        %2221 = vadd.xlane.f32.xlu0 %v2220
        %v2222 = vpop.xlane.xlu0 %2221
        %v2223 = vsel %vm2184, %v2219, 0.0
        %2224 = vadd.xlane.f32.xlu0 %v2223
        %v2225 = vpop.xlane.xlu0 %2224
        %v2226 = vrcp.pop %v2222
        %v2227 = vrcp.pop %v2225
        %v2228 = vmul.f32 %v2217, %v2226
        %v2229 = vmul.f32 %v2219, %v2227
        %v2230 = vpack.c.bf16 %v2229, %v2228
        %v2231 = vld [vmem:[#allocation3] sm:$0xf]
        %v2232 = vld [vmem:[#allocation3 + $0x4] sm:$0xf]
        %v2233 = vld [vmem:[#allocation3 + $0x8] sm:$0xf]
        %v2234 = vld [vmem:[#allocation3 + $0xc] sm:$0xf]
        %v2239 = vunpack.c.l.b16 %v2231
        %v2240 = vunpack.c.l.b16 %v2232
        %v2241 = vunpack.c.l.b16 %v2233
        %v2242 = vunpack.c.l.b16 %v2234
        %v2243 = vpack.c.b16 %v2240, %v2239
        %v2244 = vpack.c.b16 %v2242, %v2241
        %v2248 = vsel %vm2184, %v2230, 0
        %2250 = vmatpush.bf16.msra.mxu0 0
        %2251 = vmatpush.bf16.msra.mxu0 0
        %2252 = vmatpush.bf16.msra.mxu0 0
        %2253 = vmatpush.bf16.msra.mxu0 0
        %2254 = vmatpush.bf16.msra.mxu0 0
        %2255 = vmatpush.bf16.msra.mxu0 0
        %2256 = vmatpush.bf16.msra.mxu0 %v2244
        %2257 = vmatpush.bf16.msra.mxu0 %v2243
        %2258 = vmatmul.bf16.gmra.mxu0 %v2248
        %v2259 = vpop.f32.mrf.mxu0
        %v2260 = vadd.f32 0.0, %v2259
        %v2261 = vpop.f32.mrf.mxu0
        %v2262 = vadd.f32 0.0, %v2261
        %2263 = vdwg.mxu0
        %v2264 = vpack.c.bf16 %v2260, %v2260
        %v2265 = vpack.c.bf16 %v2262, %v2262
        %vm2266 = vcmask 257024
        %2267 = vst.msk [vmem:[#allocation6] sm:$0xf] %vm2266, %v2264
        %2268 = vst.msk [vmem:[#allocation6 + $0x4] sm:$0xf] %vm2266, %v2265
        %s2269 = scalar_lea.vmem [#allocation2], 16
        %v2270 = vld [vmem:[%s2269] sm:$0xf]
        %v2271 = vld [vmem:[%s2269 + $0x4] sm:$0xf]
        %v2272 = vld [vmem:[%s2269 + $0x8] sm:$0xf]
        %v2273 = vld [vmem:[%s2269 + $0xc] sm:$0xf]
        %2274 = vrot.lane.b32.xlu0 %v2173, 96
        %v2275 = vpop.permute.xlu0 %2274
        %v2280 = vunpack.c.l.b16 %v2270
        %v2281 = vunpack.c.l.b16 %v2271
        %v2282 = vunpack.c.l.b16 %v2272
        %v2283 = vunpack.c.l.b16 %v2273
        %v2284 = vpack.c.b16 %v2281, %v2280
        %v2285 = vpack.c.b16 %v2283, %v2282
        %v2287 = vsel %vm2184, %v2275, 0
        %v2290 = vsel %vm2184, %v2284, 0
        %v2293 = vsel %vm2184, %v2285, 0
        %2295 = vmatpush.bf16.xpose.msra.mxu0 0
        %2296 = vmatpush.bf16.xpose.msra.mxu0 0
        %2297 = vmatpush.bf16.xpose.msra.mxu0 0
        %2298 = vmatpush.bf16.xpose.msra.mxu0 0
        %2299 = vmatpush.bf16.xpose.msra.mxu0 0
        %2300 = vmatpush.bf16.xpose.msra.mxu0 0
        %2301 = vmatpush.bf16.xpose.msra.mxu0 %v2293
        %2302 = vmatpush.bf16.xpose.msra.mxu0 %v2290
        %2303 = vmatmul.bf16.gmra.mxu0 %v2287
        %v2304 = vpop.f32.mrf.mxu0
        %v2305 = vadd.f32 %v2167, %v2304
        %v2306 = vpop.f32.mrf.mxu0
        %v2307 = vadd.f32 %v2167, %v2306
        %2308 = vdwg.mxu0
        %v2309 = vsel %vm2184, %v2305, -inf
        %2310 = vmax.xlane.f32.xlu0 %v2309
        %v2311 = vpop.xlane.xlu0 %2310
        %v2312 = vsel %vm2184, %v2307, -inf
        %2313 = vmax.xlane.f32.xlu0 %v2312
        %v2314 = vpop.xlane.xlu0 %2313
        %v2315 = vsub.f32 %v2305, %v2311
        %v2316 = vsub.f32 %v2307, %v2314
        %v2317 = vmul.f32 %v2315, 1.442695
        %v2318 = vpow.pop %v2317
        %v2319 = vmul.f32 %v2316, 1.442695
        %v2320 = vpow.pop %v2319
        %v2321 = vsel %vm2184, %v2318, 0.0
        %2322 = vadd.xlane.f32.xlu0 %v2321
        %v2323 = vpop.xlane.xlu0 %2322
        %v2324 = vsel %vm2184, %v2320, 0.0
        %2325 = vadd.xlane.f32.xlu0 %v2324
        %v2326 = vpop.xlane.xlu0 %2325
        %v2327 = vrcp.pop %v2323
        %v2328 = vrcp.pop %v2326
        %v2329 = vmul.f32 %v2318, %v2327
        %v2330 = vmul.f32 %v2320, %v2328
        %v2331 = vpack.c.bf16 %v2330, %v2329
        %s2332 = scalar_lea.vmem [#allocation3], 16
        %v2333 = vld [vmem:[%s2332] sm:$0xf]
        %v2334 = vld [vmem:[%s2332 + $0x4] sm:$0xf]
        %v2335 = vld [vmem:[%s2332 + $0x8] sm:$0xf]
        %v2336 = vld [vmem:[%s2332 + $0xc] sm:$0xf]
        %v2341 = vunpack.c.l.b16 %v2333
        %v2342 = vunpack.c.l.b16 %v2334
        %v2343 = vunpack.c.l.b16 %v2335
        %v2344 = vunpack.c.l.b16 %v2336
        %v2345 = vpack.c.b16 %v2342, %v2341
        %v2346 = vpack.c.b16 %v2344, %v2343
        %v2350 = vsel %vm2184, %v2331, 0
        %2352 = vmatpush.bf16.msra.mxu0 0
        %2353 = vmatpush.bf16.msra.mxu0 0
        %2354 = vmatpush.bf16.msra.mxu0 0
        %2355 = vmatpush.bf16.msra.mxu0 0
        %2356 = vmatpush.bf16.msra.mxu0 0
        %2357 = vmatpush.bf16.msra.mxu0 0
        %2358 = vmatpush.bf16.msra.mxu0 %v2346
        %2359 = vmatpush.bf16.msra.mxu0 %v2345
        %2360 = vmatmul.bf16.gmra.mxu0 %v2350
        %v2361 = vpop.f32.mrf.mxu0
        %v2362 = vadd.f32 0.0, %v2361
        %v2363 = vpop.f32.mrf.mxu0
        %v2364 = vadd.f32 0.0, %v2363
        %2365 = vdwg.mxu0
        %v2366 = vpack.c.bf16 %v2362, %v2362
        %v2367 = vpack.c.bf16 %v2364, %v2364
        %2370 = vrot.lane.b32.xlu0 %v2366, 32
        %v2371 = vpop.permute.xlu0 %2370
        %2372 = vrot.lane.b32.xlu0 %v2367, 32
        %v2373 = vpop.permute.xlu0 %2372
        %vm2376 = vcmask 519424
        %2377 = vst.msk [vmem:[#allocation6] sm:$0xf] %vm2376, %v2371
        %2378 = vst.msk [vmem:[#allocation6 + $0x4] sm:$0xf] %vm2376, %v2373
        %s2379 = scalar_lea.vmem [#allocation2], 32
        %v2380 = vld [vmem:[%s2379] sm:$0xf]
        %v2381 = vld [vmem:[%s2379 + $0x4] sm:$0xf]
        %v2382 = vld [vmem:[%s2379 + $0x8] sm:$0xf]
        %v2383 = vld [vmem:[%s2379 + $0xc] sm:$0xf]
        %2384 = vrot.lane.b32.xlu0 %v2173, 64
        %v2385 = vpop.permute.xlu0 %2384
        %v2390 = vunpack.c.l.b16 %v2380
        %v2391 = vunpack.c.l.b16 %v2381
        %v2392 = vunpack.c.l.b16 %v2382
        %v2393 = vunpack.c.l.b16 %v2383
        %v2394 = vpack.c.b16 %v2391, %v2390
        %v2395 = vpack.c.b16 %v2393, %v2392
        %v2397 = vsel %vm2184, %v2385, 0
        %v2400 = vsel %vm2184, %v2394, 0
        %v2403 = vsel %vm2184, %v2395, 0
        %2405 = vmatpush.bf16.xpose.msra.mxu0 0
        %2406 = vmatpush.bf16.xpose.msra.mxu0 0
        %2407 = vmatpush.bf16.xpose.msra.mxu0 0
        %2408 = vmatpush.bf16.xpose.msra.mxu0 0
        %2409 = vmatpush.bf16.xpose.msra.mxu0 0
        %2410 = vmatpush.bf16.xpose.msra.mxu0 0
        %2411 = vmatpush.bf16.xpose.msra.mxu0 %v2403
        %2412 = vmatpush.bf16.xpose.msra.mxu0 %v2400
        %2413 = vmatmul.bf16.gmra.mxu0 %v2397
        %v2414 = vpop.f32.mrf.mxu0
        %v2415 = vadd.f32 %v2167, %v2414
        %v2416 = vpop.f32.mrf.mxu0
        %v2417 = vadd.f32 %v2167, %v2416
        %2418 = vdwg.mxu0
        %v2419 = vsel %vm2184, %v2415, -inf
        %2420 = vmax.xlane.f32.xlu0 %v2419
        %v2421 = vpop.xlane.xlu0 %2420
        %v2422 = vsel %vm2184, %v2417, -inf
        %2423 = vmax.xlane.f32.xlu0 %v2422
        %v2424 = vpop.xlane.xlu0 %2423
        %v2425 = vsub.f32 %v2415, %v2421
        %v2426 = vsub.f32 %v2417, %v2424
        %v2427 = vmul.f32 %v2425, 1.442695
        %v2428 = vpow.pop %v2427
        %v2429 = vmul.f32 %v2426, 1.442695
        %v2430 = vpow.pop %v2429
        %v2431 = vsel %vm2184, %v2428, 0.0
        %2432 = vadd.xlane.f32.xlu0 %v2431
        %v2433 = vpop.xlane.xlu0 %2432
        %v2434 = vsel %vm2184, %v2430, 0.0
        %2435 = vadd.xlane.f32.xlu0 %v2434
        %v2436 = vpop.xlane.xlu0 %2435
        %v2437 = vrcp.pop %v2433
        %v2438 = vrcp.pop %v2436
        %v2439 = vmul.f32 %v2428, %v2437
        %v2440 = vmul.f32 %v2430, %v2438
        %v2441 = vpack.c.bf16 %v2440, %v2439
        %s2442 = scalar_lea.vmem [#allocation3], 32
        %v2443 = vld [vmem:[%s2442] sm:$0xf]
        %v2444 = vld [vmem:[%s2442 + $0x4] sm:$0xf]
        %v2445 = vld [vmem:[%s2442 + $0x8] sm:$0xf]
        %v2446 = vld [vmem:[%s2442 + $0xc] sm:$0xf]
        %v2451 = vunpack.c.l.b16 %v2443
        %v2452 = vunpack.c.l.b16 %v2444
        %v2453 = vunpack.c.l.b16 %v2445
        %v2454 = vunpack.c.l.b16 %v2446
        %v2455 = vpack.c.b16 %v2452, %v2451
        %v2456 = vpack.c.b16 %v2454, %v2453
        %v2460 = vsel %vm2184, %v2441, 0
        %2462 = vmatpush.bf16.msra.mxu0 0
        %2463 = vmatpush.bf16.msra.mxu0 0
        %2464 = vmatpush.bf16.msra.mxu0 0
        %2465 = vmatpush.bf16.msra.mxu0 0
        %2466 = vmatpush.bf16.msra.mxu0 0
        %2467 = vmatpush.bf16.msra.mxu0 0
        %2468 = vmatpush.bf16.msra.mxu0 %v2456
        %2469 = vmatpush.bf16.msra.mxu0 %v2455
        %2470 = vmatmul.bf16.gmra.mxu0 %v2460
        %v2471 = vpop.f32.mrf.mxu0
        %v2472 = vadd.f32 0.0, %v2471
        %v2473 = vpop.f32.mrf.mxu0
        %v2474 = vadd.f32 0.0, %v2473
        %2475 = vdwg.mxu0
        %v2476 = vpack.c.bf16 %v2472, %v2472
        %v2477 = vpack.c.bf16 %v2474, %v2474
        %2480 = vrot.lane.b32.xlu0 %v2476, 64
        %v2481 = vpop.permute.xlu0 %2480
        %2482 = vrot.lane.b32.xlu0 %v2477, 64
        %v2483 = vpop.permute.xlu0 %2482
        %vm2486 = vcmask 781824
        %2487 = vst.msk [vmem:[#allocation6] sm:$0xf] %vm2486, %v2481
        %2488 = vst.msk [vmem:[#allocation6 + $0x4] sm:$0xf] %vm2486, %v2483
        %s2489 = scalar_lea.vmem [#allocation2], 48
        %v2490 = vld [vmem:[%s2489] sm:$0xf]
        %v2491 = vld [vmem:[%s2489 + $0x4] sm:$0xf]
        %v2492 = vld [vmem:[%s2489 + $0x8] sm:$0xf]
        %v2493 = vld [vmem:[%s2489 + $0xc] sm:$0xf]
        %2494 = vrot.lane.b32.xlu0 %v2173, 32
        %v2495 = vpop.permute.xlu0 %2494
        %v2500 = vunpack.c.l.b16 %v2490
        %v2501 = vunpack.c.l.b16 %v2491
        %v2502 = vunpack.c.l.b16 %v2492
        %v2503 = vunpack.c.l.b16 %v2493
        %v2504 = vpack.c.b16 %v2501, %v2500
        %v2505 = vpack.c.b16 %v2503, %v2502
        %v2507 = vsel %vm2184, %v2495, 0
        %v2510 = vsel %vm2184, %v2504, 0
        %v2513 = vsel %vm2184, %v2505, 0
        %2515 = vmatpush.bf16.xpose.msra.mxu0 0
        %2516 = vmatpush.bf16.xpose.msra.mxu0 0
        %2517 = vmatpush.bf16.xpose.msra.mxu0 0
        %2518 = vmatpush.bf16.xpose.msra.mxu0 0
        %2519 = vmatpush.bf16.xpose.msra.mxu0 0
        %2520 = vmatpush.bf16.xpose.msra.mxu0 0
        %2521 = vmatpush.bf16.xpose.msra.mxu0 %v2513
        %2522 = vmatpush.bf16.xpose.msra.mxu0 %v2510
        %2523 = vmatmul.bf16.gmra.mxu0 %v2507
        %v2524 = vpop.f32.mrf.mxu0
        %v2525 = vadd.f32 %v2167, %v2524
        %v2526 = vpop.f32.mrf.mxu0
        %v2527 = vadd.f32 %v2167, %v2526
        %2528 = vdwg.mxu0
        %v2529 = vsel %vm2184, %v2525, -inf
        %2530 = vmax.xlane.f32.xlu0 %v2529
        %v2531 = vpop.xlane.xlu0 %2530
        %v2532 = vsel %vm2184, %v2527, -inf
        %2533 = vmax.xlane.f32.xlu0 %v2532
        %v2534 = vpop.xlane.xlu0 %2533
        %v2535 = vsub.f32 %v2525, %v2531
        %v2536 = vsub.f32 %v2527, %v2534
        %v2537 = vmul.f32 %v2535, 1.442695
        %v2538 = vpow.pop %v2537
        %v2539 = vmul.f32 %v2536, 1.442695
        %v2540 = vpow.pop %v2539
        %v2541 = vsel %vm2184, %v2538, 0.0
        %2542 = vadd.xlane.f32.xlu0 %v2541
        %v2543 = vpop.xlane.xlu0 %2542
        %v2544 = vsel %vm2184, %v2540, 0.0
        %2545 = vadd.xlane.f32.xlu0 %v2544
        %v2546 = vpop.xlane.xlu0 %2545
        %v2547 = vrcp.pop %v2543
        %v2548 = vrcp.pop %v2546
        %v2549 = vmul.f32 %v2538, %v2547
        %v2550 = vmul.f32 %v2540, %v2548
        %v2551 = vpack.c.bf16 %v2550, %v2549
        %s2552 = scalar_lea.vmem [#allocation3], 48
        %v2553 = vld [vmem:[%s2552] sm:$0xf]
        %v2554 = vld [vmem:[%s2552 + $0x4] sm:$0xf]
        %v2555 = vld [vmem:[%s2552 + $0x8] sm:$0xf]
        %v2556 = vld [vmem:[%s2552 + $0xc] sm:$0xf]
        %v2561 = vunpack.c.l.b16 %v2553
        %v2562 = vunpack.c.l.b16 %v2554
        %v2563 = vunpack.c.l.b16 %v2555
        %v2564 = vunpack.c.l.b16 %v2556
        %v2565 = vpack.c.b16 %v2562, %v2561
        %v2566 = vpack.c.b16 %v2564, %v2563
        %v2570 = vsel %vm2184, %v2551, 0
        %2572 = vmatpush.bf16.msra.mxu0 0
        %2573 = vmatpush.bf16.msra.mxu0 0
        %2574 = vmatpush.bf16.msra.mxu0 0
        %2575 = vmatpush.bf16.msra.mxu0 0
        %2576 = vmatpush.bf16.msra.mxu0 0
        %2577 = vmatpush.bf16.msra.mxu0 0
        %2578 = vmatpush.bf16.msra.mxu0 %v2566
        %2579 = vmatpush.bf16.msra.mxu0 %v2565
        %2580 = vmatmul.bf16.gmra.mxu0 %v2570
        %v2581 = vpop.f32.mrf.mxu0
        %v2582 = vadd.f32 0.0, %v2581
        %v2583 = vpop.f32.mrf.mxu0
        %v2584 = vadd.f32 0.0, %v2583
        %2585 = vdwg.mxu0
        %v2586 = vpack.c.bf16 %v2582, %v2582
        %v2587 = vpack.c.bf16 %v2584, %v2584
        %2590 = vrot.lane.b32.xlu0 %v2586, 96
        %v2591 = vpop.permute.xlu0 %2590
        %2592 = vrot.lane.b32.xlu0 %v2587, 96
        %v2593 = vpop.permute.xlu0 %2592
        %vm2596 = vcmask 1044224
        %2597 = vst.msk [vmem:[#allocation6] sm:$0xf] %vm2596, %v2591
        %2598 = vst.msk [vmem:[#allocation6 + $0x4] sm:$0xf] %vm2596, %v2593
        %v2599 = vld [vmem:[#allocation6] sm:$0xf]
        %v2600 = vld [vmem:[#allocation6 + $0x4] sm:$0xf]
        %v2601 = vld [vmem:[#allocation17] sm:$0xf]
        %v2602 = vld [vmem:[#allocation17 + $0x4] sm:$0xf]
        %v2603 = vld [vmem:[#allocation17 + $0x8] sm:$0xf]
        %v2604 = vld [vmem:[#allocation17 + $0xc] sm:$0xf]
        %v2605 = vld [vmem:[#allocation17 + $0x10] sm:$0xf]
        %v2606 = vld [vmem:[#allocation17 + $0x14] sm:$0xf]
        %v2607 = vld [vmem:[#allocation17 + $0x18] sm:$0xf]
        %v2608 = vld [vmem:[#allocation17 + $0x1c] sm:$0xf]
        %v2609 = vld [vmem:[#allocation17 + $0x20] sm:$0xf]
        %v2610 = vld [vmem:[#allocation17 + $0x24] sm:$0xf]
        %v2611 = vld [vmem:[#allocation17 + $0x28] sm:$0xf]
        %v2612 = vld [vmem:[#allocation17 + $0x2c] sm:$0xf]
        %v2613 = vld [vmem:[#allocation17 + $0x30] sm:$0xf]
        %v2614 = vld [vmem:[#allocation17 + $0x34] sm:$0xf]
        %v2615 = vld [vmem:[#allocation17 + $0x38] sm:$0xf]
        %v2616 = vld [vmem:[#allocation17 + $0x3c] sm:$0xf]
        %v2617 = vld [vmem:[%s23] sm:$0x1]
        %v2619 = vperm.slane %v2617, 0
        %v2623 = vunpack.c.l.b16 %v2599
        %v2624 = vunpack.c.l.b16 %v2600
        %v2625 = vpack.c.b16 %v2624, %v2623
        %v2643 = vunpack.c.l.b16 %v2601
        %v2644 = vunpack.c.l.b16 %v2602
        %v2645 = vunpack.c.l.b16 %v2603
        %v2646 = vunpack.c.l.b16 %v2604
        %v2647 = vunpack.c.l.b16 %v2605
        %v2648 = vunpack.c.l.b16 %v2606
        %v2649 = vunpack.c.l.b16 %v2607
        %v2650 = vunpack.c.l.b16 %v2608
        %v2651 = vunpack.c.l.b16 %v2609
        %v2652 = vunpack.c.l.b16 %v2610
        %v2653 = vunpack.c.l.b16 %v2611
        %v2654 = vunpack.c.l.b16 %v2612
        %v2655 = vunpack.c.l.b16 %v2613
        %v2656 = vunpack.c.l.b16 %v2614
        %v2657 = vunpack.c.l.b16 %v2615
        %v2658 = vunpack.c.l.b16 %v2616
        %v2659 = vpack.c.b16 %v2644, %v2643
        %v2660 = vpack.c.b16 %v2646, %v2645
        %v2661 = vpack.c.b16 %v2648, %v2647
        %v2662 = vpack.c.b16 %v2650, %v2649
        %v2663 = vpack.c.b16 %v2652, %v2651
        %v2664 = vpack.c.b16 %v2654, %v2653
        %v2665 = vpack.c.b16 %v2656, %v2655
        %v2666 = vpack.c.b16 %v2658, %v2657
        %2675 = vmatpush.bf16.msra.mxu0 %v2666
        %2676 = vmatpush.bf16.msra.mxu0 %v2665
        %2677 = vmatpush.bf16.msra.mxu0 %v2664
        %2678 = vmatpush.bf16.msra.mxu0 %v2663
        %2679 = vmatpush.bf16.msra.mxu0 %v2662
        %2680 = vmatpush.bf16.msra.mxu0 %v2661
        %2681 = vmatpush.bf16.msra.mxu0 %v2660
        %2682 = vmatpush.bf16.msra.mxu0 %v2659
        %2683 = vmatmul.bf16.gmra.mxu0 %v2625
        %v2684 = vpop.f32.mrf.mxu0
        %v2685 = vadd.f32 %v2619, %v2684
        %v2686 = vpop.f32.mrf.mxu0
        %v2687 = vadd.f32 %v2619, %v2686
        %2688 = vdwg.mxu0
        %v2689 = vadd.f32 %v1994, %v2685
        %v2690 = vadd.f32 %v1995, %v2687
        %2691 = vadd.xlane.f32.xlu0 %v2689
        %v2692 = vpop.xlane.xlu0 %2691
        %2693 = vadd.xlane.f32.xlu0 %v2690
        %v2694 = vpop.xlane.xlu0 %2693
        %v2695 = vmul.f32 %v2692, %v2011
        %v2696 = vmul.f32 %v2694, %v2011
        %v2697 = vsub.f32 %v2689, %v2695
        %v2698 = vsub.f32 %v2690, %v2696
        %v2699 = vmul.f32 %v2697, %v2697
        %v2700 = vmul.f32 %v2698, %v2698
        %2701 = vadd.xlane.f32.xlu0 %v2699
        %v2702 = vpop.xlane.xlu0 %2701
        %2703 = vadd.xlane.f32.xlu0 %v2700
        %v2704 = vpop.xlane.xlu0 %2703
        %v2705 = vmul.f32 %v2702, %v2011
        %v2706 = vmul.f32 %v2704, %v2011
        %v2707 = vadd.f32 %v2705, 1e-05
        %v2708 = vadd.f32 %v2706, 1e-05
        %v2709 = vrsqrt.pop %v2707
        %v2710 = vmul.f32 %v2709, %v2707
        %v2711 = vmul.f32 %v2710, %v2709
        %v2712 = vmul.f32 0.5, %v2711
        %v2713 = vsub.f32 1.5, %v2712
        %v2714 = vmul.f32 %v2709, %v2713
        %vm2715 = vweird.f32 %v2707
        %vm2716 = vweird.f32 %v2709
        %vm2717 = vmor %vm2715, %vm2716
        %v2718 = vsel %vm2717, %v2709, %v2714
        %v2719 = vrsqrt.pop %v2708
        %v2720 = vmul.f32 %v2719, %v2708
        %v2721 = vmul.f32 %v2720, %v2719
        %v2722 = vmul.f32 0.5, %v2721
        %v2723 = vsub.f32 1.5, %v2722
        %v2724 = vmul.f32 %v2719, %v2723
        %vm2725 = vweird.f32 %v2708
        %vm2726 = vweird.f32 %v2719
        %vm2727 = vmor %vm2725, %vm2726
        %v2728 = vsel %vm2727, %v2719, %v2724
        %v2729 = vmul.f32 %v2697, %v2718
        %v2730 = vmul.f32 %v2698, %v2728
        %v2731 = vld [vmem:[%s41] sm:$0x1]
        %v2733 = vperm.slane %v2731, 0
        %v2735 = vmul.f32 %v2729, %v2733
        %v2736 = vmul.f32 %v2730, %v2733
        %v2737 = vld [vmem:[%s43] sm:$0x1]
        %v2739 = vperm.slane %v2737, 0
        %v2741 = vadd.f32 %v2735, %v2739
        %v2742 = vadd.f32 %v2736, %v2739
        %v2743 = vadd.f32 %v2741, %v1996
        %v2744 = vadd.f32 %v2742, %v1997
        %v2745 = vpack.c.bf16 %v2744, %v2743
        %v2746 = vld [vmem:[#allocation19] sm:$0xf]
        %v2747 = vld [vmem:[#allocation19 + $0x4] sm:$0xf]
        %v2748 = vld [vmem:[#allocation19 + $0x8] sm:$0xf]
        %v2749 = vld [vmem:[#allocation19 + $0xc] sm:$0xf]
        %v2750 = vld [vmem:[#allocation19 + $0x10] sm:$0xf]
        %v2751 = vld [vmem:[#allocation19 + $0x14] sm:$0xf]
        %v2752 = vld [vmem:[#allocation19 + $0x18] sm:$0xf]
        %v2753 = vld [vmem:[#allocation19 + $0x1c] sm:$0xf]
        %v2754 = vld [vmem:[#allocation19 + $0x20] sm:$0xf]
        %v2755 = vld [vmem:[#allocation19 + $0x24] sm:$0xf]
        %v2756 = vld [vmem:[#allocation19 + $0x28] sm:$0xf]
        %v2757 = vld [vmem:[#allocation19 + $0x2c] sm:$0xf]
        %v2758 = vld [vmem:[#allocation19 + $0x30] sm:$0xf]
        %v2759 = vld [vmem:[#allocation19 + $0x34] sm:$0xf]
        %v2760 = vld [vmem:[#allocation19 + $0x38] sm:$0xf]
        %v2761 = vld [vmem:[#allocation19 + $0x3c] sm:$0xf]
        %v2762 = vld [vmem:[%s27] sm:$0x1]
        %v2764 = vperm.slane %v2762, 0
        %v2782 = vunpack.c.l.b16 %v2746
        %v2783 = vunpack.c.l.b16 %v2747
        %v2784 = vunpack.c.l.b16 %v2748
        %v2785 = vunpack.c.l.b16 %v2749
        %v2786 = vunpack.c.l.b16 %v2750
        %v2787 = vunpack.c.l.b16 %v2751
        %v2788 = vunpack.c.l.b16 %v2752
        %v2789 = vunpack.c.l.b16 %v2753
        %v2790 = vunpack.c.l.b16 %v2754
        %v2791 = vunpack.c.l.b16 %v2755
        %v2792 = vunpack.c.l.b16 %v2756
        %v2793 = vunpack.c.l.b16 %v2757
        %v2794 = vunpack.c.l.b16 %v2758
        %v2795 = vunpack.c.l.b16 %v2759
        %v2796 = vunpack.c.l.b16 %v2760
        %v2797 = vunpack.c.l.b16 %v2761
        %v2798 = vpack.c.b16 %v2783, %v2782
        %v2799 = vpack.c.b16 %v2785, %v2784
        %v2800 = vpack.c.b16 %v2787, %v2786
        %v2801 = vpack.c.b16 %v2789, %v2788
        %v2802 = vpack.c.b16 %v2791, %v2790
        %v2803 = vpack.c.b16 %v2793, %v2792
        %v2804 = vpack.c.b16 %v2795, %v2794
        %v2805 = vpack.c.b16 %v2797, %v2796
        %2814 = vmatpush.bf16.msra.mxu0 %v2805
        %2815 = vmatpush.bf16.msra.mxu0 %v2804
        %2816 = vmatpush.bf16.msra.mxu0 %v2803
        %2817 = vmatpush.bf16.msra.mxu0 %v2802
        %2818 = vmatpush.bf16.msra.mxu0 %v2801
        %2819 = vmatpush.bf16.msra.mxu0 %v2800
        %2820 = vmatpush.bf16.msra.mxu0 %v2799
        %2821 = vmatpush.bf16.msra.mxu0 %v2798
        %2822 = vmatmul.bf16.gmra.mxu0 %v2745
        %v2823 = vpop.f32.mrf.mxu0
        %v2824 = vadd.f32 %v2764, %v2823
        %v2825 = vpop.f32.mrf.mxu0
        %v2826 = vadd.f32 %v2764, %v2825
        %2827 = vdwg.mxu0
        %v2828 = vmul.f32 %v2824, 0.17677669
        %v2829 = vmul.f32 %v2826, 0.17677669
        %v2830 = vpack.c.bf16 %v2828, %v2828
        %v2831 = vpack.c.bf16 %v2829, %v2829
        %v2832 = vld [vmem:[%s1211] sm:$0x1]
        %v2833 = vld [vmem:[#allocation4] sm:$0xf]
        %v2834 = vld [vmem:[#allocation4 + $0x4] sm:$0xf]
        %v2835 = vld [vmem:[#allocation4 + $0x8] sm:$0xf]
        %v2836 = vld [vmem:[#allocation4 + $0xc] sm:$0xf]
        %v2837 = vld [vmem:[#allocation4 + $0x10] sm:$0xf]
        %v2838 = vld [vmem:[#allocation4 + $0x14] sm:$0xf]
        %v2840 = vperm.slane %v2832, 0
        %v2844 = vunpack.c.l.b16 %v2830
        %v2845 = vunpack.c.l.b16 %v2831
        %v2846 = vpack.c.b16 %v2845, %v2844
        %v2853 = vunpack.c.l.b16 %v2833
        %v2854 = vunpack.c.l.b16 %v2834
        %v2855 = vunpack.c.l.b16 %v2835
        %v2856 = vunpack.c.l.b16 %v2836
        %v2857 = vunpack.c.l.b16 %v2837
        %v2858 = vunpack.c.l.b16 %v2838
        %v2859 = vpack.c.b16 %v2854, %v2853
        %v2860 = vpack.c.b16 %v2856, %v2855
        %v2861 = vpack.c.b16 %v2858, %v2857
        %v2863 = vsel %vm2184, %v2846, 0
        %v2866 = vsel %vm2184, %v2859, 0
        %v2869 = vsel %vm2184, %v2860, 0
        %v2872 = vsel %vm2184, %v2861, 0
        %2874 = vmatpush.bf16.xpose.msra.mxu0 0
        %2875 = vmatpush.bf16.xpose.msra.mxu0 0
        %2876 = vmatpush.bf16.xpose.msra.mxu0 0
        %2877 = vmatpush.bf16.xpose.msra.mxu0 0
        %2878 = vmatpush.bf16.xpose.msra.mxu0 0
        %2879 = vmatpush.bf16.xpose.msra.mxu0 %v2872
        %2880 = vmatpush.bf16.xpose.msra.mxu0 %v2869
        %2881 = vmatpush.bf16.xpose.msra.mxu0 %v2866
        %2882 = vmatmul.bf16.gmra.mxu0 %v2863
        %v2883 = vpop.f32.mrf.mxu0
        %v2884 = vadd.f32 %v2840, %v2883
        %v2885 = vpop.f32.mrf.mxu0
        %v2886 = vadd.f32 %v2840, %v2885
        %2887 = vdwg.mxu0
        %vm2888 = vcmask 392192
        %v2889 = vsel %vm2888, %v2884, -inf
        %2890 = vmax.xlane.f32.xlu0 %v2889
        %v2891 = vpop.xlane.xlu0 %2890
        %v2892 = vsel %vm2888, %v2886, -inf
        %2893 = vmax.xlane.f32.xlu0 %v2892
        %v2894 = vpop.xlane.xlu0 %2893
        %v2895 = vsub.f32 %v2884, %v2891
        %v2896 = vsub.f32 %v2886, %v2894
        %v2897 = vmul.f32 %v2895, 1.442695
        %v2898 = vpow.pop %v2897
        %v2899 = vmul.f32 %v2896, 1.442695
        %v2900 = vpow.pop %v2899
        %v2901 = vsel %vm2888, %v2898, 0.0
        %2902 = vadd.xlane.f32.xlu0 %v2901
        %v2903 = vpop.xlane.xlu0 %2902
        %v2904 = vsel %vm2888, %v2900, 0.0
        %2905 = vadd.xlane.f32.xlu0 %v2904
        %v2906 = vpop.xlane.xlu0 %2905
        %v2907 = vrcp.pop %v2903
        %v2908 = vrcp.pop %v2906
        %v2909 = vmul.f32 %v2898, %v2907
        %v2910 = vmul.f32 %v2900, %v2908
        %2911 = vst.msk [vmem:[#allocation7] sm:$0xff] %vm2888, %v2909
        %2912 = vst.msk [vmem:[#allocation7 + $0x8] sm:$0xff] %vm2888, %v2910
        %v2913 = vpack.c.bf16 %v2910, %v2909
        %v2914 = vld [vmem:[#allocation5] sm:$0xf]
        %v2915 = vld [vmem:[#allocation5 + $0x4] sm:$0xf]
        %v2916 = vld [vmem:[#allocation5 + $0x8] sm:$0xf]
        %v2917 = vld [vmem:[#allocation5 + $0xc] sm:$0xf]
        %v2918 = vld [vmem:[#allocation5 + $0x10] sm:$0xf]
        %v2919 = vld [vmem:[#allocation5 + $0x14] sm:$0xf]
        %v2926 = vunpack.c.l.b16 %v2914
        %v2927 = vunpack.c.l.b16 %v2915
        %v2928 = vunpack.c.l.b16 %v2916
        %v2929 = vunpack.c.l.b16 %v2917
        %v2930 = vunpack.c.l.b16 %v2918
        %v2931 = vunpack.c.l.b16 %v2919
        %v2932 = vpack.c.b16 %v2927, %v2926
        %v2933 = vpack.c.b16 %v2929, %v2928
        %v2934 = vpack.c.b16 %v2931, %v2930
        %v2939 = vsel %vm2888, %v2913, 0
        %2941 = vmatpush.bf16.msra.mxu0 0
        %2942 = vmatpush.bf16.msra.mxu0 0
        %2943 = vmatpush.bf16.msra.mxu0 0
        %2944 = vmatpush.bf16.msra.mxu0 0
        %2945 = vmatpush.bf16.msra.mxu0 0
        %2946 = vmatpush.bf16.msra.mxu0 %v2934
        %2947 = vmatpush.bf16.msra.mxu0 %v2933
        %2948 = vmatpush.bf16.msra.mxu0 %v2932
        %2949 = vmatmul.bf16.gmra.mxu0 %v2939
        %v2950 = vpop.f32.mrf.mxu0
        %v2951 = vadd.f32 0.0, %v2950
        %v2952 = vpop.f32.mrf.mxu0
        %v2953 = vadd.f32 0.0, %v2952
        %2954 = vdwg.mxu0
        %v2955 = vpack.c.bf16 %v2951, %v2951
        %v2956 = vpack.c.bf16 %v2953, %v2953
        %2957 = vst.msk [vmem:[#allocation6] sm:$0xf] %vm2266, %v2955
        %2958 = vst.msk [vmem:[#allocation6 + $0x4] sm:$0xf] %vm2266, %v2956
        %s2959 = scalar_lea.vmem [#allocation4], 24
        %v2960 = vld [vmem:[%s2959] sm:$0xf]
        %v2961 = vld [vmem:[%s2959 + $0x4] sm:$0xf]
        %v2962 = vld [vmem:[%s2959 + $0x8] sm:$0xf]
        %v2963 = vld [vmem:[%s2959 + $0xc] sm:$0xf]
        %v2964 = vld [vmem:[%s2959 + $0x10] sm:$0xf]
        %v2965 = vld [vmem:[%s2959 + $0x14] sm:$0xf]
        %2966 = vrot.lane.b32.xlu0 %v2846, 96
        %v2967 = vpop.permute.xlu0 %2966
        %v2974 = vunpack.c.l.b16 %v2960
        %v2975 = vunpack.c.l.b16 %v2961
        %v2976 = vunpack.c.l.b16 %v2962
        %v2977 = vunpack.c.l.b16 %v2963
        %v2978 = vunpack.c.l.b16 %v2964
        %v2979 = vunpack.c.l.b16 %v2965
        %v2980 = vpack.c.b16 %v2975, %v2974
        %v2981 = vpack.c.b16 %v2977, %v2976
        %v2982 = vpack.c.b16 %v2979, %v2978
        %v2984 = vsel %vm2184, %v2967, 0
        %v2987 = vsel %vm2184, %v2980, 0
        %v2990 = vsel %vm2184, %v2981, 0
        %v2993 = vsel %vm2184, %v2982, 0
        %2995 = vmatpush.bf16.xpose.msra.mxu0 0
        %2996 = vmatpush.bf16.xpose.msra.mxu0 0
        %2997 = vmatpush.bf16.xpose.msra.mxu0 0
        %2998 = vmatpush.bf16.xpose.msra.mxu0 0
        %2999 = vmatpush.bf16.xpose.msra.mxu0 0
        %3000 = vmatpush.bf16.xpose.msra.mxu0 %v2993
        %3001 = vmatpush.bf16.xpose.msra.mxu0 %v2990
        %3002 = vmatpush.bf16.xpose.msra.mxu0 %v2987
        %3003 = vmatmul.bf16.gmra.mxu0 %v2984
        %v3004 = vpop.f32.mrf.mxu0
        %v3005 = vadd.f32 %v2840, %v3004
        %v3006 = vpop.f32.mrf.mxu0
        %v3007 = vadd.f32 %v2840, %v3006
        %3008 = vdwg.mxu0
        %v3009 = vsel %vm2888, %v3005, -inf
        %3010 = vmax.xlane.f32.xlu0 %v3009
        %v3011 = vpop.xlane.xlu0 %3010
        %v3012 = vsel %vm2888, %v3007, -inf
        %3013 = vmax.xlane.f32.xlu0 %v3012
        %v3014 = vpop.xlane.xlu0 %3013
        %v3015 = vsub.f32 %v3005, %v3011
        %v3016 = vsub.f32 %v3007, %v3014
        %v3017 = vmul.f32 %v3015, 1.442695
        %v3018 = vpow.pop %v3017
        %v3019 = vmul.f32 %v3016, 1.442695
        %v3020 = vpow.pop %v3019
        %v3021 = vsel %vm2888, %v3018, 0.0
        %3022 = vadd.xlane.f32.xlu0 %v3021
        %v3023 = vpop.xlane.xlu0 %3022
        %v3024 = vsel %vm2888, %v3020, 0.0
        %3025 = vadd.xlane.f32.xlu0 %v3024
        %v3026 = vpop.xlane.xlu0 %3025
        %v3027 = vrcp.pop %v3023
        %v3028 = vrcp.pop %v3026
        %v3029 = vmul.f32 %v3018, %v3027
        %v3030 = vmul.f32 %v3020, %v3028
        %v3031 = vld [vmem:[#allocation7] sm:$0xff]
        %v3032 = vld [vmem:[#allocation7 + $0x8] sm:$0xff]
        %v3033 = vadd.f32 %v3031, %v3029
        %v3034 = vadd.f32 %v3032, %v3030
        %3035 = vst.msk [vmem:[#allocation7] sm:$0xff] %vm2888, %v3033
        %3036 = vst.msk [vmem:[#allocation7 + $0x8] sm:$0xff] %vm2888, %v3034
        %v3037 = vpack.c.bf16 %v3030, %v3029
        %s3038 = scalar_lea.vmem [#allocation5], 24
        %v3039 = vld [vmem:[%s3038] sm:$0xf]
        %v3040 = vld [vmem:[%s3038 + $0x4] sm:$0xf]
        %v3041 = vld [vmem:[%s3038 + $0x8] sm:$0xf]
        %v3042 = vld [vmem:[%s3038 + $0xc] sm:$0xf]
        %v3043 = vld [vmem:[%s3038 + $0x10] sm:$0xf]
        %v3044 = vld [vmem:[%s3038 + $0x14] sm:$0xf]
        %v3051 = vunpack.c.l.b16 %v3039
        %v3052 = vunpack.c.l.b16 %v3040
        %v3053 = vunpack.c.l.b16 %v3041
        %v3054 = vunpack.c.l.b16 %v3042
        %v3055 = vunpack.c.l.b16 %v3043
        %v3056 = vunpack.c.l.b16 %v3044
        %v3057 = vpack.c.b16 %v3052, %v3051
        %v3058 = vpack.c.b16 %v3054, %v3053
        %v3059 = vpack.c.b16 %v3056, %v3055
        %v3064 = vsel %vm2888, %v3037, 0
        %3066 = vmatpush.bf16.msra.mxu0 0
        %3067 = vmatpush.bf16.msra.mxu0 0
        %3068 = vmatpush.bf16.msra.mxu0 0
        %3069 = vmatpush.bf16.msra.mxu0 0
        %3070 = vmatpush.bf16.msra.mxu0 0
        %3071 = vmatpush.bf16.msra.mxu0 %v3059
        %3072 = vmatpush.bf16.msra.mxu0 %v3058
        %3073 = vmatpush.bf16.msra.mxu0 %v3057
        %3074 = vmatmul.bf16.gmra.mxu0 %v3064
        %v3075 = vpop.f32.mrf.mxu0
        %v3076 = vadd.f32 0.0, %v3075
        %v3077 = vpop.f32.mrf.mxu0
        %v3078 = vadd.f32 0.0, %v3077
        %3079 = vdwg.mxu0
        %v3080 = vpack.c.bf16 %v3076, %v3076
        %v3081 = vpack.c.bf16 %v3078, %v3078
        %3084 = vrot.lane.b32.xlu0 %v3080, 32
        %v3085 = vpop.permute.xlu0 %3084
        %3086 = vrot.lane.b32.xlu0 %v3081, 32
        %v3087 = vpop.permute.xlu0 %3086
        %3090 = vst.msk [vmem:[#allocation6] sm:$0xf] %vm2376, %v3085
        %3091 = vst.msk [vmem:[#allocation6 + $0x4] sm:$0xf] %vm2376, %v3087
        %s3092 = scalar_lea.vmem [#allocation4], 48
        %v3093 = vld [vmem:[%s3092] sm:$0xf]
        %v3094 = vld [vmem:[%s3092 + $0x4] sm:$0xf]
        %v3095 = vld [vmem:[%s3092 + $0x8] sm:$0xf]
        %v3096 = vld [vmem:[%s3092 + $0xc] sm:$0xf]
        %v3097 = vld [vmem:[%s3092 + $0x10] sm:$0xf]
        %v3098 = vld [vmem:[%s3092 + $0x14] sm:$0xf]
        %3099 = vrot.lane.b32.xlu0 %v2846, 64
        %v3100 = vpop.permute.xlu0 %3099
        %v3107 = vunpack.c.l.b16 %v3093
        %v3108 = vunpack.c.l.b16 %v3094
        %v3109 = vunpack.c.l.b16 %v3095
        %v3110 = vunpack.c.l.b16 %v3096
        %v3111 = vunpack.c.l.b16 %v3097
        %v3112 = vunpack.c.l.b16 %v3098
        %v3113 = vpack.c.b16 %v3108, %v3107
        %v3114 = vpack.c.b16 %v3110, %v3109
        %v3115 = vpack.c.b16 %v3112, %v3111
        %v3117 = vsel %vm2184, %v3100, 0
        %v3120 = vsel %vm2184, %v3113, 0
        %v3123 = vsel %vm2184, %v3114, 0
        %v3126 = vsel %vm2184, %v3115, 0
        %3128 = vmatpush.bf16.xpose.msra.mxu0 0
        %3129 = vmatpush.bf16.xpose.msra.mxu0 0
        %3130 = vmatpush.bf16.xpose.msra.mxu0 0
        %3131 = vmatpush.bf16.xpose.msra.mxu0 0
        %3132 = vmatpush.bf16.xpose.msra.mxu0 0
        %3133 = vmatpush.bf16.xpose.msra.mxu0 %v3126
        %3134 = vmatpush.bf16.xpose.msra.mxu0 %v3123
        %3135 = vmatpush.bf16.xpose.msra.mxu0 %v3120
        %3136 = vmatmul.bf16.gmra.mxu0 %v3117
        %v3137 = vpop.f32.mrf.mxu0
        %v3138 = vadd.f32 %v2840, %v3137
        %v3139 = vpop.f32.mrf.mxu0
        %v3140 = vadd.f32 %v2840, %v3139
        %3141 = vdwg.mxu0
        %v3142 = vsel %vm2888, %v3138, -inf
        %3143 = vmax.xlane.f32.xlu0 %v3142
        %v3144 = vpop.xlane.xlu0 %3143
        %v3145 = vsel %vm2888, %v3140, -inf
        %3146 = vmax.xlane.f32.xlu0 %v3145
        %v3147 = vpop.xlane.xlu0 %3146
        %v3148 = vsub.f32 %v3138, %v3144
        %v3149 = vsub.f32 %v3140, %v3147
        %v3150 = vmul.f32 %v3148, 1.442695
        %v3151 = vpow.pop %v3150
        %v3152 = vmul.f32 %v3149, 1.442695
        %v3153 = vpow.pop %v3152
        %v3154 = vsel %vm2888, %v3151, 0.0
        %3155 = vadd.xlane.f32.xlu0 %v3154
        %v3156 = vpop.xlane.xlu0 %3155
        %v3157 = vsel %vm2888, %v3153, 0.0
        %3158 = vadd.xlane.f32.xlu0 %v3157
        %v3159 = vpop.xlane.xlu0 %3158
        %v3160 = vrcp.pop %v3156
        %v3161 = vrcp.pop %v3159
        %v3162 = vmul.f32 %v3151, %v3160
        %v3163 = vmul.f32 %v3153, %v3161
        %v3164 = vld [vmem:[#allocation7] sm:$0xff]
        %v3165 = vld [vmem:[#allocation7 + $0x8] sm:$0xff]
        %v3166 = vadd.f32 %v3164, %v3162
        %v3167 = vadd.f32 %v3165, %v3163
        %3168 = vst.msk [vmem:[#allocation7] sm:$0xff] %vm2888, %v3166
        %3169 = vst.msk [vmem:[#allocation7 + $0x8] sm:$0xff] %vm2888, %v3167
        %v3170 = vpack.c.bf16 %v3163, %v3162
        %s3171 = scalar_lea.vmem [#allocation5], 48
        %v3172 = vld [vmem:[%s3171] sm:$0xf]
        %v3173 = vld [vmem:[%s3171 + $0x4] sm:$0xf]
        %v3174 = vld [vmem:[%s3171 + $0x8] sm:$0xf]
        %v3175 = vld [vmem:[%s3171 + $0xc] sm:$0xf]
        %v3176 = vld [vmem:[%s3171 + $0x10] sm:$0xf]
        %v3177 = vld [vmem:[%s3171 + $0x14] sm:$0xf]
        %v3184 = vunpack.c.l.b16 %v3172
        %v3185 = vunpack.c.l.b16 %v3173
        %v3186 = vunpack.c.l.b16 %v3174
        %v3187 = vunpack.c.l.b16 %v3175
        %v3188 = vunpack.c.l.b16 %v3176
        %v3189 = vunpack.c.l.b16 %v3177
        %v3190 = vpack.c.b16 %v3185, %v3184
        %v3191 = vpack.c.b16 %v3187, %v3186
        %v3192 = vpack.c.b16 %v3189, %v3188
        %v3197 = vsel %vm2888, %v3170, 0
        %3199 = vmatpush.bf16.msra.mxu0 0
        %3200 = vmatpush.bf16.msra.mxu0 0
        %3201 = vmatpush.bf16.msra.mxu0 0
        %3202 = vmatpush.bf16.msra.mxu0 0
        %3203 = vmatpush.bf16.msra.mxu0 0
        %3204 = vmatpush.bf16.msra.mxu0 %v3192
        %3205 = vmatpush.bf16.msra.mxu0 %v3191
        %3206 = vmatpush.bf16.msra.mxu0 %v3190
        %3207 = vmatmul.bf16.gmra.mxu0 %v3197
        %v3208 = vpop.f32.mrf.mxu0
        %v3209 = vadd.f32 0.0, %v3208
        %v3210 = vpop.f32.mrf.mxu0
        %v3211 = vadd.f32 0.0, %v3210
        %3212 = vdwg.mxu0
        %v3213 = vpack.c.bf16 %v3209, %v3209
        %v3214 = vpack.c.bf16 %v3211, %v3211
        %3217 = vrot.lane.b32.xlu0 %v3213, 64
        %v3218 = vpop.permute.xlu0 %3217
        %3219 = vrot.lane.b32.xlu0 %v3214, 64
        %v3220 = vpop.permute.xlu0 %3219
        %3223 = vst.msk [vmem:[#allocation6] sm:$0xf] %vm2486, %v3218
        %3224 = vst.msk [vmem:[#allocation6 + $0x4] sm:$0xf] %vm2486, %v3220
        %s3225 = scalar_lea.vmem [#allocation4], 72
        %v3226 = vld [vmem:[%s3225] sm:$0xf]
        %v3227 = vld [vmem:[%s3225 + $0x4] sm:$0xf]
        %v3228 = vld [vmem:[%s3225 + $0x8] sm:$0xf]
        %v3229 = vld [vmem:[%s3225 + $0xc] sm:$0xf]
        %v3230 = vld [vmem:[%s3225 + $0x10] sm:$0xf]
        %v3231 = vld [vmem:[%s3225 + $0x14] sm:$0xf]
        %3232 = vrot.lane.b32.xlu0 %v2846, 32
        %v3233 = vpop.permute.xlu0 %3232
        %v3240 = vunpack.c.l.b16 %v3226
        %v3241 = vunpack.c.l.b16 %v3227
        %v3242 = vunpack.c.l.b16 %v3228
        %v3243 = vunpack.c.l.b16 %v3229
        %v3244 = vunpack.c.l.b16 %v3230
        %v3245 = vunpack.c.l.b16 %v3231
        %v3246 = vpack.c.b16 %v3241, %v3240
        %v3247 = vpack.c.b16 %v3243, %v3242
        %v3248 = vpack.c.b16 %v3245, %v3244
        %v3250 = vsel %vm2184, %v3233, 0
        %v3253 = vsel %vm2184, %v3246, 0
        %v3256 = vsel %vm2184, %v3247, 0
        %v3259 = vsel %vm2184, %v3248, 0
        %3261 = vmatpush.bf16.xpose.msra.mxu0 0
        %3262 = vmatpush.bf16.xpose.msra.mxu0 0
        %3263 = vmatpush.bf16.xpose.msra.mxu0 0
        %3264 = vmatpush.bf16.xpose.msra.mxu0 0
        %3265 = vmatpush.bf16.xpose.msra.mxu0 0
        %3266 = vmatpush.bf16.xpose.msra.mxu0 %v3259
        %3267 = vmatpush.bf16.xpose.msra.mxu0 %v3256
        %3268 = vmatpush.bf16.xpose.msra.mxu0 %v3253
        %3269 = vmatmul.bf16.gmra.mxu0 %v3250
        %v3270 = vpop.f32.mrf.mxu0
        %v3271 = vadd.f32 %v2840, %v3270
        %v3272 = vpop.f32.mrf.mxu0
        %v3273 = vadd.f32 %v2840, %v3272
        %3274 = vdwg.mxu0
        %v3275 = vsel %vm2888, %v3271, -inf
        %3276 = vmax.xlane.f32.xlu0 %v3275
        %v3277 = vpop.xlane.xlu0 %3276
        %v3278 = vsel %vm2888, %v3273, -inf
        %3279 = vmax.xlane.f32.xlu0 %v3278
        %v3280 = vpop.xlane.xlu0 %3279
        %v3281 = vsub.f32 %v3271, %v3277
        %v3282 = vsub.f32 %v3273, %v3280
        %v3283 = vmul.f32 %v3281, 1.442695
        %v3284 = vpow.pop %v3283
        %v3285 = vmul.f32 %v3282, 1.442695
        %v3286 = vpow.pop %v3285
        %v3287 = vsel %vm2888, %v3284, 0.0
        %3288 = vadd.xlane.f32.xlu0 %v3287
        %v3289 = vpop.xlane.xlu0 %3288
        %v3290 = vsel %vm2888, %v3286, 0.0
        %3291 = vadd.xlane.f32.xlu0 %v3290
        %v3292 = vpop.xlane.xlu0 %3291
        %v3293 = vrcp.pop %v3289
        %v3294 = vrcp.pop %v3292
        %v3295 = vmul.f32 %v3284, %v3293
        %v3296 = vmul.f32 %v3286, %v3294
        %v3297 = vld [vmem:[#allocation7] sm:$0xff]
        %v3298 = vld [vmem:[#allocation7 + $0x8] sm:$0xff]
        %v3299 = vadd.f32 %v3297, %v3295
        %v3300 = vadd.f32 %v3298, %v3296
        %3301 = vst.msk [vmem:[#allocation7] sm:$0xff] %vm2888, %v3299
        %3302 = vst.msk [vmem:[#allocation7 + $0x8] sm:$0xff] %vm2888, %v3300
        %v3303 = vpack.c.bf16 %v3296, %v3295
        %s3304 = scalar_lea.vmem [#allocation5], 72
        %v3305 = vld [vmem:[%s3304] sm:$0xf]
        %v3306 = vld [vmem:[%s3304 + $0x4] sm:$0xf]
        %v3307 = vld [vmem:[%s3304 + $0x8] sm:$0xf]
        %v3308 = vld [vmem:[%s3304 + $0xc] sm:$0xf]
        %v3309 = vld [vmem:[%s3304 + $0x10] sm:$0xf]
        %v3310 = vld [vmem:[%s3304 + $0x14] sm:$0xf]
        %v3317 = vunpack.c.l.b16 %v3305
        %v3318 = vunpack.c.l.b16 %v3306
        %v3319 = vunpack.c.l.b16 %v3307
        %v3320 = vunpack.c.l.b16 %v3308
        %v3321 = vunpack.c.l.b16 %v3309
        %v3322 = vunpack.c.l.b16 %v3310
        %v3323 = vpack.c.b16 %v3318, %v3317
        %v3324 = vpack.c.b16 %v3320, %v3319
        %v3325 = vpack.c.b16 %v3322, %v3321
        %v3330 = vsel %vm2888, %v3303, 0
        %3332 = vmatpush.bf16.msra.mxu0 0
        %3333 = vmatpush.bf16.msra.mxu0 0
        %3334 = vmatpush.bf16.msra.mxu0 0
        %3335 = vmatpush.bf16.msra.mxu0 0
        %3336 = vmatpush.bf16.msra.mxu0 0
        %3337 = vmatpush.bf16.msra.mxu0 %v3325
        %3338 = vmatpush.bf16.msra.mxu0 %v3324
        %3339 = vmatpush.bf16.msra.mxu0 %v3323
        %3340 = vmatmul.bf16.gmra.mxu0 %v3330
        %v3341 = vpop.f32.mrf.mxu0
        %v3342 = vadd.f32 0.0, %v3341
        %v3343 = vpop.f32.mrf.mxu0
        %v3344 = vadd.f32 0.0, %v3343
        %3345 = vdwg.mxu0
        %v3346 = vpack.c.bf16 %v3342, %v3342
        %v3347 = vpack.c.bf16 %v3344, %v3344
        %3350 = vrot.lane.b32.xlu0 %v3346, 96
        %v3351 = vpop.permute.xlu0 %3350
        %3352 = vrot.lane.b32.xlu0 %v3347, 96
        %v3353 = vpop.permute.xlu0 %3352
        %3356 = vst.msk [vmem:[#allocation6] sm:$0xf] %vm2596, %v3351
        %3357 = vst.msk [vmem:[#allocation6 + $0x4] sm:$0xf] %vm2596, %v3353
        %v3358 = vld [vmem:[#allocation6] sm:$0xf]
        %v3359 = vld [vmem:[#allocation6 + $0x4] sm:$0xf]
        %v3360 = vld [vmem:[#allocation22] sm:$0xf]
        %v3361 = vld [vmem:[#allocation22 + $0x4] sm:$0xf]
        %v3362 = vld [vmem:[#allocation22 + $0x8] sm:$0xf]
        %v3363 = vld [vmem:[#allocation22 + $0xc] sm:$0xf]
        %v3364 = vld [vmem:[#allocation22 + $0x10] sm:$0xf]
        %v3365 = vld [vmem:[#allocation22 + $0x14] sm:$0xf]
        %v3366 = vld [vmem:[#allocation22 + $0x18] sm:$0xf]
        %v3367 = vld [vmem:[#allocation22 + $0x1c] sm:$0xf]
        %v3368 = vld [vmem:[#allocation22 + $0x20] sm:$0xf]
        %v3369 = vld [vmem:[#allocation22 + $0x24] sm:$0xf]
        %v3370 = vld [vmem:[#allocation22 + $0x28] sm:$0xf]
        %v3371 = vld [vmem:[#allocation22 + $0x2c] sm:$0xf]
        %v3372 = vld [vmem:[#allocation22 + $0x30] sm:$0xf]
        %v3373 = vld [vmem:[#allocation22 + $0x34] sm:$0xf]
        %v3374 = vld [vmem:[#allocation22 + $0x38] sm:$0xf]
        %v3375 = vld [vmem:[#allocation22 + $0x3c] sm:$0xf]
        %v3376 = vld [vmem:[%s35] sm:$0x1]
        %v3378 = vperm.slane %v3376, 0
        %v3382 = vunpack.c.l.b16 %v3358
        %v3383 = vunpack.c.l.b16 %v3359
        %v3384 = vpack.c.b16 %v3383, %v3382
        %v3402 = vunpack.c.l.b16 %v3360
        %v3403 = vunpack.c.l.b16 %v3361
        %v3404 = vunpack.c.l.b16 %v3362
        %v3405 = vunpack.c.l.b16 %v3363
        %v3406 = vunpack.c.l.b16 %v3364
        %v3407 = vunpack.c.l.b16 %v3365
        %v3408 = vunpack.c.l.b16 %v3366
        %v3409 = vunpack.c.l.b16 %v3367
        %v3410 = vunpack.c.l.b16 %v3368
        %v3411 = vunpack.c.l.b16 %v3369
        %v3412 = vunpack.c.l.b16 %v3370
        %v3413 = vunpack.c.l.b16 %v3371
        %v3414 = vunpack.c.l.b16 %v3372
        %v3415 = vunpack.c.l.b16 %v3373
        %v3416 = vunpack.c.l.b16 %v3374
        %v3417 = vunpack.c.l.b16 %v3375
        %v3418 = vpack.c.b16 %v3403, %v3402
        %v3419 = vpack.c.b16 %v3405, %v3404
        %v3420 = vpack.c.b16 %v3407, %v3406
        %v3421 = vpack.c.b16 %v3409, %v3408
        %v3422 = vpack.c.b16 %v3411, %v3410
        %v3423 = vpack.c.b16 %v3413, %v3412
        %v3424 = vpack.c.b16 %v3415, %v3414
        %v3425 = vpack.c.b16 %v3417, %v3416
        %3434 = vmatpush.bf16.msra.mxu0 %v3425
        %3435 = vmatpush.bf16.msra.mxu0 %v3424
        %3436 = vmatpush.bf16.msra.mxu0 %v3423
        %3437 = vmatpush.bf16.msra.mxu0 %v3422
        %3438 = vmatpush.bf16.msra.mxu0 %v3421
        %3439 = vmatpush.bf16.msra.mxu0 %v3420
        %3440 = vmatpush.bf16.msra.mxu0 %v3419
        %3441 = vmatpush.bf16.msra.mxu0 %v3418
        %3442 = vmatmul.bf16.gmra.mxu0 %v3384
        %v3443 = vpop.f32.mrf.mxu0
        %v3444 = vadd.f32 %v3378, %v3443
        %v3445 = vpop.f32.mrf.mxu0
        %v3446 = vadd.f32 %v3378, %v3445
        %3447 = vdwg.mxu0
        %v3448 = vadd.f32 %v2689, %v3444
        %v3449 = vadd.f32 %v2690, %v3446
        %v3450 = vld [vmem:[#allocation7] sm:$0xff]
        %v3451 = vld [vmem:[#allocation7 + $0x8] sm:$0xff]
        %v3452 = vlaneseq
        %v3453 = vand.u32 %v3452, 127
        %v3454 = vsel %vm2888, %v3450, -inf
        %3455 = vmax.xlane.f32.xlu0 %v3454
        %v3456 = vpop.xlane.xlu0 %3455
        %v3457 = vsel %vm2888, %v3451, -inf
        %3458 = vmax.xlane.f32.xlu0 %v3457
        %v3459 = vpop.xlane.xlu0 %3458
        %vm3460 = vcmp.eq.f32.partialorder %v3450, %v3456
        %vm3461 = vcmp.eq.f32.partialorder %v3451, %v3459
        %v3462 = vsel %vm3460, %v3453, 48
        %v3463 = vsel %vm3461, %v3453, 48
        %v3464 = vsel %vm2888, %v3462, 2147483647
        %v3465 = vand.u32 %v3464, 65535
        %v3466 = vshra.s32 %v3464, 16
        %v3467 = vcvt.s32.f32 %v3465
        %v3468 = vcvt.s32.f32 %v3466
        %3469 = vmin.xlane.f32.xlu0 %v3468
        %v3470 = vpop.xlane.xlu0 %3469
        %vm3471 = vcmp.eq.f32.partialorder %v3468, %v3470
        %v3472 = vsel %vm3471, %v3467, inf
        %3473 = vmin.xlane.f32.xlu0 %v3472
        %v3474 = vpop.xlane.xlu0 %3473
        %v3475 = vcvt.f32.s32 %v3474
        %v3476 = vcvt.f32.s32 %v3470
        %v3477 = vshll.u32 %v3476, 16
        %v3478 = vadd.s32 %v3477, %v3475
        %v3479 = vsel %vm2888, %v3463, 2147483647
        %v3480 = vand.u32 %v3479, 65535
        %v3481 = vshra.s32 %v3479, 16
        %v3482 = vcvt.s32.f32 %v3480
        %v3483 = vcvt.s32.f32 %v3481
        %3484 = vmin.xlane.f32.xlu0 %v3483
        %v3485 = vpop.xlane.xlu0 %3484
        %vm3486 = vcmp.eq.f32.partialorder %v3483, %v3485
        %v3487 = vsel %vm3486, %v3482, inf
        %3488 = vmin.xlane.f32.xlu0 %v3487
        %v3489 = vpop.xlane.xlu0 %3488
        %v3490 = vcvt.f32.s32 %v3489
        %v3491 = vcvt.f32.s32 %v3485
        %v3492 = vshll.u32 %v3491, 16
        %v3493 = vadd.s32 %v3492, %v3490
        %vm3494 = vcmask 7168
        %3495 = vst.msk [vmem:[%s1221] sm:$0xff] %vm3494, %v3478
        %3496 = vst.msk [vmem:[%s1221 + $0x8] sm:$0xff] %vm3494, %v3493
        %3497 = vadd.xlane.f32.xlu0 %v3448
        %v3498 = vpop.xlane.xlu0 %3497
        %3499 = vadd.xlane.f32.xlu0 %v3449
        %v3500 = vpop.xlane.xlu0 %3499
        %v3501 = vmul.f32 %v3498, %v2011
        %v3502 = vmul.f32 %v3500, %v2011
        %v3503 = vsub.f32 %v3448, %v3501
        %v3504 = vsub.f32 %v3449, %v3502
        %v3505 = vmul.f32 %v3503, %v3503
        %v3506 = vmul.f32 %v3504, %v3504
        %3507 = vadd.xlane.f32.xlu0 %v3505
        %v3508 = vpop.xlane.xlu0 %3507
        %3509 = vadd.xlane.f32.xlu0 %v3506
        %v3510 = vpop.xlane.xlu0 %3509
        %v3511 = vmul.f32 %v3508, %v2011
        %v3512 = vmul.f32 %v3510, %v2011
        %v3513 = vadd.f32 %v3511, 1e-05
        %v3514 = vadd.f32 %v3512, 1e-05
        %v3515 = vrsqrt.pop %v3513
        %v3516 = vmul.f32 %v3515, %v3513
        %v3517 = vmul.f32 %v3516, %v3515
        %v3518 = vmul.f32 0.5, %v3517
        %v3519 = vsub.f32 1.5, %v3518
        %v3520 = vmul.f32 %v3515, %v3519
        %vm3521 = vweird.f32 %v3513
        %vm3522 = vweird.f32 %v3515
        %vm3523 = vmor %vm3521, %vm3522
        %v3524 = vsel %vm3523, %v3515, %v3520
        %v3525 = vrsqrt.pop %v3514
        %v3526 = vmul.f32 %v3525, %v3514
        %v3527 = vmul.f32 %v3526, %v3525
        %v3528 = vmul.f32 0.5, %v3527
        %v3529 = vsub.f32 1.5, %v3528
        %v3530 = vmul.f32 %v3525, %v3529
        %vm3531 = vweird.f32 %v3514
        %vm3532 = vweird.f32 %v3525
        %vm3533 = vmor %vm3531, %vm3532
        %v3534 = vsel %vm3533, %v3525, %v3530
        %v3535 = vmul.f32 %v3503, %v3524
        %v3536 = vmul.f32 %v3504, %v3534
        %v3537 = vld [vmem:[%s45] sm:$0x1]
        %v3539 = vperm.slane %v3537, 0
        %v3541 = vmul.f32 %v3535, %v3539
        %v3542 = vmul.f32 %v3536, %v3539
        %v3543 = vld [vmem:[%s47] sm:$0x1]
        %v3545 = vperm.slane %v3543, 0
        %v3547 = vadd.f32 %v3541, %v3545
        %v3548 = vadd.f32 %v3542, %v3545
        %v3549 = vpack.c.bf16 %v3548, %v3547
        %v3550 = vld [vmem:[#allocation23] sm:$0xff]
        %v3551 = vld [vmem:[#allocation23 + $0x8] sm:$0xff]
        %v3552 = vld [vmem:[#allocation23 + $0x10] sm:$0xff]
        %v3553 = vld [vmem:[#allocation23 + $0x18] sm:$0xff]
        %v3554 = vld [vmem:[#allocation23 + $0x20] sm:$0xff]
        %v3555 = vld [vmem:[#allocation23 + $0x28] sm:$0xff]
        %v3556 = vld [vmem:[#allocation23 + $0x30] sm:$0xff]
        %v3557 = vld [vmem:[#allocation23 + $0x38] sm:$0xff]
        %v3558 = vld [vmem:[#allocation23 + $0x40] sm:$0xff]
        %v3559 = vld [vmem:[#allocation23 + $0x48] sm:$0xff]
        %v3560 = vld [vmem:[#allocation23 + $0x50] sm:$0xff]
        %v3561 = vld [vmem:[#allocation23 + $0x58] sm:$0xff]
        %v3562 = vld [vmem:[#allocation23 + $0x60] sm:$0xff]
        %v3563 = vld [vmem:[#allocation23 + $0x68] sm:$0xff]
        %v3564 = vld [vmem:[#allocation23 + $0x70] sm:$0xff]
        %v3565 = vld [vmem:[#allocation23 + $0x78] sm:$0xff]
        %v3566 = vld [vmem:[%s51] sm:$0x3]
        %v3568 = vperm.slane %v3566, 0
        %v3569 = vperm.slane %v3566, 1
        %v3588 = vunpack.c.l.b16 %v3550
        %v3589 = vunpack.c.h.b16 %v3550
        %v3590 = vunpack.c.l.b16 %v3551
        %v3591 = vunpack.c.h.b16 %v3551
        %v3592 = vunpack.c.l.b16 %v3552
        %v3593 = vunpack.c.h.b16 %v3552
        %v3594 = vunpack.c.l.b16 %v3553
        %v3595 = vunpack.c.h.b16 %v3553
        %v3596 = vunpack.c.l.b16 %v3554
        %v3597 = vunpack.c.h.b16 %v3554
        %v3598 = vunpack.c.l.b16 %v3555
        %v3599 = vunpack.c.h.b16 %v3555
        %v3600 = vunpack.c.l.b16 %v3556
        %v3601 = vunpack.c.h.b16 %v3556
        %v3602 = vunpack.c.l.b16 %v3557
        %v3603 = vunpack.c.h.b16 %v3557
        %v3604 = vunpack.c.l.b16 %v3558
        %v3605 = vunpack.c.h.b16 %v3558
        %v3606 = vunpack.c.l.b16 %v3559
        %v3607 = vunpack.c.h.b16 %v3559
        %v3608 = vunpack.c.l.b16 %v3560
        %v3609 = vunpack.c.h.b16 %v3560
        %v3610 = vunpack.c.l.b16 %v3561
        %v3611 = vunpack.c.h.b16 %v3561
        %v3612 = vunpack.c.l.b16 %v3562
        %v3613 = vunpack.c.h.b16 %v3562
        %v3614 = vunpack.c.l.b16 %v3563
        %v3615 = vunpack.c.h.b16 %v3563
        %v3616 = vunpack.c.l.b16 %v3564
        %v3617 = vunpack.c.h.b16 %v3564
        %v3618 = vunpack.c.l.b16 %v3565
        %v3619 = vunpack.c.h.b16 %v3565
        %v3620 = vpack.c.b16 %v3590, %v3588
        %v3621 = vpack.c.b16 %v3591, %v3589
        %v3622 = vpack.c.b16 %v3594, %v3592
        %v3623 = vpack.c.b16 %v3595, %v3593
        %v3624 = vpack.c.b16 %v3598, %v3596
        %v3625 = vpack.c.b16 %v3599, %v3597
        %v3626 = vpack.c.b16 %v3602, %v3600
        %v3627 = vpack.c.b16 %v3603, %v3601
        %v3628 = vpack.c.b16 %v3606, %v3604
        %v3629 = vpack.c.b16 %v3607, %v3605
        %v3630 = vpack.c.b16 %v3610, %v3608
        %v3631 = vpack.c.b16 %v3611, %v3609
        %v3632 = vpack.c.b16 %v3614, %v3612
        %v3633 = vpack.c.b16 %v3615, %v3613
        %v3634 = vpack.c.b16 %v3618, %v3616
        %v3635 = vpack.c.b16 %v3619, %v3617
        %3652 = vmatpush.bf16.msra.mxu0 %v3634
        %3653 = vmatpush.bf16.msra.mxu0 %v3632
        %3654 = vmatpush.bf16.msra.mxu0 %v3630
        %3655 = vmatpush.bf16.msra.mxu0 %v3628
        %3656 = vmatpush.bf16.msra.mxu0 %v3626
        %3657 = vmatpush.bf16.msra.mxu0 %v3624
        %3658 = vmatpush.bf16.msra.mxu0 %v3622
        %3659 = vmatpush.bf16.msra.mxu0 %v3620
        %3660 = vmatmul.bf16.gmra.mxu0 %v3549
        %v3661 = vpop.f32.mrf.mxu0
        %v3662 = vadd.f32 %v3568, %v3661
        %v3663 = vpop.f32.mrf.mxu0
        %v3664 = vadd.f32 %v3568, %v3663
        %3665 = vdwg.mxu0
        %3666 = vmatpush.bf16.msra.mxu0 %v3635
        %3667 = vmatpush.bf16.msra.mxu0 %v3633
        %3668 = vmatpush.bf16.msra.mxu0 %v3631
        %3669 = vmatpush.bf16.msra.mxu0 %v3629
        %3670 = vmatpush.bf16.msra.mxu0 %v3627
        %3671 = vmatpush.bf16.msra.mxu0 %v3625
        %3672 = vmatpush.bf16.msra.mxu0 %v3623
        %3673 = vmatpush.bf16.msra.mxu0 %v3621
        %3674 = vmatmul.bf16.gmra.mxu0 %v3549
        %v3675 = vpop.f32.mrf.mxu0
        %v3676 = vadd.f32 %v3569, %v3675
        %v3677 = vpop.f32.mrf.mxu0
        %v3678 = vadd.f32 %v3569, %v3677
        %3679 = vdwg.mxu0
        %v3680 = vmax.f32 %v3662, 0.0
        %v3681 = vmax.f32 %v3676, 0.0
        %v3682 = vmax.f32 %v3664, 0.0
        %v3683 = vmax.f32 %v3678, 0.0
        %v3684 = vpack.c.bf16 %v3682, %v3680
        %v3685 = vpack.c.bf16 %v3683, %v3681
        %v3686 = vld [vmem:[#allocation25] sm:$0xf]
        %v3687 = vld [vmem:[#allocation25 + $0x4] sm:$0xf]
        %v3688 = vld [vmem:[#allocation25 + $0x8] sm:$0xf]
        %v3689 = vld [vmem:[#allocation25 + $0xc] sm:$0xf]
        %v3690 = vld [vmem:[#allocation25 + $0x10] sm:$0xf]
        %v3691 = vld [vmem:[#allocation25 + $0x14] sm:$0xf]
        %v3692 = vld [vmem:[#allocation25 + $0x18] sm:$0xf]
        %v3693 = vld [vmem:[#allocation25 + $0x1c] sm:$0xf]
        %v3694 = vld [vmem:[#allocation25 + $0x20] sm:$0xf]
        %v3695 = vld [vmem:[#allocation25 + $0x24] sm:$0xf]
        %v3696 = vld [vmem:[#allocation25 + $0x28] sm:$0xf]
        %v3697 = vld [vmem:[#allocation25 + $0x2c] sm:$0xf]
        %v3698 = vld [vmem:[#allocation25 + $0x30] sm:$0xf]
        %v3699 = vld [vmem:[#allocation25 + $0x34] sm:$0xf]
        %v3700 = vld [vmem:[#allocation25 + $0x38] sm:$0xf]
        %v3701 = vld [vmem:[#allocation25 + $0x3c] sm:$0xf]
        %v3702 = vld [vmem:[#allocation25 + $0x40] sm:$0xf]
        %v3703 = vld [vmem:[#allocation25 + $0x44] sm:$0xf]
        %v3704 = vld [vmem:[#allocation25 + $0x48] sm:$0xf]
        %v3705 = vld [vmem:[#allocation25 + $0x4c] sm:$0xf]
        %v3706 = vld [vmem:[#allocation25 + $0x50] sm:$0xf]
        %v3707 = vld [vmem:[#allocation25 + $0x54] sm:$0xf]
        %v3708 = vld [vmem:[#allocation25 + $0x58] sm:$0xf]
        %v3709 = vld [vmem:[#allocation25 + $0x5c] sm:$0xf]
        %v3710 = vld [vmem:[#allocation25 + $0x60] sm:$0xf]
        %v3711 = vld [vmem:[#allocation25 + $0x64] sm:$0xf]
        %v3712 = vld [vmem:[#allocation25 + $0x68] sm:$0xf]
        %v3713 = vld [vmem:[#allocation25 + $0x6c] sm:$0xf]
        %v3714 = vld [vmem:[#allocation25 + $0x70] sm:$0xf]
        %v3715 = vld [vmem:[#allocation25 + $0x74] sm:$0xf]
        %v3716 = vld [vmem:[#allocation25 + $0x78] sm:$0xf]
        %v3717 = vld [vmem:[#allocation25 + $0x7c] sm:$0xf]
        %v3718 = vld [vmem:[%s55] sm:$0x1]
        %v3720 = vperm.slane %v3718, 0
        %v3754 = vunpack.c.l.b16 %v3686
        %v3755 = vunpack.c.l.b16 %v3687
        %v3756 = vunpack.c.l.b16 %v3688
        %v3757 = vunpack.c.l.b16 %v3689
        %v3758 = vunpack.c.l.b16 %v3690
        %v3759 = vunpack.c.l.b16 %v3691
        %v3760 = vunpack.c.l.b16 %v3692
        %v3761 = vunpack.c.l.b16 %v3693
        %v3762 = vunpack.c.l.b16 %v3694
        %v3763 = vunpack.c.l.b16 %v3695
        %v3764 = vunpack.c.l.b16 %v3696
        %v3765 = vunpack.c.l.b16 %v3697
        %v3766 = vunpack.c.l.b16 %v3698
        %v3767 = vunpack.c.l.b16 %v3699
        %v3768 = vunpack.c.l.b16 %v3700
        %v3769 = vunpack.c.l.b16 %v3701
        %v3770 = vunpack.c.l.b16 %v3702
        %v3771 = vunpack.c.l.b16 %v3703
        %v3772 = vunpack.c.l.b16 %v3704
        %v3773 = vunpack.c.l.b16 %v3705
        %v3774 = vunpack.c.l.b16 %v3706
        %v3775 = vunpack.c.l.b16 %v3707
        %v3776 = vunpack.c.l.b16 %v3708
        %v3777 = vunpack.c.l.b16 %v3709
        %v3778 = vunpack.c.l.b16 %v3710
        %v3779 = vunpack.c.l.b16 %v3711
        %v3780 = vunpack.c.l.b16 %v3712
        %v3781 = vunpack.c.l.b16 %v3713
        %v3782 = vunpack.c.l.b16 %v3714
        %v3783 = vunpack.c.l.b16 %v3715
        %v3784 = vunpack.c.l.b16 %v3716
        %v3785 = vunpack.c.l.b16 %v3717
        %v3786 = vpack.c.b16 %v3755, %v3754
        %v3787 = vpack.c.b16 %v3757, %v3756
        %v3788 = vpack.c.b16 %v3759, %v3758
        %v3789 = vpack.c.b16 %v3761, %v3760
        %v3790 = vpack.c.b16 %v3763, %v3762
        %v3791 = vpack.c.b16 %v3765, %v3764
        %v3792 = vpack.c.b16 %v3767, %v3766
        %v3793 = vpack.c.b16 %v3769, %v3768
        %v3794 = vpack.c.b16 %v3771, %v3770
        %v3795 = vpack.c.b16 %v3773, %v3772
        %v3796 = vpack.c.b16 %v3775, %v3774
        %v3797 = vpack.c.b16 %v3777, %v3776
        %v3798 = vpack.c.b16 %v3779, %v3778
        %v3799 = vpack.c.b16 %v3781, %v3780
        %v3800 = vpack.c.b16 %v3783, %v3782
        %v3801 = vpack.c.b16 %v3785, %v3784
        %3818 = vmatpush.bf16.msra.mxu0 %v3793
        %3819 = vmatpush.bf16.msra.mxu0 %v3792
        %3820 = vmatpush.bf16.msra.mxu0 %v3791
        %3821 = vmatpush.bf16.msra.mxu0 %v3790
        %3822 = vmatpush.bf16.msra.mxu0 %v3789
        %3823 = vmatpush.bf16.msra.mxu0 %v3788
        %3824 = vmatpush.bf16.msra.mxu0 %v3787
        %3825 = vmatpush.bf16.msra.mxu0 %v3786
        %3826 = vmatmul.bf16.gmra.mxu0 %v3684
        %v3827 = vpop.f32.mrf.mxu0
        %v3828 = vadd.f32 %v3720, %v3827
        %v3829 = vpop.f32.mrf.mxu0
        %v3830 = vadd.f32 %v3720, %v3829
        %3831 = vdwg.mxu0
        %3832 = vmatpush.bf16.msra.mxu0 %v3801
        %3833 = vmatpush.bf16.msra.mxu0 %v3800
        %3834 = vmatpush.bf16.msra.mxu0 %v3799
        %3835 = vmatpush.bf16.msra.mxu0 %v3798
        %3836 = vmatpush.bf16.msra.mxu0 %v3797
        %3837 = vmatpush.bf16.msra.mxu0 %v3796
        %3838 = vmatpush.bf16.msra.mxu0 %v3795
        %3839 = vmatpush.bf16.msra.mxu0 %v3794
        %3840 = vmatmul.bf16.gmra.mxu0 %v3685
        %v3841 = vpop.f32.mrf.mxu0
        %v3842 = vadd.f32 %v3828, %v3841
        %v3843 = vpop.f32.mrf.mxu0
        %v3844 = vadd.f32 %v3830, %v3843
        %3845 = vdwg.mxu0
        %v3846 = vadd.f32 %v3448, %v3842
        %v3847 = vadd.f32 %v3449, %v3844
        %v3848 = vmul.f32 %v3846, %v2063
        %v3849 = vmul.f32 %v3847, %v2068
        %3850 = vst [vmem:[%s1183] sm:$0xff] %v3848
        %3851 = vst [vmem:[%s1183 + $0x8] sm:$0xff] %v3849
        %s3852 = sand.u32 %s726, 1
        %s3853 = scalar_lea.sflag [#allocation10], %s3852
        %s3854 = sand.u32 %s726, 1
        %s3855 = smul.addr %s3854, 16
        %s3856 = scalar_lea.vmem [#allocation26], %s3855
        %s3857 = smul.u32 2, %s89
        %p3858 = scmp.lt.s32.totalorder %s88, 1
        %s3859 = scalar_select %p3858, %s88, 1
        %p3860 = scmp.lt.s32.totalorder %s3857, 3
        %s3861 = scalar_select %p3860, %s3857, 3
        %s3862 = smul.addr %s3859, 4
        %s3863 = sadd.s32 %s3861, %s3862
        %s3864 = smul.addr %s3863, 8
        %s3865 = scalar_lea.vmem %s59, %s3864
        // Predicated region
        $region181: #{tpu_custom_call.1} parent=131 // pred_check
          %p3866 = pneg %p736
        $region182: #{tpu_custom_call.1} parent=131 // pred_check_branch
          %3868 = sbr.rel (%p3866) target = $region184
        $region183: #{tpu_custom_call.1} parent=131 // pred_region
          %s3869 = smul.u32 2, %s89
          %3871 = vsyncadd %s3853, 0
          %s3872 = smul.addr %s88, 4
          %s3873 = sadd.s32 %s3869, %s3872
          %s3874 = smul.addr %s3873, 8
          %s3875 = scalar_lea.hbm %s57, %s3874
          %s3876 = sshll.u32 %s3856, 4
          %s3877 = int_to_ptr.vmem [resolvable:$true] %s3876
          %s3878 = sshll.u32 %s3875, 4
          %s3879 = int_to_ptr.hbm [resolvable:$true] %s3878
          %3884 = dma.vmem_to_hbm [thread:$0]  %s3877, 256, %s3879, %s3853, 128, 128, 8
        $region184: #{tpu_custom_call.1} parent=131 // pred_fallthru
          _
        // Predicated region
        $region185: #{tpu_custom_call.1} parent=131 // pred_check
          %p3885 = pneg %p764
        $region186: #{tpu_custom_call.1} parent=131 // pred_check_branch
          %3887 = sbr.rel (%p3885) target = $region188
        $region187: #{tpu_custom_call.1} parent=131 // pred_region
          %s3888 = smul.u32 2, %s89
        $region188: #{tpu_custom_call.1} parent=131 // pred_fallthru
          _
      $region132: #{tpu_custom_call.1} parent=5 // pred_fallthru
        _
      %p3889 = scmp.le.s32.totalorder 2, %s79
      // Predicated region
      $region189: #{tpu_custom_call.1} parent=5 // pred_check
        %p3890 = pneg %p3889
      $region190: #{tpu_custom_call.1} parent=5 // pred_check_branch
        %3892 = sbr.rel (%p3890) target = $region192
      $region191: #{tpu_custom_call.1} parent=5 // pred_region
        %s3893 = ssub.s32 %s79, 2
        // Predicated region
        $region193: #{tpu_custom_call.1} parent=191 // pred_check
          %p3894 = pneg %p742
        $region194: #{tpu_custom_call.1} parent=191 // pred_check_branch
          %3896 = sbr.rel (%p3894) target = $region196
        $region195: #{tpu_custom_call.1} parent=191 // pred_region
          %s3897 = sand.u32 %s727, 1
          %s3898 = scalar_lea.sflag [#allocation10], %s3897
          %s3899 = sand.u32 %s727, 1
          %s3900 = smul.addr %s3899, 16
          %s3901 = scalar_lea.vmem [#allocation26], %s3900
          %3903 = dma.done %s3898, 256
        $region196: #{tpu_custom_call.1} parent=191 // pred_fallthru
          _
        // Predicated region
        $region197: #{tpu_custom_call.1} parent=191 // pred_check
          %p3904 = pneg %p770
        $region198: #{tpu_custom_call.1} parent=191 // pred_check_branch
          %3906 = sbr.rel (%p3904) target = $region200
        $region199: #{tpu_custom_call.1} parent=191 // pred_region
          %s3907 = smul.u32 2, %s91
          %p3908 = scmp.lt.s32.totalorder %s90, 1
          %s3909 = scalar_select %p3908, %s90, 1
          %p3910 = scmp.lt.s32.totalorder %s3907, 3
          %s3911 = scalar_select %p3910, %s3907, 3
          %s3912 = smul.addr %s3909, 4
          %s3913 = sadd.s32 %s3911, %s3912
          %s3914 = smul.addr %s3913, 8
          %s3915 = scalar_lea.vmem %s59, %s3914
        $region200: #{tpu_custom_call.1} parent=191 // pred_fallthru
          _
      $region192: #{tpu_custom_call.1} parent=5 // pred_fallthru
        _
    $region6: #{tpu_custom_call.1} parent=1 // loop_footer
      %s83 = sadd.s32 1, %s79
    $region7: #{tpu_custom_call.1} parent=1 // loop_footer_branch
      %78 = sbr.rel target = $region3
    $region8: #{tpu_custom_call.1} parent=1 // loop_exit
      _
    %3916 = vsyncpa [#allocation9], 1
    %s3917 = scalar_lea.sflag [#allocation9], 1
    %3918 = vsyncpa %s3917, 1
    %3919 = vsyncpa [#allocation12], 1
    %s3920 = scalar_lea.sflag [#allocation12], 1
    %3921 = vsyncpa %s3920, 1
    %3922 = vsyncpa [#allocation15], 1
    %3923 = vsyncpa [#allocation18], 1
    %3924 = vsyncpa [#allocation21], 1
    %3925 = vsyncpa [#allocation24], 1
    %3926 = vsyncpa [#allocation10], 1
    %s3927 = scalar_lea.sflag [#allocation10], 1
    %3928 = vsyncpa %s3927, 1

</llo_original>
